<compile_context>
chip_gen: v7x
topology: tpu7x:2x2x1
jax: 0.10.0
libtpu: 0.0.40
codegen_flags: <defaults>
</compile_context>

<pallas_src>
import numpy as np
import jax
import jax.numpy as jnp
from jax import lax
from jax.experimental import pallas as pl
from jax.experimental.pallas import tpu as pltpu

EPS = 1e-5
NEG_SLOPE = 0.05


def _round_up(x, m):
    return (x + m - 1) // m * m


# ----------------------------------------------------------------------------
# Kernel A: whole-batch BatchNorm statistics -> folded per-column scale/shift.
# Grid = (phase, batch-tile); both axes sequential ("arbitrary").
# ----------------------------------------------------------------------------
def make_stats_kernel(B, TB, L1, L2):
    n1 = float(B * L1)
    n2 = float(B * L2)

    def kernel(y_ref, w1_ref, b1_ref, m1_ref, cb1_ref, s1_ref, g1_ref, be1_ref,
               m2_ref, cb2_ref, s2_ref, g2_ref, be2_ref,
               sc1_ref, sc2_ref,                         # outputs [2, CL1P], [2, CL2P]
               sum1_ref, sq1_ref, sum2_ref, sq2_ref):    # scratch  [1, C1]x2, [1, C2o]x2
        p = pl.program_id(0)
        t = pl.program_id(1)
        T = pl.num_programs(1)

        # Validity mask for rows of a (possibly zero-padded) batch tile: keeps the
        # batch statistics exact when B is not a multiple of the tile size.
        row = t * TB + lax.broadcasted_iota(jnp.int32, (TB, 1), 0)
        rowmask = (row < B).astype(jnp.float32)

        def compute_h1():
            # Linear (+ Unflatten layout) and ConvTranspose1d #1 as bf16 MXU matmuls
            yb = y_ref[...].astype(jnp.bfloat16)
            h0 = jnp.dot(yb, w1_ref[...],
                         preferred_element_type=jnp.float32) + b1_ref[...]
            h1 = jnp.dot(h0.astype(jnp.bfloat16), m1_ref[...],
                         preferred_element_type=jnp.float32) + cb1_ref[...]
            return h1 * rowmask          # zero padded batch rows

        @pl.when((p == 0) & (t == 0))
        def _init():
            sum1_ref[...] = jnp.zeros_like(sum1_ref)
            sq1_ref[...] = jnp.zeros_like(sq1_ref)
            sum2_ref[...] = jnp.zeros_like(sum2_ref)
            sq2_ref[...] = jnp.zeros_like(sq2_ref)

        @pl.when(p == 0)
        def _phase0():
            h1 = compute_h1()
            # Per-channel partial sums via the indicator matrix (MXU, not XLU-wide reduce)
            ps = jnp.dot(h1, s1_ref[...], preferred_element_type=jnp.float32)
            pss = jnp.dot(h1 * h1, s1_ref[...], preferred_element_type=jnp.float32)
            sum1_ref[...] += jnp.sum(ps, axis=0, keepdims=True)
            sq1_ref[...] += jnp.sum(pss, axis=0, keepdims=True)

        @pl.when((p == 1) & (t == 0))
        def _fold_bn1():
            mean = sum1_ref[...] / n1
            var = sq1_ref[...] / n1 - mean * mean
            scale_c = lax.rsqrt(var + EPS) * g1_ref[...]          # [1, C1]
            shift_c = be1_ref[...] - mean * scale_c               # [1, C1]
            cs = jnp.concatenate([scale_c, shift_c], axis=0)      # [2, C1]
            # Broadcast per-channel -> per-column with ONE matmul against S1^T
            sc1_ref[...] = lax.dot_general(
                cs, s1_ref[...], (((1,), (1,)), ((), ())),
                preferred_element_type=jnp.float32)

        @pl.when(p == 1)
        def _phase1():
            h1 = compute_h1()
            h1n = h1 * sc1_ref[0:1, :] + sc1_ref[1:2, :]           # folded BN1 (FMA)
            a1 = jnp.where(h1n > 0, h1n, NEG_SLOPE * h1n)          # LeakyReLU(0.05)
            h2 = jnp.dot(a1.astype(jnp.bfloat16), m2_ref[...],
                         preferred_element_type=jnp.float32) + cb2_ref[...]
            h2 = h2 * rowmask
            ps = jnp.dot(h2, s2_ref[...], preferred_element_type=jnp.float32)
            pss = jnp.dot(h2 * h2, s2_ref[...], preferred_element_type=jnp.float32)
            sum2_ref[...] += jnp.sum(ps, axis=0, keepdims=True)
            sq2_ref[...] += jnp.sum(pss, axis=0, keepdims=True)

        @pl.when((p == 1) & (t == T - 1))
        def _fold_bn2():
            mean = sum2_ref[...] / n2
            var = sq2_ref[...] / n2 - mean * mean
            scale_c = lax.rsqrt(var + EPS) * g2_ref[...]
            shift_c = be2_ref[...] - mean * scale_c
            cs = jnp.concatenate([scale_c, shift_c], axis=0)       # [2, C2o]
            sc2_ref[...] = lax.dot_general(
                cs, s2_ref[...], (((1,), (1,)), ((), ())),
                preferred_element_type=jnp.float32)

    return kernel


# ----------------------------------------------------------------------------
# Kernel B: apply pass (batch-parallel grid, weights VMEM-resident).
# ----------------------------------------------------------------------------
def apply_kernel(y_ref, w1_ref, b1_ref, m1_ref, cb1_ref, m2_ref, cb2_ref,
                 sc1_ref, sc2_ref, out_ref):
    yb = y_ref[...].astype(jnp.bfloat16)
    h0 = jnp.dot(yb, w1_ref[...], preferred_element_type=jnp.float32) + b1_ref[...]
    h1 = jnp.dot(h0.astype(jnp.bfloat16), m1_ref[...],
                 preferred_element_type=jnp.float32) + cb1_ref[...]
    h1n = h1 * sc1_ref[0:1, :] + sc1_ref[1:2, :]
    a1 = jnp.where(h1n > 0, h1n, NEG_SLOPE * h1n)
    h2 = jnp.dot(a1.astype(jnp.bfloat16), m2_ref[...],
                 preferred_element_type=jnp.float32) + cb2_ref[...]
    out_ref[...] = h2 * sc2_ref[0:1, :] + sc2_ref[1:2, :]


# ----------------------------------------------------------------------------
# Glue: ConvTranspose1d -> dense matrix, channel indicator, padding, pallas_calls.
# ----------------------------------------------------------------------------
def conv_transpose1d_as_matrix(w, L_in, stride):
    """w: [C_in, C_out, K] (PyTorch ConvTranspose1d weight layout).
    Returns M: [C_in*L_in, C_out*L_out] with
      M[(ci*L_in + i), (co*L_out + o)] = w[ci, co, o - i*stride] when valid."""
    C_in, C_out, K = w.shape
    L_out = (L_in - 1) * stride + K
    i = jnp.arange(L_in)[:, None]
    o = jnp.arange(L_out)[None, :]
    k = o - i * stride
    valid = (k >= 0) & (k < K)
    kc = jnp.clip(k, 0, K - 1)
    M = w[:, :, kc]                                # [C_in, C_out, L_in, L_out]
    M = jnp.where(valid[None, None], M, 0.0)
    M = jnp.transpose(M, (0, 2, 1, 3)).reshape(C_in * L_in, C_out * L_out)
    return M, L_out


def channel_indicator(C, L, rows_padded):
    """S: [rows_padded, C] with S[c*L + l, c] = 1; padded rows are all-zero so
    padded columns never contribute to BN statistics."""
    S = jnp.repeat(jnp.eye(C, dtype=jnp.float32), L, axis=0)
    return jnp.pad(S, ((0, rows_padded - C * L), (0, 0)))


def drgn_decoder_forward(y, params, dims, tile_rows=None):
    B, Z = y.shape
    C1, L0 = dims["encoder_output_dims"]
    C2o = dims["in_channels"]
    stride = dims["stride"]
    F = C1 * L0

    M1, L1 = conv_transpose1d_as_matrix(params["wT1"], L0, stride)
    M2, L2 = conv_transpose1d_as_matrix(params["wT2"], L1, stride)

    # Lane-dense (128-aligned) flattened conv dims.
    CL1, CL2 = C1 * L1, C2o * L2
    CL1P, CL2P = _round_up(CL1, 128), _round_up(CL2, 128)

    # Batch tiling: 8-row aligned tiles, up to 256 rows per tile.
    TB = tile_rows if tile_rows is not None else min(256, _round_up(B, 8))
    TB = _round_up(TB, 8)
    T = -(-B // TB)
    B_pad = T * TB

    f32, bf16 = jnp.float32, jnp.bfloat16
    y_pad = jnp.pad(y.astype(f32), ((0, B_pad - B), (0, 0)))

    # bf16 matmul operands (f32 accumulation in-kernel), zero-padded to lane multiples.
    W1b = params["W1"].astype(bf16)                                         # [Z, F]
    b1 = params["b1"].astype(f32).reshape(1, F)
    M1b = jnp.pad(M1, ((0, 0), (0, CL1P - CL1))).astype(bf16)               # [F, CL1P]
    M2b = jnp.pad(M2, ((0, CL1P - CL1), (0, CL2P - CL2))).astype(bf16)      # [CL1P, CL2P]
    cb1 = jnp.pad(jnp.repeat(params["cbias1"], L1)[None, :].astype(f32),
                  ((0, 0), (0, CL1P - CL1)))
    cb2 = jnp.pad(jnp.repeat(params["cbias2"], L2)[None, :].astype(f32),
                  ((0, 0), (0, CL2P - CL2)))
    S1 = channel_indicator(C1, L1, CL1P)                                    # [CL1P, C1]
    S2 = channel_indicator(C2o, L2, CL2P)                                   # [CL2P, C2o]
    g1 = params["gamma1"].astype(f32)[None, :]                              # [1, C1]
    be1 = params["beta1"].astype(f32)[None, :]
    g2 = params["gamma2"].astype(f32)[None, :]                              # [1, C2o]
    be2 = params["beta2"].astype(f32)[None, :]

    const2 = lambda p, t: (0, 0)   # weights stay VMEM-resident across the grid
    const1 = lambda t: (0, 0)

    # --- Kernel A: BN statistics + folded per-column scale/shift ------------
    sc1, sc2 = pl.pallas_call(
        make_stats_kernel(B, TB, L1, L2),
        grid=(2, T),
        in_specs=[
            pl.BlockSpec((TB, Z), lambda p, t: (t, 0)),    # y
            pl.BlockSpec((Z, F), const2),                  # W1 (bf16)
            pl.BlockSpec((1, F), const2),                  # b1
            pl.BlockSpec((F, CL1P), const2),               # M1 (bf16)
            pl.BlockSpec((1, CL1P), const2),               # cb1
            pl.BlockSpec((CL1P, C1), const2),              # S1
            pl.BlockSpec((1, C1), const2),                 # gamma1
            pl.BlockSpec((1, C1), const2),                 # beta1
            pl.BlockSpec((CL1P, CL2P), const2),            # M2 (bf16)
            pl.BlockSpec((1, CL2P), const2),               # cb2
            pl.BlockSpec((CL2P, C2o), const2),             # S2
            pl.BlockSpec((1, C2o), const2),                # gamma2
            pl.BlockSpec((1, C2o), const2),                # beta2
        ],
        out_specs=[pl.BlockSpec((2, CL1P), const2),
                   pl.BlockSpec((2, CL2P), const2)],
        out_shape=(jax.ShapeDtypeStruct((2, CL1P), f32),
                   jax.ShapeDtypeStruct((2, CL2P), f32)),
        scratch_shapes=[pltpu.VMEM((1, C1), f32), pltpu.VMEM((1, C1), f32),
                        pltpu.VMEM((1, C2o), f32), pltpu.VMEM((1, C2o), f32)],
        compiler_params=pltpu.CompilerParams(
            dimension_semantics=("arbitrary", "arbitrary"),
            vmem_limit_bytes=32 * 1024 * 1024),
    )(y_pad, W1b, b1, M1b, cb1, S1, g1, be1, M2b, cb2, S2, g2, be2)

    # --- Kernel B: apply pass (batch tiles are independent -> parallel) -----
    out_flat = pl.pallas_call(
        apply_kernel,
        grid=(T,),
        in_specs=[
            pl.BlockSpec((TB, Z), lambda t: (t, 0)),
            pl.BlockSpec((Z, F), const1),
            pl.BlockSpec((1, F), const1),
            pl.BlockSpec((F, CL1P), const1),
            pl.BlockSpec((1, CL1P), const1),
            pl.BlockSpec((CL1P, CL2P), const1),
            pl.BlockSpec((1, CL2P), const1),
            pl.BlockSpec((2, CL1P), const1),
            pl.BlockSpec((2, CL2P), const1),
        ],
        out_specs=pl.BlockSpec((TB, CL2P), lambda t: (t, 0)),   # 256-lane-dense store
        out_shape=jax.ShapeDtypeStruct((B_pad, CL2P), f32),
        compiler_params=pltpu.CompilerParams(
            dimension_semantics=("parallel",),                  # v7x megacore sharding
            vmem_limit_bytes=32 * 1024 * 1024),
    )(y_pad, W1b, b1, M1b, cb1, M2b, cb2, sc1, sc2)

    return out_flat[:B, :CL2].reshape(B, C2o, L2)


# ----------------------------------------------------------------------------
# Pure-numpy reference (direct scatter implementation of ConvTranspose1d).
# ----------------------------------------------------------------------------
def reference_forward(y, params, dims):
    C2, L0 = dims["encoder_output_dims"]
    stride = dims["stride"]
    y = np.asarray(y, np.float64)

    def convT(x, w, b):
        C_in, C_out, K = w.shape
        B, _, L_in = x.shape
        L_out = (L_in - 1) * stride + K
        out = np.zeros((B, C_out, L_out), np.float64)
        for i in range(L_in):
            for k in range(K):
                out[:, :, i * stride + k] += x[:, :, i] @ w[:, :, k]
        return out + np.asarray(b, np.float64)[None, :, None]

    def bn(x, g, be):
        m = x.mean(axis=(0, 2), keepdims=True)
        v = x.var(axis=(0, 2), keepdims=True)   # biased, like PyTorch train-mode BN
        return (x - m) / np.sqrt(v + EPS) * np.asarray(g)[None, :, None] \
            + np.asarray(be)[None, :, None]

    h0 = y @ np.asarray(params["W1"], np.float64) + np.asarray(params["b1"], np.float64)[0]
    x = h0.reshape(y.shape[0], C2, L0)
    h1 = bn(convT(x, np.asarray(params["wT1"], np.float64), params["cbias1"]),
            params["gamma1"], params["beta1"])
    a1 = np.where(h1 > 0, h1, NEG_SLOPE * h1)
    h2 = bn(convT(a1, np.asarray(params["wT2"], np.float64), params["cbias2"]),
            params["gamma2"], params["beta2"])
    return h2


# ----------------------------------------------------------------------------
# Main
# ----------------------------------------------------------------------------
if __name__ == "__main__":
    in_channels = 4
    n_latents = 12              # decoder input dim = n_latents - 4 = 8
    out_channels_2 = 16
    L0 = 8
    encoder_output_dims = (out_channels_2, L0)   # Unflatten(1, (16, 8))
    kernel, stride = 5, 2
    B = 2
    Z = n_latents - 4
    F = out_channels_2 * L0

    dims = dict(in_channels=in_channels, encoder_output_dims=encoder_output_dims,
                kernel=kernel, stride=stride)

    key = jax.random.PRNGKey(0)
    ks = jax.random.split(key, 12)

    params = {
        "W1": (jax.random.normal(ks[0], (Z, F), jnp.float32) * 0.2),
        "b1": (jax.random.normal(ks[1], (1, F), jnp.float32) * 0.1),
        "wT1": (jax.random.normal(ks[2], (out_channels_2, out_channels_2, kernel),
                                  jnp.float32) * 0.2),
        "cbias1": (jax.random.normal(ks[3], (out_channels_2,), jnp.float32) * 0.1),
        "gamma1": (1.0 + 0.1 * jax.random.normal(ks[4], (out_channels_2,), jnp.float32)),
        "beta1": (0.1 * jax.random.normal(ks[5], (out_channels_2,), jnp.float32)),
        "wT2": (jax.random.normal(ks[6], (out_channels_2, in_channels, kernel),
                                  jnp.float32) * 0.2),
        "cbias2": (jax.random.normal(ks[7], (in_channels,), jnp.float32) * 0.1),
        "gamma2": (1.0 + 0.1 * jax.random.normal(ks[8], (in_channels,), jnp.float32)),
        "beta2": (0.1 * jax.random.normal(ks[9], (in_channels,), jnp.float32)),
    }

    L1 = (L0 - 1) * stride + kernel
    L2 = (L1 - 1) * stride + kernel

    # --- Test 1: module-sized batch (B=2, single batch tile) -----------------
    y = jax.random.normal(ks[10], (B, Z), jnp.float32)
    out = jax.block_until_ready(drgn_decoder_forward(y, params, dims))
    assert out.shape == (B, in_channels, L2), out.shape
    ref = reference_forward(y, params, dims)
    # bf16 matmul operands with f32 accumulation -> ~1% relative error budget.
    np.testing.assert_allclose(np.asarray(out), ref, rtol=2e-2, atol=2e-2)

    # --- Test 2: exercise multi-tile batch grid + padded-row masking ---------
    B2 = 20
    y2 = jax.random.normal(ks[11], (B2, Z), jnp.float32)
    out2 = jax.block_until_ready(drgn_decoder_forward(y2, params, dims, tile_rows=8))
    assert out2.shape == (B2, in_channels, L2), out2.shape
    ref2 = reference_forward(y2, params, dims)
    np.testing.assert_allclose(np.asarray(out2), ref2, rtol=2e-2, atol=2e-2)

    print("KERNEL_OK")
</pallas_src>

<mosaic_0001>
module attributes {stable_mosaic.version = 11 : i64} {
  func.func @kernel(%arg0: i32, %arg1: i32, %arg2: memref<8x8xf32, #tpu.memory_space<vmem>>, %arg3: memref<8x128xbf16, #tpu.memory_space<vmem>>, %arg4: memref<1x128xf32, #tpu.memory_space<vmem>>, %arg5: memref<128x384xbf16, #tpu.memory_space<vmem>>, %arg6: memref<1x384xf32, #tpu.memory_space<vmem>>, %arg7: memref<384x16xf32, #tpu.memory_space<vmem>>, %arg8: memref<1x16xf32, #tpu.memory_space<vmem>>, %arg9: memref<1x16xf32, #tpu.memory_space<vmem>>, %arg10: memref<384x256xbf16, #tpu.memory_space<vmem>>, %arg11: memref<1x256xf32, #tpu.memory_space<vmem>>, %arg12: memref<256x4xf32, #tpu.memory_space<vmem>>, %arg13: memref<1x4xf32, #tpu.memory_space<vmem>>, %arg14: memref<1x4xf32, #tpu.memory_space<vmem>>, %arg15: memref<2x384xf32, #tpu.memory_space<vmem>>, %arg16: memref<2x256xf32, #tpu.memory_space<vmem>>, %arg17: memref<1x16xf32, #tpu.memory_space<vmem>>, %arg18: memref<1x16xf32, #tpu.memory_space<vmem>>, %arg19: memref<1x4xf32, #tpu.memory_space<vmem>>, %arg20: memref<1x4xf32, #tpu.memory_space<vmem>>) attributes {dimension_semantics = [#tpu.dimension_semantics<arbitrary>, #tpu.dimension_semantics<arbitrary>], iteration_bounds = array<i64: 2, 1>, scalar_prefetch = 0 : i64, scratch_operands = 4 : i64, tpu.core_type = #tpu.core_type<tc>, window_params = [{transform_indices = @transform_0, window_bounds = array<i64: 8, 8>}, {pipeline_mode = #tpu.pipeline_mode<synchronous>, transform_indices = @transform_1, window_bounds = array<i64: 8, 128>}, {pipeline_mode = #tpu.pipeline_mode<synchronous>, transform_indices = @transform_2, window_bounds = array<i64: 1, 128>}, {pipeline_mode = #tpu.pipeline_mode<synchronous>, transform_indices = @transform_3, window_bounds = array<i64: 128, 384>}, {pipeline_mode = #tpu.pipeline_mode<synchronous>, transform_indices = @transform_4, window_bounds = array<i64: 1, 384>}, {pipeline_mode = #tpu.pipeline_mode<synchronous>, transform_indices = @transform_5, window_bounds = array<i64: 384, 16>}, {pipeline_mode = #tpu.pipeline_mode<synchronous>, transform_indices = @transform_6, window_bounds = array<i64: 1, 16>}, {pipeline_mode = #tpu.pipeline_mode<synchronous>, transform_indices = @transform_7, window_bounds = array<i64: 1, 16>}, {pipeline_mode = #tpu.pipeline_mode<synchronous>, transform_indices = @transform_8, window_bounds = array<i64: 384, 256>}, {pipeline_mode = #tpu.pipeline_mode<synchronous>, transform_indices = @transform_9, window_bounds = array<i64: 1, 256>}, {pipeline_mode = #tpu.pipeline_mode<synchronous>, transform_indices = @transform_10, window_bounds = array<i64: 256, 4>}, {pipeline_mode = #tpu.pipeline_mode<synchronous>, transform_indices = @transform_11, window_bounds = array<i64: 1, 4>}, {pipeline_mode = #tpu.pipeline_mode<synchronous>, transform_indices = @transform_12, window_bounds = array<i64: 1, 4>}, {pipeline_mode = #tpu.pipeline_mode<synchronous>, transform_indices = @transform_13, window_bounds = array<i64: 2, 384>}, {pipeline_mode = #tpu.pipeline_mode<synchronous>, transform_indices = @transform_14, window_bounds = array<i64: 2, 256>}]} {
    %c8_i32 = arith.constant 8 : i32
    %0 = arith.muli %arg1, %c8_i32 : i32
    %1 = tpu.iota {dimensions = array<i32: 0>} : vector<8x1xi32>
    %2 = vector.broadcast %0 : i32 to vector<8x1xi32>
    %3 = arith.addi %2, %1 : vector<8x1xi32>
    %c2_i32 = arith.constant 2 : i32
    %4 = vector.broadcast %c2_i32 : i32 to vector<8x1xi32>
    %5 = arith.cmpi slt, %3, %4 : vector<8x1xi32>
    %6 = arith.extui %5 : vector<8x1xi1> to vector<8x1xi32>
    %7 = arith.sitofp %6 : vector<8x1xi32> to vector<8x1xf32>
    %c0_i32 = arith.constant 0 : i32
    %8 = arith.cmpi eq, %arg0, %c0_i32 : i32
    %c0_i32_0 = arith.constant 0 : i32
    %9 = arith.cmpi eq, %arg1, %c0_i32_0 : i32
    %10 = arith.andi %8, %9 : i1
    %11 = arith.extui %10 : i1 to i32
    %c0_i32_1 = arith.constant 0 : i32
    %12 = arith.cmpi ne, %11, %c0_i32_1 : i32
    scf.if %12 {
      %cst = arith.constant 0.000000e+00 : f32
      %29 = vector.broadcast %cst : f32 to vector<1x16xf32>
      %c0 = arith.constant 0 : index
      %c0_11 = arith.constant 0 : index
      %30 = vector.load %arg17[%c0, %c0_11] : memref<1x16xf32, #tpu.memory_space<vmem>>, vector<1x16xf32>
      tpu.vector_store %arg17[%c0, %c0_11], %29 {strides = array<i32>} : memref<1x16xf32, #tpu.memory_space<vmem>>, vector<1x16xf32>,
      %cst_12 = arith.constant 0.000000e+00 : f32
      %31 = vector.broadcast %cst_12 : f32 to vector<1x16xf32>
      %c0_13 = arith.constant 0 : index
      %c0_14 = arith.constant 0 : index
      %32 = vector.load %arg18[%c0_13, %c0_14] : memref<1x16xf32, #tpu.memory_space<vmem>>, vector<1x16xf32>
      tpu.vector_store %arg18[%c0_13, %c0_14], %31 {strides = array<i32>} : memref<1x16xf32, #tpu.memory_space<vmem>>, vector<1x16xf32>,
      %cst_15 = arith.constant 0.000000e+00 : f32
      %33 = vector.broadcast %cst_15 : f32 to vector<1x4xf32>
      %c0_16 = arith.constant 0 : index
      %c0_17 = arith.constant 0 : index
      %34 = vector.load %arg19[%c0_16, %c0_17] : memref<1x4xf32, #tpu.memory_space<vmem>>, vector<1x4xf32>
      tpu.vector_store %arg19[%c0_16, %c0_17], %33 {strides = array<i32>} : memref<1x4xf32, #tpu.memory_space<vmem>>, vector<1x4xf32>,
      %cst_18 = arith.constant 0.000000e+00 : f32
      %35 = vector.broadcast %cst_18 : f32 to vector<1x4xf32>
      %c0_19 = arith.constant 0 : index
      %c0_20 = arith.constant 0 : index
      %36 = vector.load %arg20[%c0_19, %c0_20] : memref<1x4xf32, #tpu.memory_space<vmem>>, vector<1x4xf32>
      tpu.vector_store %arg20[%c0_19, %c0_20], %35 {strides = array<i32>} : memref<1x4xf32, #tpu.memory_space<vmem>>, vector<1x4xf32>,
    } else {
    }
    %c0_i32_2 = arith.constant 0 : i32
    %13 = arith.cmpi eq, %arg0, %c0_i32_2 : i32
    %14 = arith.extui %13 : i1 to i32
    %c0_i32_3 = arith.constant 0 : i32
    %15 = arith.cmpi ne, %14, %c0_i32_3 : i32
    scf.if %15 {
      %c0 = arith.constant 0 : index
      %c0_11 = arith.constant 0 : index
      %29 = vector.load %arg2[%c0, %c0_11] : memref<8x8xf32, #tpu.memory_space<vmem>>, vector<8x8xf32>
      %30 = arith.truncf %29 : vector<8x8xf32> to vector<8x8xbf16>
      %c0_12 = arith.constant 0 : index
      %c0_13 = arith.constant 0 : index
      %31 = vector.load %arg3[%c0_12, %c0_13] : memref<8x128xbf16, #tpu.memory_space<vmem>>, vector<8x128xbf16>
      %cst = arith.constant dense<0.000000e+00> : vector<8x128xf32>
      %32 = tpu.matmul %30, %31, %cst {dimension_numbers = #tpu.dot_dimension_numbers<[1], [0], [0], [1], [0, 0, 1, 1], [], []>} : vector<8x8xbf16>, vector<8x128xbf16>, vector<8x128xf32> -> vector<8x128xf32>
      %c0_14 = arith.constant 0 : index
      %c0_15 = arith.constant 0 : index
      %33 = vector.load %arg4[%c0_14, %c0_15] : memref<1x128xf32, #tpu.memory_space<vmem>>, vector<1x128xf32>
      %34 = vector.broadcast %33 : vector<1x128xf32> to vector<8x128xf32>
      %35 = arith.addf %32, %34 : vector<8x128xf32>
      %36 = arith.truncf %35 : vector<8x128xf32> to vector<8x128xbf16>
      %c0_16 = arith.constant 0 : index
      %c0_17 = arith.constant 0 : index
      %37 = vector.load %arg5[%c0_16, %c0_17] : memref<128x384xbf16, #tpu.memory_space<vmem>>, vector<128x384xbf16>
      %cst_18 = arith.constant dense<0.000000e+00> : vector<8x384xf32>
      %38 = tpu.matmul %36, %37, %cst_18 {dimension_numbers = #tpu.dot_dimension_numbers<[1], [0], [0], [1], [0, 0, 1, 1], [], []>} : vector<8x128xbf16>, vector<128x384xbf16>, vector<8x384xf32> -> vector<8x384xf32>
      %c0_19 = arith.constant 0 : index
      %c0_20 = arith.constant 0 : index
      %39 = vector.load %arg6[%c0_19, %c0_20] : memref<1x384xf32, #tpu.memory_space<vmem>>, vector<1x384xf32>
      %40 = vector.broadcast %39 : vector<1x384xf32> to vector<8x384xf32>
      %41 = arith.addf %38, %40 : vector<8x384xf32>
      %42 = vector.broadcast %7 : vector<8x1xf32> to vector<8x384xf32>
      %43 = arith.mulf %41, %42 : vector<8x384xf32>
      %c0_21 = arith.constant 0 : index
      %c0_22 = arith.constant 0 : index
      %44 = vector.load %arg7[%c0_21, %c0_22] : memref<384x16xf32, #tpu.memory_space<vmem>>, vector<384x16xf32>
      %cst_23 = arith.constant dense<0.000000e+00> : vector<8x16xf32>
      %45 = tpu.matmul %43, %44, %cst_23 {dimension_numbers = #tpu.dot_dimension_numbers<[1], [0], [0], [1], [0, 0, 1, 1], [], []>} : vector<8x384xf32>, vector<384x16xf32>, vector<8x16xf32> -> vector<8x16xf32>
      %46 = arith.mulf %43, %43 : vector<8x384xf32>
      %c0_24 = arith.constant 0 : index
      %c0_25 = arith.constant 0 : index
      %47 = vector.load %arg7[%c0_24, %c0_25] : memref<384x16xf32, #tpu.memory_space<vmem>>, vector<384x16xf32>
      %cst_26 = arith.constant dense<0.000000e+00> : vector<8x16xf32>
      %48 = tpu.matmul %46, %47, %cst_26 {dimension_numbers = #tpu.dot_dimension_numbers<[1], [0], [0], [1], [0, 0, 1, 1], [], []>} : vector<8x384xf32>, vector<384x16xf32>, vector<8x16xf32> -> vector<8x16xf32>
      %c0_27 = arith.constant 0 : index
      %c0_28 = arith.constant 0 : index
      %49 = vector.load %arg17[%c0_27, %c0_28] : memref<1x16xf32, #tpu.memory_space<vmem>>, vector<1x16xf32>
      %cst_29 = arith.constant dense<0.000000e+00> : vector<16xf32>
      %50 = vector.multi_reduction <add>, %45, %cst_29 [0] : vector<8x16xf32> to vector<16xf32>
      %51 = vector.shape_cast %50 : vector<16xf32> to vector<1x16xf32>
      %52 = arith.addf %49, %51 : vector<1x16xf32>
      %c0_30 = arith.constant 0 : index
      %c0_31 = arith.constant 0 : index
      %53 = vector.load %arg17[%c0_30, %c0_31] : memref<1x16xf32, #tpu.memory_space<vmem>>, vector<1x16xf32>
      tpu.vector_store %arg17[%c0_30, %c0_31], %52 {strides = array<i32>} : memref<1x16xf32, #tpu.memory_space<vmem>>, vector<1x16xf32>,
      %c0_32 = arith.constant 0 : index
      %c0_33 = arith.constant 0 : index
      %54 = vector.load %arg18[%c0_32, %c0_33] : memref<1x16xf32, #tpu.memory_space<vmem>>, vector<1x16xf32>
      %cst_34 = arith.constant dense<0.000000e+00> : vector<16xf32>
      %55 = vector.multi_reduction <add>, %48, %cst_34 [0] : vector<8x16xf32> to vector<16xf32>
      %56 = vector.shape_cast %55 : vector<16xf32> to vector<1x16xf32>
      %57 = arith.addf %54, %56 : vector<1x16xf32>
      %c0_35 = arith.constant 0 : index
      %c0_36 = arith.constant 0 : index
      %58 = vector.load %arg18[%c0_35, %c0_36] : memref<1x16xf32, #tpu.memory_space<vmem>>, vector<1x16xf32>
      tpu.vector_store %arg18[%c0_35, %c0_36], %57 {strides = array<i32>} : memref<1x16xf32, #tpu.memory_space<vmem>>, vector<1x16xf32>,
    } else {
    }
    %c1_i32 = arith.constant 1 : i32
    %16 = arith.cmpi eq, %arg0, %c1_i32 : i32
    %c0_i32_4 = arith.constant 0 : i32
    %17 = arith.cmpi eq, %arg1, %c0_i32_4 : i32
    %18 = arith.andi %16, %17 : i1
    %19 = arith.extui %18 : i1 to i32
    %c0_i32_5 = arith.constant 0 : i32
    %20 = arith.cmpi ne, %19, %c0_i32_5 : i32
    scf.if %20 {
      %c0 = arith.constant 0 : index
      %c0_11 = arith.constant 0 : index
      %29 = vector.load %arg17[%c0, %c0_11] : memref<1x16xf32, #tpu.memory_space<vmem>>, vector<1x16xf32>
      %cst = arith.constant 3.800000e+01 : f32
      %30 = vector.broadcast %cst : f32 to vector<1x16xf32>
      %31 = arith.divf %29, %30 : vector<1x16xf32>
      %c0_12 = arith.constant 0 : index
      %c0_13 = arith.constant 0 : index
      %32 = vector.load %arg18[%c0_12, %c0_13] : memref<1x16xf32, #tpu.memory_space<vmem>>, vector<1x16xf32>
      %cst_14 = arith.constant 3.800000e+01 : f32
      %33 = vector.broadcast %cst_14 : f32 to vector<1x16xf32>
      %34 = arith.divf %32, %33 : vector<1x16xf32>
      %35 = arith.mulf %31, %31 : vector<1x16xf32>
      %36 = arith.subf %34, %35 : vector<1x16xf32>
      %cst_15 = arith.constant 9.99999974E-6 : f32
      %37 = vector.broadcast %cst_15 : f32 to vector<1x16xf32>
      %38 = arith.addf %36, %37 : vector<1x16xf32>
      %39 = math.rsqrt %38 : vector<1x16xf32>
      %c0_16 = arith.constant 0 : index
      %c0_17 = arith.constant 0 : index
      %40 = vector.load %arg8[%c0_16, %c0_17] : memref<1x16xf32, #tpu.memory_space<vmem>>, vector<1x16xf32>
      %41 = arith.mulf %39, %40 : vector<1x16xf32>
      %c0_18 = arith.constant 0 : index
      %c0_19 = arith.constant 0 : index
      %42 = vector.load %arg9[%c0_18, %c0_19] : memref<1x16xf32, #tpu.memory_space<vmem>>, vector<1x16xf32>
      %43 = arith.mulf %31, %41 : vector<1x16xf32>
      %44 = arith.subf %42, %43 : vector<1x16xf32>
      %45 = tpu.concatenate %41, %44 in 0 : vector<1x16xf32>, vector<1x16xf32> -> vector<2x16xf32>
      %c0_20 = arith.constant 0 : index
      %c0_21 = arith.constant 0 : index
      %46 = vector.load %arg7[%c0_20, %c0_21] : memref<384x16xf32, #tpu.memory_space<vmem>>, vector<384x16xf32>
      %cst_22 = arith.constant dense<0.000000e+00> : vector<2x384xf32>
      %47 = tpu.matmul %45, %46, %cst_22 {dimension_numbers = #tpu.dot_dimension_numbers<[1], [1], [0], [0], [0, 0, 1, 0], [], []>} : vector<2x16xf32>, vector<384x16xf32>, vector<2x384xf32> -> vector<2x384xf32>
      %c0_23 = arith.constant 0 : index
      %c0_24 = arith.constant 0 : index
      %48 = vector.load %arg15[%c0_23, %c0_24] : memref<2x384xf32, #tpu.memory_space<vmem>>, vector<2x384xf32>
      tpu.vector_store %arg15[%c0_23, %c0_24], %47 {strides = array<i32>} : memref<2x384xf32, #tpu.memory_space<vmem>>, vector<2x384xf32>,
    } else {
    }
    %c1_i32_6 = arith.constant 1 : i32
    %21 = arith.cmpi eq, %arg0, %c1_i32_6 : i32
    %22 = arith.extui %21 : i1 to i32
    %c0_i32_7 = arith.constant 0 : i32
    %23 = arith.cmpi ne, %22, %c0_i32_7 : i32
    scf.if %23 {
      %c0 = arith.constant 0 : index
      %c0_11 = arith.constant 0 : index
      %29 = vector.load %arg2[%c0, %c0_11] : memref<8x8xf32, #tpu.memory_space<vmem>>, vector<8x8xf32>
      %30 = arith.truncf %29 : vector<8x8xf32> to vector<8x8xbf16>
      %c0_12 = arith.constant 0 : index
      %c0_13 = arith.constant 0 : index
      %31 = vector.load %arg3[%c0_12, %c0_13] : memref<8x128xbf16, #tpu.memory_space<vmem>>, vector<8x128xbf16>
      %cst = arith.constant dense<0.000000e+00> : vector<8x128xf32>
      %32 = tpu.matmul %30, %31, %cst {dimension_numbers = #tpu.dot_dimension_numbers<[1], [0], [0], [1], [0, 0, 1, 1], [], []>} : vector<8x8xbf16>, vector<8x128xbf16>, vector<8x128xf32> -> vector<8x128xf32>
      %c0_14 = arith.constant 0 : index
      %c0_15 = arith.constant 0 : index
      %33 = vector.load %arg4[%c0_14, %c0_15] : memref<1x128xf32, #tpu.memory_space<vmem>>, vector<1x128xf32>
      %34 = vector.broadcast %33 : vector<1x128xf32> to vector<8x128xf32>
      %35 = arith.addf %32, %34 : vector<8x128xf32>
      %36 = arith.truncf %35 : vector<8x128xf32> to vector<8x128xbf16>
      %c0_16 = arith.constant 0 : index
      %c0_17 = arith.constant 0 : index
      %37 = vector.load %arg5[%c0_16, %c0_17] : memref<128x384xbf16, #tpu.memory_space<vmem>>, vector<128x384xbf16>
      %cst_18 = arith.constant dense<0.000000e+00> : vector<8x384xf32>
      %38 = tpu.matmul %36, %37, %cst_18 {dimension_numbers = #tpu.dot_dimension_numbers<[1], [0], [0], [1], [0, 0, 1, 1], [], []>} : vector<8x128xbf16>, vector<128x384xbf16>, vector<8x384xf32> -> vector<8x384xf32>
      %c0_19 = arith.constant 0 : index
      %c0_20 = arith.constant 0 : index
      %39 = vector.load %arg6[%c0_19, %c0_20] : memref<1x384xf32, #tpu.memory_space<vmem>>, vector<1x384xf32>
      %40 = vector.broadcast %39 : vector<1x384xf32> to vector<8x384xf32>
      %41 = arith.addf %38, %40 : vector<8x384xf32>
      %42 = vector.broadcast %7 : vector<8x1xf32> to vector<8x384xf32>
      %43 = arith.mulf %41, %42 : vector<8x384xf32>
      %c0_21 = arith.constant 0 : index
      %c0_22 = arith.constant 0 : index
      %44 = vector.load %arg15[%c0_21, %c0_22] : memref<2x384xf32, #tpu.memory_space<vmem>>, vector<1x384xf32>
      %45 = vector.broadcast %44 : vector<1x384xf32> to vector<8x384xf32>
      %46 = arith.mulf %43, %45 : vector<8x384xf32>
      %c1 = arith.constant 1 : index
      %c0_23 = arith.constant 0 : index
      %47 = vector.load %arg15[%c1, %c0_23] : memref<2x384xf32, #tpu.memory_space<vmem>>, vector<1x384xf32>
      %48 = vector.broadcast %47 : vector<1x384xf32> to vector<8x384xf32>
      %49 = arith.addf %46, %48 : vector<8x384xf32>
      %cst_24 = arith.constant 0.000000e+00 : f32
      %50 = vector.broadcast %cst_24 : f32 to vector<8x384xf32>
      %51 = arith.cmpf ogt, %49, %50 : vector<8x384xf32>
      %cst_25 = arith.constant 5.000000e-02 : f32
      %52 = vector.broadcast %cst_25 : f32 to vector<8x384xf32>
      %53 = arith.mulf %52, %49 : vector<8x384xf32>
      %54 = arith.select %51, %49, %53 : vector<8x384xi1>, vector<8x384xf32>
      %55 = arith.truncf %54 : vector<8x384xf32> to vector<8x384xbf16>
      %c0_26 = arith.constant 0 : index
      %c0_27 = arith.constant 0 : index
      %56 = vector.load %arg10[%c0_26, %c0_27] : memref<384x256xbf16, #tpu.memory_space<vmem>>, vector<384x256xbf16>
      %cst_28 = arith.constant dense<0.000000e+00> : vector<8x256xf32>
      %57 = tpu.matmul %55, %56, %cst_28 {dimension_numbers = #tpu.dot_dimension_numbers<[1], [0], [0], [1], [0, 0, 1, 1], [], []>} : vector<8x384xbf16>, vector<384x256xbf16>, vector<8x256xf32> -> vector<8x256xf32>
      %c0_29 = arith.constant 0 : index
      %c0_30 = arith.constant 0 : index
      %58 = vector.load %arg11[%c0_29, %c0_30] : memref<1x256xf32, #tpu.memory_space<vmem>>, vector<1x256xf32>
      %59 = vector.broadcast %58 : vector<1x256xf32> to vector<8x256xf32>
      %60 = arith.addf %57, %59 : vector<8x256xf32>
      %61 = vector.broadcast %7 : vector<8x1xf32> to vector<8x256xf32>
      %62 = arith.mulf %60, %61 : vector<8x256xf32>
      %c0_31 = arith.constant 0 : index
      %c0_32 = arith.constant 0 : index
      %63 = vector.load %arg12[%c0_31, %c0_32] : memref<256x4xf32, #tpu.memory_space<vmem>>, vector<256x4xf32>
      %cst_33 = arith.constant dense<0.000000e+00> : vector<8x4xf32>
      %64 = tpu.matmul %62, %63, %cst_33 {dimension_numbers = #tpu.dot_dimension_numbers<[1], [0], [0], [1], [0, 0, 1, 1], [], []>} : vector<8x256xf32>, vector<256x4xf32>, vector<8x4xf32> -> vector<8x4xf32>
      %65 = arith.mulf %62, %62 : vector<8x256xf32>
      %c0_34 = arith.constant 0 : index
      %c0_35 = arith.constant 0 : index
      %66 = vector.load %arg12[%c0_34, %c0_35] : memref<256x4xf32, #tpu.memory_space<vmem>>, vector<256x4xf32>
      %cst_36 = arith.constant dense<0.000000e+00> : vector<8x4xf32>
      %67 = tpu.matmul %65, %66, %cst_36 {dimension_numbers = #tpu.dot_dimension_numbers<[1], [0], [0], [1], [0, 0, 1, 1], [], []>} : vector<8x256xf32>, vector<256x4xf32>, vector<8x4xf32> -> vector<8x4xf32>
      %c0_37 = arith.constant 0 : index
      %c0_38 = arith.constant 0 : index
      %68 = vector.load %arg19[%c0_37, %c0_38] : memref<1x4xf32, #tpu.memory_space<vmem>>, vector<1x4xf32>
      %cst_39 = arith.constant dense<0.000000e+00> : vector<4xf32>
      %69 = vector.multi_reduction <add>, %64, %cst_39 [0] : vector<8x4xf32> to vector<4xf32>
      %70 = vector.shape_cast %69 : vector<4xf32> to vector<1x4xf32>
      %71 = arith.addf %68, %70 : vector<1x4xf32>
      %c0_40 = arith.constant 0 : index
      %c0_41 = arith.constant 0 : index
      %72 = vector.load %arg19[%c0_40, %c0_41] : memref<1x4xf32, #tpu.memory_space<vmem>>, vector<1x4xf32>
      tpu.vector_store %arg19[%c0_40, %c0_41], %71 {strides = array<i32>} : memref<1x4xf32, #tpu.memory_space<vmem>>, vector<1x4xf32>,
      %c0_42 = arith.constant 0 : index
      %c0_43 = arith.constant 0 : index
      %73 = vector.load %arg20[%c0_42, %c0_43] : memref<1x4xf32, #tpu.memory_space<vmem>>, vector<1x4xf32>
      %cst_44 = arith.constant dense<0.000000e+00> : vector<4xf32>
      %74 = vector.multi_reduction <add>, %67, %cst_44 [0] : vector<8x4xf32> to vector<4xf32>
      %75 = vector.shape_cast %74 : vector<4xf32> to vector<1x4xf32>
      %76 = arith.addf %73, %75 : vector<1x4xf32>
      %c0_45 = arith.constant 0 : index
      %c0_46 = arith.constant 0 : index
      %77 = vector.load %arg20[%c0_45, %c0_46] : memref<1x4xf32, #tpu.memory_space<vmem>>, vector<1x4xf32>
      tpu.vector_store %arg20[%c0_45, %c0_46], %76 {strides = array<i32>} : memref<1x4xf32, #tpu.memory_space<vmem>>, vector<1x4xf32>,
    } else {
    }
    %c1_i32_8 = arith.constant 1 : i32
    %24 = arith.cmpi eq, %arg0, %c1_i32_8 : i32
    %c0_i32_9 = arith.constant 0 : i32
    %25 = arith.cmpi eq, %arg1, %c0_i32_9 : i32
    %26 = arith.andi %24, %25 : i1
    %27 = arith.extui %26 : i1 to i32
    %c0_i32_10 = arith.constant 0 : i32
    %28 = arith.cmpi ne, %27, %c0_i32_10 : i32
    scf.if %28 {
      %c0 = arith.constant 0 : index
      %c0_11 = arith.constant 0 : index
      %29 = vector.load %arg19[%c0, %c0_11] : memref<1x4xf32, #tpu.memory_space<vmem>>, vector<1x4xf32>
      %cst = arith.constant 8.200000e+01 : f32
      %30 = vector.broadcast %cst : f32 to vector<1x4xf32>
      %31 = arith.divf %29, %30 : vector<1x4xf32>
      %c0_12 = arith.constant 0 : index
      %c0_13 = arith.constant 0 : index
      %32 = vector.load %arg20[%c0_12, %c0_13] : memref<1x4xf32, #tpu.memory_space<vmem>>, vector<1x4xf32>
      %cst_14 = arith.constant 8.200000e+01 : f32
      %33 = vector.broadcast %cst_14 : f32 to vector<1x4xf32>
      %34 = arith.divf %32, %33 : vector<1x4xf32>
      %35 = arith.mulf %31, %31 : vector<1x4xf32>
      %36 = arith.subf %34, %35 : vector<1x4xf32>
      %cst_15 = arith.constant 9.99999974E-6 : f32
      %37 = vector.broadcast %cst_15 : f32 to vector<1x4xf32>
      %38 = arith.addf %36, %37 : vector<1x4xf32>
      %39 = math.rsqrt %38 : vector<1x4xf32>
      %c0_16 = arith.constant 0 : index
      %c0_17 = arith.constant 0 : index
      %40 = vector.load %arg13[%c0_16, %c0_17] : memref<1x4xf32, #tpu.memory_space<vmem>>, vector<1x4xf32>
      %41 = arith.mulf %39, %40 : vector<1x4xf32>
      %c0_18 = arith.constant 0 : index
      %c0_19 = arith.constant 0 : index
      %42 = vector.load %arg14[%c0_18, %c0_19] : memref<1x4xf32, #tpu.memory_space<vmem>>, vector<1x4xf32>
      %43 = arith.mulf %31, %41 : vector<1x4xf32>
      %44 = arith.subf %42, %43 : vector<1x4xf32>
      %45 = tpu.concatenate %41, %44 in 0 : vector<1x4xf32>, vector<1x4xf32> -> vector<2x4xf32>
      %c0_20 = arith.constant 0 : index
      %c0_21 = arith.constant 0 : index
      %46 = vector.load %arg12[%c0_20, %c0_21] : memref<256x4xf32, #tpu.memory_space<vmem>>, vector<256x4xf32>
      %cst_22 = arith.constant dense<0.000000e+00> : vector<2x256xf32>
      %47 = tpu.matmul %45, %46, %cst_22 {dimension_numbers = #tpu.dot_dimension_numbers<[1], [1], [0], [0], [0, 0, 1, 0], [], []>} : vector<2x4xf32>, vector<256x4xf32>, vector<2x256xf32> -> vector<2x256xf32>
      %c0_23 = arith.constant 0 : index
      %c0_24 = arith.constant 0 : index
      %48 = vector.load %arg16[%c0_23, %c0_24] : memref<2x256xf32, #tpu.memory_space<vmem>>, vector<2x256xf32>
      tpu.vector_store %arg16[%c0_23, %c0_24], %47 {strides = array<i32>} : memref<2x256xf32, #tpu.memory_space<vmem>>, vector<2x256xf32>,
    } else {
    }
    return
  }
  func.func @transform_0(%arg0: i32, %arg1: i32) -> (i32, i32) {
    %c0_i32 = arith.constant 0 : i32
    %c0_i32_0 = arith.constant 0 : i32
    return %arg1, %c0_i32 : i32, i32
  }
  func.func @transform_1(%arg0: i32, %arg1: i32) -> (i32, i32) {
    %c0_i32 = arith.constant 0 : i32
    %c0_i32_0 = arith.constant 0 : i32
    %c0_i32_1 = arith.constant 0 : i32
    return %c0_i32, %c0_i32_0 : i32, i32
  }
  func.func @transform_2(%arg0: i32, %arg1: i32) -> (i32, i32) {
    %c0_i32 = arith.constant 0 : i32
    %c0_i32_0 = arith.constant 0 : i32
    %c0_i32_1 = arith.constant 0 : i32
    return %c0_i32, %c0_i32_0 : i32, i32
  }
  func.func @transform_3(%arg0: i32, %arg1: i32) -> (i32, i32) {
    %c0_i32 = arith.constant 0 : i32
    %c0_i32_0 = arith.constant 0 : i32
    %c0_i32_1 = arith.constant 0 : i32
    return %c0_i32, %c0_i32_0 : i32, i32
  }
  func.func @transform_4(%arg0: i32, %arg1: i32) -> (i32, i32) {
    %c0_i32 = arith.constant 0 : i32
    %c0_i32_0 = arith.constant 0 : i32
    %c0_i32_1 = arith.constant 0 : i32
    return %c0_i32, %c0_i32_0 : i32, i32
  }
  func.func @transform_5(%arg0: i32, %arg1: i32) -> (i32, i32) {
    %c0_i32 = arith.constant 0 : i32
    %c0_i32_0 = arith.constant 0 : i32
    %c0_i32_1 = arith.constant 0 : i32
    return %c0_i32, %c0_i32_0 : i32, i32
  }
  func.func @transform_6(%arg0: i32, %arg1: i32) -> (i32, i32) {
    %c0_i32 = arith.constant 0 : i32
    %c0_i32_0 = arith.constant 0 : i32
    %c0_i32_1 = arith.constant 0 : i32
    return %c0_i32, %c0_i32_0 : i32, i32
  }
  func.func @transform_7(%arg0: i32, %arg1: i32) -> (i32, i32) {
    %c0_i32 = arith.constant 0 : i32
    %c0_i32_0 = arith.constant 0 : i32
    %c0_i32_1 = arith.constant 0 : i32
    return %c0_i32, %c0_i32_0 : i32, i32
  }
  func.func @transform_8(%arg0: i32, %arg1: i32) -> (i32, i32) {
    %c0_i32 = arith.constant 0 : i32
    %c0_i32_0 = arith.constant 0 : i32
    %c0_i32_1 = arith.constant 0 : i32
    return %c0_i32, %c0_i32_0 : i32, i32
  }
  func.func @transform_9(%arg0: i32, %arg1: i32) -> (i32, i32) {
    %c0_i32 = arith.constant 0 : i32
    %c0_i32_0 = arith.constant 0 : i32
    %c0_i32_1 = arith.constant 0 : i32
    return %c0_i32, %c0_i32_0 : i32, i32
  }
  func.func @transform_10(%arg0: i32, %arg1: i32) -> (i32, i32) {
    %c0_i32 = arith.constant 0 : i32
    %c0_i32_0 = arith.constant 0 : i32
    %c0_i32_1 = arith.constant 0 : i32
    return %c0_i32, %c0_i32_0 : i32, i32
  }
  func.func @transform_11(%arg0: i32, %arg1: i32) -> (i32, i32) {
    %c0_i32 = arith.constant 0 : i32
    %c0_i32_0 = arith.constant 0 : i32
    %c0_i32_1 = arith.constant 0 : i32
    return %c0_i32, %c0_i32_0 : i32, i32
  }
  func.func @transform_12(%arg0: i32, %arg1: i32) -> (i32, i32) {
    %c0_i32 = arith.constant 0 : i32
    %c0_i32_0 = arith.constant 0 : i32
    %c0_i32_1 = arith.constant 0 : i32
    return %c0_i32, %c0_i32_0 : i32, i32
  }
  func.func @transform_13(%arg0: i32, %arg1: i32) -> (i32, i32) {
    %c0_i32 = arith.constant 0 : i32
    %c0_i32_0 = arith.constant 0 : i32
    %c0_i32_1 = arith.constant 0 : i32
    return %c0_i32, %c0_i32_0 : i32, i32
  }
  func.func @transform_14(%arg0: i32, %arg1: i32) -> (i32, i32) {
    %c0_i32 = arith.constant 0 : i32
    %c0_i32_0 = arith.constant 0 : i32
    %c0_i32_1 = arith.constant 0 : i32
    return %c0_i32, %c0_i32_0 : i32, i32
  }
}

</mosaic_0001>

<llo_original>
// kernel: tpu_custom_call.1
$region0: #{tpu_custom_call.1}
  #allocation0 [shape = 'u32[]', space=smem, size = 0x4, offset = 0x4, fixed_abs, tag = 'smem constant byte address 0x4 - core index']
  #allocation1 [shape = 'u32[144,128]{1,0:T(1,128)}', space=vmem, size = 0x12000, scoped, tag = 'internal scratch']
  #allocation2 [shape = 'f32[1,16]{1,0:T(1,128)}', space=vmem, size = 0x200, scoped, tag = 'scratch operand']
  #allocation3 [shape = 'f32[1,16]{1,0:T(1,128)}', space=vmem, size = 0x200, scoped, tag = 'scratch operand']
  #allocation4 [shape = 'f32[1,4]{1,0:T(1,128)}', space=vmem, size = 0x200, scoped, tag = 'scratch operand']
  #allocation5 [shape = 'f32[1,4]{1,0:T(1,128)}', space=vmem, size = 0x200, scoped, tag = 'scratch operand']
  %s0 = inlined_call_operand.vmem [shape: f32[8,8], index: 0, kind: input, shape index: {}]
  %s1 = inlined_call_operand.vmem [shape: bf16[8,128], index: 1, kind: input, shape index: {}]
  %s2 = inlined_call_operand.vmem [shape: f32[1,128], index: 2, kind: input, shape index: {}]
  %s3 = inlined_call_operand.vmem [shape: bf16[128,384], index: 3, kind: input, shape index: {}]
  %s4 = inlined_call_operand.vmem [shape: f32[1,384], index: 4, kind: input, shape index: {}]
  %s5 = inlined_call_operand.vmem [shape: f32[384,16], index: 5, kind: input, shape index: {}]
  %s6 = inlined_call_operand.vmem [shape: f32[1,16], index: 6, kind: input, shape index: {}]
  %s7 = inlined_call_operand.vmem [shape: f32[1,16], index: 7, kind: input, shape index: {}]
  %s8 = inlined_call_operand.vmem [shape: bf16[384,256], index: 8, kind: input, shape index: {}]
  %s9 = inlined_call_operand.vmem [shape: f32[1,256], index: 9, kind: input, shape index: {}]
  %s10 = inlined_call_operand.vmem [shape: f32[256,4], index: 10, kind: input, shape index: {}]
  %s11 = inlined_call_operand.vmem [shape: f32[1,4], index: 11, kind: input, shape index: {}]
  %s12 = inlined_call_operand.vmem [shape: f32[1,4], index: 12, kind: input, shape index: {}]
  %s13 = inlined_call_operand.hbm [shape: f32[2,384], index: 13, kind: output, shape index: {0}]
  %s14 = inlined_call_operand.hbm [shape: f32[2,256], index: 14, kind: output, shape index: {1}]
  %15 = xla_tuple %s13, %s14
  %s16 = sld [smem:[#allocation0]]
  $region113: #{tpu_custom_call.1} parent=0
    _
  %s18 = ssub.s32 1, %s16
  %s19 = scalar_select 0, %s18, %s16
  $region1: #{tpu_custom_call.1} parent=0
    #allocation6 [shape = 'u8[3072]{0}', space=vmem, size = 0xc00, scoped, tag = 'output window, operand 0, single buffered']
    #allocation7 [shape = 's32[2]{0}', space=sflag, size = 0x8, scoped, tag = 'scoped memory for tpu_custom_call.1']
    #allocation8 [shape = 'u8[2048]{0}', space=vmem, size = 0x800, scoped, tag = 'output window, operand 1, single buffered']
    #allocation9 [shape = 's32[1]{0}', space=sflag, size = 0x4, scoped, tag = 'scoped memory for tpu_custom_call.1']
    %20 = vsyncpa [#allocation7], 0
    %21 = vsyncpa [#allocation9], 0
    loop: start=0, step=1, limit=4
    $region2: #{tpu_custom_call.1} parent=1 // loop_pre_header
      _
    $region3: #{tpu_custom_call.1} parent=1 // loop_header
      %s23 = sphi 0, %s27
      %p24 = scmp.ge.s32.totalorder %s23, 4
      %s30 = sphi 0, %s42
      %s31 = sphi 0, %s38
      %s32 = sphi 0, %s30
      %s33 = sphi 0, %s31
      %s34 = sphi 0, %s32
      %s35 = sphi 0, %s33
      %s45 = sphi 0, %s47
      %s48 = sphi 0, %s45
      %s49 = sphi 0, %s48
      %s65 = sphi 0, %s49
      %s69 = sphi 0, %s69
      %s71 = sphi 0, %s69
      %s72 = sphi 0, %s71
      %s86 = sphi 0, %s72
      %s90 = sphi 0, %s90
      %s92 = sphi 0, %s90
      %s93 = sphi 0, %s92
      %s107 = sphi 0, %s93
      %s111 = sphi 0, %s111
      %s113 = sphi 0, %s111
      %s114 = sphi 0, %s113
      %s128 = sphi 0, %s114
      %s132 = sphi 0, %s132
      %s134 = sphi 0, %s132
      %s135 = sphi 0, %s134
      %s149 = sphi 0, %s135
      %s153 = sphi 0, %s153
      %s155 = sphi 0, %s153
      %s156 = sphi 0, %s155
      %s170 = sphi 0, %s156
      %s174 = sphi 0, %s174
      %s176 = sphi 0, %s174
      %s177 = sphi 0, %s176
      %s191 = sphi 0, %s177
      %s195 = sphi 0, %s195
      %s197 = sphi 0, %s195
      %s198 = sphi 0, %s197
      %s212 = sphi 0, %s198
      %s216 = sphi 0, %s216
      %s218 = sphi 0, %s216
      %s219 = sphi 0, %s218
      %s233 = sphi 0, %s219
      %s237 = sphi 0, %s237
      %s239 = sphi 0, %s237
      %s240 = sphi 0, %s239
      %s254 = sphi 0, %s240
      %s258 = sphi 0, %s258
      %s260 = sphi 0, %s258
      %s261 = sphi 0, %s260
      %s275 = sphi 0, %s261
      %s279 = sphi 0, %s279
      %s281 = sphi 0, %s279
      %s282 = sphi 0, %s281
      %s296 = sphi 0, %s282
      %s300 = sphi 0, %s300
      %s302 = sphi 0, %s300
      %s303 = sphi 0, %s302
      %s317 = sphi 0, %s303
      %s321 = sphi 0, %s321
      %s323 = sphi 0, %s321
      %s324 = sphi 0, %s323
      %s338 = sphi 0, %s324
      %s342 = sphi 0, %s342
      %s344 = sphi 0, %s342
      %s345 = sphi 0, %s344
      %s359 = sphi 0, %s345
    $region4: #{tpu_custom_call.1} parent=1 // loop_header_branch
      %26 = sbr.rel (%p24) target = $region8
    $region5: #{tpu_custom_call.1} parent=1 // loop_body
      %s28 = ssub.s32 %s23, 1
      %s29 = ssub.s32 %s23, 2
      %s36 = sadd.s32 1, %s31
      %p37 = scmp.ge.s32.totalorder %s36, 1
      %s38 = scalar_select %p37, 0, %s36
      %s39 = sadd.s32 1, %s30
      %s40 = scalar_select %p37, %s39, %s30
      %p41 = scmp.ge.s32.totalorder %s40, 2
      %s42 = scalar_select %p41, 0, %s40
      %s43 = ssub.s32 %s31, %s38
      %p44 = scmp.eq.s32.totalorder %s43, 0
      %s46 = sadd.s32 %s45, 1
      %s47 = scalar_select %p44, %s45, %s46
      %p50 = pneg %p44
      %p51 = scmp.eq.s32.totalorder %s23, 1
      %p52 = por %p50, %p51
      %p53 = scmp.ne.s32.totalorder %s45, %s48
      %p54 = scmp.eq.s32.totalorder %s23, 0
      %p55 = por %p53, %p54
      %p56 = scmp.ne.s32.totalorder %s45, %s48
      %p57 = scmp.eq.s32.totalorder %s28, 1
      %p58 = por %p56, %p57
      %p59 = scmp.ne.s32.totalorder %s48, %s49
      %p60 = scmp.eq.s32.totalorder %s28, 0
      %p61 = por %p59, %p60
      %p62 = scmp.ne.s32.totalorder %s48, %s49
      %p63 = scmp.eq.s32.totalorder %s29, 1
      %p64 = por %p62, %p63
      %p66 = scmp.ne.s32.totalorder %s49, %s65
      %p67 = scmp.eq.s32.totalorder %s29, 0
      %p68 = por %p66, %p67
      %s70 = sadd.s32 %s69, 1
      %p73 = scmp.eq.s32.totalorder %s23, 1
      %p74 = scmp.ne.s32.totalorder %s69, %s71
      %p75 = scmp.eq.s32.totalorder %s23, 0
      %p76 = por %p74, %p75
      %p77 = scmp.ne.s32.totalorder %s69, %s71
      %p78 = scmp.eq.s32.totalorder %s28, 1
      %p79 = por %p77, %p78
      %p80 = scmp.ne.s32.totalorder %s71, %s72
      %p81 = scmp.eq.s32.totalorder %s28, 0
      %p82 = por %p80, %p81
      %p83 = scmp.ne.s32.totalorder %s71, %s72
      %p84 = scmp.eq.s32.totalorder %s29, 1
      %p85 = por %p83, %p84
      %p87 = scmp.ne.s32.totalorder %s72, %s86
      %p88 = scmp.eq.s32.totalorder %s29, 0
      %p89 = por %p87, %p88
      %s91 = sadd.s32 %s90, 1
      %p94 = scmp.eq.s32.totalorder %s23, 1
      %p95 = scmp.ne.s32.totalorder %s90, %s92
      %p96 = scmp.eq.s32.totalorder %s23, 0
      %p97 = por %p95, %p96
      %p98 = scmp.ne.s32.totalorder %s90, %s92
      %p99 = scmp.eq.s32.totalorder %s28, 1
      %p100 = por %p98, %p99
      %p101 = scmp.ne.s32.totalorder %s92, %s93
      %p102 = scmp.eq.s32.totalorder %s28, 0
      %p103 = por %p101, %p102
      %p104 = scmp.ne.s32.totalorder %s92, %s93
      %p105 = scmp.eq.s32.totalorder %s29, 1
      %p106 = por %p104, %p105
      %p108 = scmp.ne.s32.totalorder %s93, %s107
      %p109 = scmp.eq.s32.totalorder %s29, 0
      %p110 = por %p108, %p109
      %s112 = sadd.s32 %s111, 1
      %p115 = scmp.eq.s32.totalorder %s23, 1
      %p116 = scmp.ne.s32.totalorder %s111, %s113
      %p117 = scmp.eq.s32.totalorder %s23, 0
      %p118 = por %p116, %p117
      %p119 = scmp.ne.s32.totalorder %s111, %s113
      %p120 = scmp.eq.s32.totalorder %s28, 1
      %p121 = por %p119, %p120
      %p122 = scmp.ne.s32.totalorder %s113, %s114
      %p123 = scmp.eq.s32.totalorder %s28, 0
      %p124 = por %p122, %p123
      %p125 = scmp.ne.s32.totalorder %s113, %s114
      %p126 = scmp.eq.s32.totalorder %s29, 1
      %p127 = por %p125, %p126
      %p129 = scmp.ne.s32.totalorder %s114, %s128
      %p130 = scmp.eq.s32.totalorder %s29, 0
      %p131 = por %p129, %p130
      %s133 = sadd.s32 %s132, 1
      %p136 = scmp.eq.s32.totalorder %s23, 1
      %p137 = scmp.ne.s32.totalorder %s132, %s134
      %p138 = scmp.eq.s32.totalorder %s23, 0
      %p139 = por %p137, %p138
      %p140 = scmp.ne.s32.totalorder %s132, %s134
      %p141 = scmp.eq.s32.totalorder %s28, 1
      %p142 = por %p140, %p141
      %p143 = scmp.ne.s32.totalorder %s134, %s135
      %p144 = scmp.eq.s32.totalorder %s28, 0
      %p145 = por %p143, %p144
      %p146 = scmp.ne.s32.totalorder %s134, %s135
      %p147 = scmp.eq.s32.totalorder %s29, 1
      %p148 = por %p146, %p147
      %p150 = scmp.ne.s32.totalorder %s135, %s149
      %p151 = scmp.eq.s32.totalorder %s29, 0
      %p152 = por %p150, %p151
      %s154 = sadd.s32 %s153, 1
      %p157 = scmp.eq.s32.totalorder %s23, 1
      %p158 = scmp.ne.s32.totalorder %s153, %s155
      %p159 = scmp.eq.s32.totalorder %s23, 0
      %p160 = por %p158, %p159
      %p161 = scmp.ne.s32.totalorder %s153, %s155
      %p162 = scmp.eq.s32.totalorder %s28, 1
      %p163 = por %p161, %p162
      %p164 = scmp.ne.s32.totalorder %s155, %s156
      %p165 = scmp.eq.s32.totalorder %s28, 0
      %p166 = por %p164, %p165
      %p167 = scmp.ne.s32.totalorder %s155, %s156
      %p168 = scmp.eq.s32.totalorder %s29, 1
      %p169 = por %p167, %p168
      %p171 = scmp.ne.s32.totalorder %s156, %s170
      %p172 = scmp.eq.s32.totalorder %s29, 0
      %p173 = por %p171, %p172
      %s175 = sadd.s32 %s174, 1
      %p178 = scmp.eq.s32.totalorder %s23, 1
      %p179 = scmp.ne.s32.totalorder %s174, %s176
      %p180 = scmp.eq.s32.totalorder %s23, 0
      %p181 = por %p179, %p180
      %p182 = scmp.ne.s32.totalorder %s174, %s176
      %p183 = scmp.eq.s32.totalorder %s28, 1
      %p184 = por %p182, %p183
      %p185 = scmp.ne.s32.totalorder %s176, %s177
      %p186 = scmp.eq.s32.totalorder %s28, 0
      %p187 = por %p185, %p186
      %p188 = scmp.ne.s32.totalorder %s176, %s177
      %p189 = scmp.eq.s32.totalorder %s29, 1
      %p190 = por %p188, %p189
      %p192 = scmp.ne.s32.totalorder %s177, %s191
      %p193 = scmp.eq.s32.totalorder %s29, 0
      %p194 = por %p192, %p193
      %s196 = sadd.s32 %s195, 1
      %p199 = scmp.eq.s32.totalorder %s23, 1
      %p200 = scmp.ne.s32.totalorder %s195, %s197
      %p201 = scmp.eq.s32.totalorder %s23, 0
      %p202 = por %p200, %p201
      %p203 = scmp.ne.s32.totalorder %s195, %s197
      %p204 = scmp.eq.s32.totalorder %s28, 1
      %p205 = por %p203, %p204
      %p206 = scmp.ne.s32.totalorder %s197, %s198
      %p207 = scmp.eq.s32.totalorder %s28, 0
      %p208 = por %p206, %p207
      %p209 = scmp.ne.s32.totalorder %s197, %s198
      %p210 = scmp.eq.s32.totalorder %s29, 1
      %p211 = por %p209, %p210
      %p213 = scmp.ne.s32.totalorder %s198, %s212
      %p214 = scmp.eq.s32.totalorder %s29, 0
      %p215 = por %p213, %p214
      %s217 = sadd.s32 %s216, 1
      %p220 = scmp.eq.s32.totalorder %s23, 1
      %p221 = scmp.ne.s32.totalorder %s216, %s218
      %p222 = scmp.eq.s32.totalorder %s23, 0
      %p223 = por %p221, %p222
      %p224 = scmp.ne.s32.totalorder %s216, %s218
      %p225 = scmp.eq.s32.totalorder %s28, 1
      %p226 = por %p224, %p225
      %p227 = scmp.ne.s32.totalorder %s218, %s219
      %p228 = scmp.eq.s32.totalorder %s28, 0
      %p229 = por %p227, %p228
      %p230 = scmp.ne.s32.totalorder %s218, %s219
      %p231 = scmp.eq.s32.totalorder %s29, 1
      %p232 = por %p230, %p231
      %p234 = scmp.ne.s32.totalorder %s219, %s233
      %p235 = scmp.eq.s32.totalorder %s29, 0
      %p236 = por %p234, %p235
      %s238 = sadd.s32 %s237, 1
      %p241 = scmp.eq.s32.totalorder %s23, 1
      %p242 = scmp.ne.s32.totalorder %s237, %s239
      %p243 = scmp.eq.s32.totalorder %s23, 0
      %p244 = por %p242, %p243
      %p245 = scmp.ne.s32.totalorder %s237, %s239
      %p246 = scmp.eq.s32.totalorder %s28, 1
      %p247 = por %p245, %p246
      %p248 = scmp.ne.s32.totalorder %s239, %s240
      %p249 = scmp.eq.s32.totalorder %s28, 0
      %p250 = por %p248, %p249
      %p251 = scmp.ne.s32.totalorder %s239, %s240
      %p252 = scmp.eq.s32.totalorder %s29, 1
      %p253 = por %p251, %p252
      %p255 = scmp.ne.s32.totalorder %s240, %s254
      %p256 = scmp.eq.s32.totalorder %s29, 0
      %p257 = por %p255, %p256
      %s259 = sadd.s32 %s258, 1
      %p262 = scmp.eq.s32.totalorder %s23, 1
      %p263 = scmp.ne.s32.totalorder %s258, %s260
      %p264 = scmp.eq.s32.totalorder %s23, 0
      %p265 = por %p263, %p264
      %p266 = scmp.ne.s32.totalorder %s258, %s260
      %p267 = scmp.eq.s32.totalorder %s28, 1
      %p268 = por %p266, %p267
      %p269 = scmp.ne.s32.totalorder %s260, %s261
      %p270 = scmp.eq.s32.totalorder %s28, 0
      %p271 = por %p269, %p270
      %p272 = scmp.ne.s32.totalorder %s260, %s261
      %p273 = scmp.eq.s32.totalorder %s29, 1
      %p274 = por %p272, %p273
      %p276 = scmp.ne.s32.totalorder %s261, %s275
      %p277 = scmp.eq.s32.totalorder %s29, 0
      %p278 = por %p276, %p277
      %s280 = sadd.s32 %s279, 1
      %p283 = scmp.eq.s32.totalorder %s23, 1
      %p284 = scmp.ne.s32.totalorder %s279, %s281
      %p285 = scmp.eq.s32.totalorder %s23, 0
      %p286 = por %p284, %p285
      %p287 = scmp.ne.s32.totalorder %s279, %s281
      %p288 = scmp.eq.s32.totalorder %s28, 1
      %p289 = por %p287, %p288
      %p290 = scmp.ne.s32.totalorder %s281, %s282
      %p291 = scmp.eq.s32.totalorder %s28, 0
      %p292 = por %p290, %p291
      %p293 = scmp.ne.s32.totalorder %s281, %s282
      %p294 = scmp.eq.s32.totalorder %s29, 1
      %p295 = por %p293, %p294
      %p297 = scmp.ne.s32.totalorder %s282, %s296
      %p298 = scmp.eq.s32.totalorder %s29, 0
      %p299 = por %p297, %p298
      %s301 = sadd.s32 %s300, 1
      %p304 = scmp.eq.s32.totalorder %s23, 1
      %p305 = scmp.ne.s32.totalorder %s300, %s302
      %p306 = scmp.eq.s32.totalorder %s23, 0
      %p307 = por %p305, %p306
      %p308 = scmp.ne.s32.totalorder %s300, %s302
      %p309 = scmp.eq.s32.totalorder %s28, 1
      %p310 = por %p308, %p309
      %p311 = scmp.ne.s32.totalorder %s302, %s303
      %p312 = scmp.eq.s32.totalorder %s28, 0
      %p313 = por %p311, %p312
      %p314 = scmp.ne.s32.totalorder %s302, %s303
      %p315 = scmp.eq.s32.totalorder %s29, 1
      %p316 = por %p314, %p315
      %p318 = scmp.ne.s32.totalorder %s303, %s317
      %p319 = scmp.eq.s32.totalorder %s29, 0
      %p320 = por %p318, %p319
      %s322 = sadd.s32 %s321, 1
      %p325 = scmp.eq.s32.totalorder %s23, 1
      %p326 = scmp.ne.s32.totalorder %s321, %s323
      %p327 = scmp.eq.s32.totalorder %s23, 0
      %p328 = por %p326, %p327
      %p329 = scmp.ne.s32.totalorder %s321, %s323
      %p330 = scmp.eq.s32.totalorder %s28, 1
      %p331 = por %p329, %p330
      %p332 = scmp.ne.s32.totalorder %s323, %s324
      %p333 = scmp.eq.s32.totalorder %s28, 0
      %p334 = por %p332, %p333
      %p335 = scmp.ne.s32.totalorder %s323, %s324
      %p336 = scmp.eq.s32.totalorder %s29, 1
      %p337 = por %p335, %p336
      %p339 = scmp.ne.s32.totalorder %s324, %s338
      %p340 = scmp.eq.s32.totalorder %s29, 0
      %p341 = por %p339, %p340
      %s343 = sadd.s32 %s342, 1
      %p346 = scmp.eq.s32.totalorder %s23, 1
      %p347 = scmp.ne.s32.totalorder %s342, %s344
      %p348 = scmp.eq.s32.totalorder %s23, 0
      %p349 = por %p347, %p348
      %p350 = scmp.ne.s32.totalorder %s342, %s344
      %p351 = scmp.eq.s32.totalorder %s28, 1
      %p352 = por %p350, %p351
      %p353 = scmp.ne.s32.totalorder %s344, %s345
      %p354 = scmp.eq.s32.totalorder %s28, 0
      %p355 = por %p353, %p354
      %p356 = scmp.ne.s32.totalorder %s344, %s345
      %p357 = scmp.eq.s32.totalorder %s29, 1
      %p358 = por %p356, %p357
      %p360 = scmp.ne.s32.totalorder %s345, %s359
      %p361 = scmp.eq.s32.totalorder %s29, 0
      %p362 = por %p360, %p361
      %p363 = scmp.le.s32.totalorder 1, %s23
      %p364 = scmp.lt.s32.totalorder %s23, 3
      %p365 = pnand %p363, %p364
      %p366 = pneg %p365
      // Predicated region
      $region9: #{tpu_custom_call.1} parent=5 // pred_check
        _
      $region10: #{tpu_custom_call.1} parent=5 // pred_check_branch
        %368 = sbr.rel (%p365) target = $region12
      $region11: #{tpu_custom_call.1} parent=5 // pred_region
        %s369 = ssub.s32 %s23, 1
        // Predicated region
        $region13: #{tpu_custom_call.1} parent=11 // pred_check
          %p370 = pneg %p61
        $region14: #{tpu_custom_call.1} parent=11 // pred_check_branch
          %372 = sbr.rel (%p370) target = $region16
        $region15: #{tpu_custom_call.1} parent=11 // pred_region
          %p373 = scmp.lt.s32.totalorder %s33, 0
          %s374 = scalar_select %p373, %s33, 0
          %s375 = smul.addr %s374, 8
          %s376 = scalar_lea.vmem %s0, %s375
        $region16: #{tpu_custom_call.1} parent=11 // pred_fallthru
          _
        // Predicated region
        $region17: #{tpu_custom_call.1} parent=11 // pred_check
          %p377 = pneg %p82
        $region18: #{tpu_custom_call.1} parent=11 // pred_check_branch
          %379 = sbr.rel (%p377) target = $region20
        $region19: #{tpu_custom_call.1} parent=11 // pred_region
          _
        $region20: #{tpu_custom_call.1} parent=11 // pred_fallthru
          _
        // Predicated region
        $region21: #{tpu_custom_call.1} parent=11 // pred_check
          %p380 = pneg %p103
        $region22: #{tpu_custom_call.1} parent=11 // pred_check_branch
          %382 = sbr.rel (%p380) target = $region24
        $region23: #{tpu_custom_call.1} parent=11 // pred_region
          _
        $region24: #{tpu_custom_call.1} parent=11 // pred_fallthru
          _
        // Predicated region
        $region25: #{tpu_custom_call.1} parent=11 // pred_check
          %p383 = pneg %p124
        $region26: #{tpu_custom_call.1} parent=11 // pred_check_branch
          %385 = sbr.rel (%p383) target = $region28
        $region27: #{tpu_custom_call.1} parent=11 // pred_region
          _
        $region28: #{tpu_custom_call.1} parent=11 // pred_fallthru
          _
        // Predicated region
        $region29: #{tpu_custom_call.1} parent=11 // pred_check
          %p386 = pneg %p145
        $region30: #{tpu_custom_call.1} parent=11 // pred_check_branch
          %388 = sbr.rel (%p386) target = $region32
        $region31: #{tpu_custom_call.1} parent=11 // pred_region
          _
        $region32: #{tpu_custom_call.1} parent=11 // pred_fallthru
          _
        // Predicated region
        $region33: #{tpu_custom_call.1} parent=11 // pred_check
          %p389 = pneg %p166
        $region34: #{tpu_custom_call.1} parent=11 // pred_check_branch
          %391 = sbr.rel (%p389) target = $region36
        $region35: #{tpu_custom_call.1} parent=11 // pred_region
          _
        $region36: #{tpu_custom_call.1} parent=11 // pred_fallthru
          _
        // Predicated region
        $region37: #{tpu_custom_call.1} parent=11 // pred_check
          %p392 = pneg %p187
        $region38: #{tpu_custom_call.1} parent=11 // pred_check_branch
          %394 = sbr.rel (%p392) target = $region40
        $region39: #{tpu_custom_call.1} parent=11 // pred_region
          _
        $region40: #{tpu_custom_call.1} parent=11 // pred_fallthru
          _
        // Predicated region
        $region41: #{tpu_custom_call.1} parent=11 // pred_check
          %p395 = pneg %p208
        $region42: #{tpu_custom_call.1} parent=11 // pred_check_branch
          %397 = sbr.rel (%p395) target = $region44
        $region43: #{tpu_custom_call.1} parent=11 // pred_region
          _
        $region44: #{tpu_custom_call.1} parent=11 // pred_fallthru
          _
        // Predicated region
        $region45: #{tpu_custom_call.1} parent=11 // pred_check
          %p398 = pneg %p229
        $region46: #{tpu_custom_call.1} parent=11 // pred_check_branch
          %400 = sbr.rel (%p398) target = $region48
        $region47: #{tpu_custom_call.1} parent=11 // pred_region
          _
        $region48: #{tpu_custom_call.1} parent=11 // pred_fallthru
          _
        // Predicated region
        $region49: #{tpu_custom_call.1} parent=11 // pred_check
          %p401 = pneg %p250
        $region50: #{tpu_custom_call.1} parent=11 // pred_check_branch
          %403 = sbr.rel (%p401) target = $region52
        $region51: #{tpu_custom_call.1} parent=11 // pred_region
          _
        $region52: #{tpu_custom_call.1} parent=11 // pred_fallthru
          _
        // Predicated region
        $region53: #{tpu_custom_call.1} parent=11 // pred_check
          %p404 = pneg %p271
        $region54: #{tpu_custom_call.1} parent=11 // pred_check_branch
          %406 = sbr.rel (%p404) target = $region56
        $region55: #{tpu_custom_call.1} parent=11 // pred_region
          _
        $region56: #{tpu_custom_call.1} parent=11 // pred_fallthru
          _
        // Predicated region
        $region57: #{tpu_custom_call.1} parent=11 // pred_check
          %p407 = pneg %p292
        $region58: #{tpu_custom_call.1} parent=11 // pred_check_branch
          %409 = sbr.rel (%p407) target = $region60
        $region59: #{tpu_custom_call.1} parent=11 // pred_region
          _
        $region60: #{tpu_custom_call.1} parent=11 // pred_fallthru
          _
        // Predicated region
        $region61: #{tpu_custom_call.1} parent=11 // pred_check
          %p410 = pneg %p313
        $region62: #{tpu_custom_call.1} parent=11 // pred_check_branch
          %412 = sbr.rel (%p410) target = $region64
        $region63: #{tpu_custom_call.1} parent=11 // pred_region
          _
        $region64: #{tpu_custom_call.1} parent=11 // pred_fallthru
          _
      $region12: #{tpu_custom_call.1} parent=5 // pred_fallthru
        _
      %p413 = scmp.lt.s32.totalorder %s23, 2
      // Predicated region
      $region65: #{tpu_custom_call.1} parent=5 // pred_check
        %p414 = pneg %p413
      $region66: #{tpu_custom_call.1} parent=5 // pred_check_branch
        %416 = sbr.rel (%p414) target = $region68
      $region67: #{tpu_custom_call.1} parent=5 // pred_region
        _
      $region68: #{tpu_custom_call.1} parent=5 // pred_fallthru
        _
      %p417 = scmp.le.s32.totalorder 1, %s23
      %p418 = scmp.lt.s32.totalorder %s23, 3
      %p419 = pnand %p417, %p418
      %p420 = pneg %p419
      // Predicated region
      $region69: #{tpu_custom_call.1} parent=5 // pred_check
        _
      $region70: #{tpu_custom_call.1} parent=5 // pred_check_branch
        %422 = sbr.rel (%p419) target = $region72
      $region71: #{tpu_custom_call.1} parent=5 // pred_region
        %s423 = ssub.s32 %s23, 1
        %p424 = scmp.lt.s32.totalorder %s33, 0
        %s425 = scalar_select %p424, %s33, 0
        %s426 = smul.addr %s425, 8
        %s427 = scalar_lea.vmem %s0, %s426
        %p428 = pneg %p61
        %p429 = pneg %p58
        %p430 = pneg %p82
        %p431 = pneg %p79
        %p432 = pneg %p103
        %p433 = pneg %p100
        %p434 = pneg %p124
        %p435 = pneg %p121
        %p436 = pneg %p145
        %p437 = pneg %p142
        %p438 = pneg %p166
        %p439 = pneg %p163
        %p440 = pneg %p187
        %p441 = pneg %p184
        %p442 = pneg %p208
        %p443 = pneg %p205
        %p444 = pneg %p229
        %p445 = pneg %p226
        %p446 = pneg %p250
        %p447 = pneg %p247
        %p448 = pneg %p271
        %p449 = pneg %p268
        %p450 = pneg %p292
        %p451 = pneg %p289
        %p452 = pneg %p313
        %p453 = pneg %p310
        %p454 = pneg %p334
        %p455 = pneg %p331
        %p456 = pneg %p355
        %p457 = pneg %p352
        %p458 = scmp.lt.s32.totalorder %s33, 0
        %s459 = scalar_select %p458, %s33, 0
        %s460 = smul.addr %s459, 8
        %s461 = scalar_lea.vmem %s0, %s460
        %s463 = smul.u32 %s33, 8
        %v464 = vlaneseq
        %v465 = vshrl.u32 %v464, 7
        %v466 = vstv %s463
        %v467 = vadd.s32 %v466, %v465
        %vm468 = vcmp.lt.s32.totalorder %v467, 2
        %v469 = vsel %vm468, 1, 0
        %v470 = vcvt.s32.f32 %v469
        %p471 = scmp.eq.s32.totalorder %s32, 0
        %p472 = scmp.eq.s32.totalorder %s33, 0
        %p473 = pnand %p471, %p472
        %p474 = pneg %p473
        // Predicated region
        $region73: #{tpu_custom_call.1} parent=71 // pred_check
          _
        $region74: #{tpu_custom_call.1} parent=71 // pred_check_branch
          %476 = sbr.rel (%p473) target = $region76
        $region75: #{tpu_custom_call.1} parent=71 // pred_region
          %vm477 = vcmask 122880
          %478 = vst.msk [vmem:[#allocation2] sm:$0x1] %vm477, 0.0
          %479 = vst.msk [vmem:[#allocation3] sm:$0x1] %vm477, 0.0
          %vm480 = vcmask 24576
          %481 = vst.msk [vmem:[#allocation4] sm:$0x1] %vm480, 0.0
          %482 = vst.msk [vmem:[#allocation5] sm:$0x1] %vm480, 0.0
        $region76: #{tpu_custom_call.1} parent=71 // pred_fallthru
          _
        // Predicated region
        $region77: #{tpu_custom_call.1} parent=71 // pred_check
          %p483 = pneg %p471
        $region78: #{tpu_custom_call.1} parent=71 // pred_check_branch
          %485 = sbr.rel (%p483) target = $region80
        $region79: #{tpu_custom_call.1} parent=71 // pred_region
          %v486 = vld [vmem:[%s461] sm:$0xff]
          %v487 = vpack.c.bf16 %v486, %v486
          %v488 = vld [vmem:[%s1] sm:$0xf]
          %v489 = vld [vmem:[%s2] sm:$0x1]
          %v491 = vlaneseq
          %v492 = vshrl.u32 %v491, 7
          %v493 = vsub.s32 0, %v492
          %v494 = vrot.slane %v489, %v493
          %vm496 = vcmask 64512
          %v498 = vsel %vm496, %v487, 0
          %vm500 = vcmask 1043456
          %v502 = vsel %vm500, %v488, 0
          %504 = vmatprep.subr.bf16.mxu0 0
          %505 = vmatpush1.bf16.msra.mxu0 %v502
          %506 = vmatprep.subr.bf16.mxu0 0
          %507 = vmatpush1.bf16.msra.mxu0 0
          %508 = vmatprep.subr.bf16.mxu0 0
          %509 = vmatpush1.bf16.msra.mxu0 0
          %510 = vmatprep.subr.bf16.mxu0 0
          %511 = vmatpush1.bf16.msra.mxu0 0
          %512 = vmatprep.subr.bf16.mxu0 0
          %513 = vmatpush1.bf16.msra.mxu0 0
          %514 = vmatprep.subr.bf16.mxu0 0
          %515 = vmatpush1.bf16.msra.mxu0 0
          %516 = vmatprep.subr.bf16.mxu0 0
          %517 = vmatpush1.bf16.msra.mxu0 0
          %518 = vmatprep.subr.bf16.mxu0 0
          %519 = vmatpush1.bf16.msra.mxu0 0
          %520 = vmatprep.subr.bf16.mxu0 0
          %521 = vmatpush1.bf16.msra.mxu0 0
          %522 = vmatprep.subr.bf16.mxu0 0
          %523 = vmatpush1.bf16.msra.mxu0 0
          %524 = vmatprep.subr.bf16.mxu0 0
          %525 = vmatpush1.bf16.msra.mxu0 0
          %526 = vmatprep.subr.bf16.mxu0 0
          %527 = vmatpush1.bf16.msra.mxu0 0
          %528 = vmatprep.subr.bf16.mxu0 0
          %529 = vmatpush1.bf16.msra.mxu0 0
          %530 = vmatprep.subr.bf16.mxu0 0
          %531 = vmatpush1.bf16.msra.mxu0 0
          %532 = vmatprep.subr.bf16.mxu0 0
          %533 = vmatpush1.bf16.msra.mxu0 0
          %534 = vmatprep.subr.bf16.mxu0 0
          %535 = vmatpush1.bf16.msra.mxu0 0
          %536 = vmatprep.mubr.bf16.mxu0 0
          %537 = vmatmul.mubr.bf16.gmra.mrb[0].mxu0 %v498
          %v538 = vpop.f32.mrb[0].mxu0
          %v539 = vadd.f32 %v494, %v538
          %v540 = vpop.f32.mrb[0].mxu0
          %v541 = vpop.f32.mrb[0].mxu0
          %v542 = vpop.f32.mrb[0].mxu0
          %543 = vdwg.mxu0
          %v544 = vpack.c.bf16 %v539, %v539
          %v545 = vld [vmem:[%s3] sm:$0xff]
          %v546 = vld [vmem:[%s3 + $0x8] sm:$0xf]
          %v547 = vld [vmem:[%s3 + $0xc] sm:$0xff]
          %v548 = vld [vmem:[%s3 + $0x14] sm:$0xf]
          %v549 = vld [vmem:[%s3 + $0x18] sm:$0xff]
          %v550 = vld [vmem:[%s3 + $0x20] sm:$0xf]
          %v551 = vld [vmem:[%s3 + $0x24] sm:$0xff]
          %v552 = vld [vmem:[%s3 + $0x2c] sm:$0xf]
          %v553 = vld [vmem:[%s3 + $0x30] sm:$0xff]
          %v554 = vld [vmem:[%s3 + $0x38] sm:$0xf]
          %v555 = vld [vmem:[%s3 + $0x3c] sm:$0xff]
          %v556 = vld [vmem:[%s3 + $0x44] sm:$0xf]
          %v557 = vld [vmem:[%s3 + $0x48] sm:$0xff]
          %v558 = vld [vmem:[%s3 + $0x50] sm:$0xf]
          %v559 = vld [vmem:[%s3 + $0x54] sm:$0xff]
          %v560 = vld [vmem:[%s3 + $0x5c] sm:$0xf]
          %v561 = vld [vmem:[%s3 + $0x60] sm:$0xff]
          %v562 = vld [vmem:[%s3 + $0x68] sm:$0xf]
          %v563 = vld [vmem:[%s3 + $0x6c] sm:$0xff]
          %v564 = vld [vmem:[%s3 + $0x74] sm:$0xf]
          %v565 = vld [vmem:[%s3 + $0x78] sm:$0xff]
          %v566 = vld [vmem:[%s3 + $0x80] sm:$0xf]
          %v567 = vld [vmem:[%s3 + $0x84] sm:$0xff]
          %v568 = vld [vmem:[%s3 + $0x8c] sm:$0xf]
          %v569 = vld [vmem:[%s3 + $0x90] sm:$0xff]
          %v570 = vld [vmem:[%s3 + $0x98] sm:$0xf]
          %v571 = vld [vmem:[%s3 + $0x9c] sm:$0xff]
          %v572 = vld [vmem:[%s3 + $0xa4] sm:$0xf]
          %v573 = vld [vmem:[%s3 + $0xa8] sm:$0xff]
          %v574 = vld [vmem:[%s3 + $0xb0] sm:$0xf]
          %v575 = vld [vmem:[%s3 + $0xb4] sm:$0xff]
          %v576 = vld [vmem:[%s3 + $0xbc] sm:$0xf]
          %v577 = vld [vmem:[%s4] sm:$0x7]
          %v579 = vlaneseq
          %v580 = vshrl.u32 %v579, 7
          %v581 = vsub.s32 0, %v580
          %v582 = vrot.slane %v577, %v581
          %v583 = vlaneseq
          %v584 = vshrl.u32 %v583, 7
          %v585 = vsub.s32 1, %v584
          %v586 = vrot.slane %v577, %v585
          %v587 = vlaneseq
          %v588 = vshrl.u32 %v587, 7
          %v589 = vsub.s32 2, %v588
          %v590 = vrot.slane %v577, %v589
          %v626 = vunpack.c.l.b16 %v545
          %v627 = vunpack.c.h.b16 %v545
          %v628 = vunpack.c.l.b16 %v546
          %v629 = vunpack.c.l.b16 %v547
          %v630 = vunpack.c.h.b16 %v547
          %v631 = vunpack.c.l.b16 %v548
          %v632 = vunpack.c.l.b16 %v549
          %v633 = vunpack.c.h.b16 %v549
          %v634 = vunpack.c.l.b16 %v550
          %v635 = vunpack.c.l.b16 %v551
          %v636 = vunpack.c.h.b16 %v551
          %v637 = vunpack.c.l.b16 %v552
          %v638 = vunpack.c.l.b16 %v553
          %v639 = vunpack.c.h.b16 %v553
          %v640 = vunpack.c.l.b16 %v554
          %v641 = vunpack.c.l.b16 %v555
          %v642 = vunpack.c.h.b16 %v555
          %v643 = vunpack.c.l.b16 %v556
          %v644 = vunpack.c.l.b16 %v557
          %v645 = vunpack.c.h.b16 %v557
          %v646 = vunpack.c.l.b16 %v558
          %v647 = vunpack.c.l.b16 %v559
          %v648 = vunpack.c.h.b16 %v559
          %v649 = vunpack.c.l.b16 %v560
          %v650 = vunpack.c.l.b16 %v561
          %v651 = vunpack.c.h.b16 %v561
          %v652 = vunpack.c.l.b16 %v562
          %v653 = vunpack.c.l.b16 %v563
          %v654 = vunpack.c.h.b16 %v563
          %v655 = vunpack.c.l.b16 %v564
          %v656 = vunpack.c.l.b16 %v565
          %v657 = vunpack.c.h.b16 %v565
          %v658 = vunpack.c.l.b16 %v566
          %v659 = vunpack.c.l.b16 %v567
          %v660 = vunpack.c.h.b16 %v567
          %v661 = vunpack.c.l.b16 %v568
          %v662 = vunpack.c.l.b16 %v569
          %v663 = vunpack.c.h.b16 %v569
          %v664 = vunpack.c.l.b16 %v570
          %v665 = vunpack.c.l.b16 %v571
          %v666 = vunpack.c.h.b16 %v571
          %v667 = vunpack.c.l.b16 %v572
          %v668 = vunpack.c.l.b16 %v573
          %v669 = vunpack.c.h.b16 %v573
          %v670 = vunpack.c.l.b16 %v574
          %v671 = vunpack.c.l.b16 %v575
          %v672 = vunpack.c.h.b16 %v575
          %v673 = vunpack.c.l.b16 %v576
          %v674 = vpack.c.b16 %v629, %v626
          %v675 = vpack.c.b16 %v630, %v627
          %v676 = vpack.c.b16 %v631, %v628
          %v677 = vpack.c.b16 %v635, %v632
          %v678 = vpack.c.b16 %v636, %v633
          %v679 = vpack.c.b16 %v637, %v634
          %v680 = vpack.c.b16 %v641, %v638
          %v681 = vpack.c.b16 %v642, %v639
          %v682 = vpack.c.b16 %v643, %v640
          %v683 = vpack.c.b16 %v647, %v644
          %v684 = vpack.c.b16 %v648, %v645
          %v685 = vpack.c.b16 %v649, %v646
          %v686 = vpack.c.b16 %v653, %v650
          %v687 = vpack.c.b16 %v654, %v651
          %v688 = vpack.c.b16 %v655, %v652
          %v689 = vpack.c.b16 %v659, %v656
          %v690 = vpack.c.b16 %v660, %v657
          %v691 = vpack.c.b16 %v661, %v658
          %v692 = vpack.c.b16 %v665, %v662
          %v693 = vpack.c.b16 %v666, %v663
          %v694 = vpack.c.b16 %v667, %v664
          %v695 = vpack.c.b16 %v671, %v668
          %v696 = vpack.c.b16 %v672, %v669
          %v697 = vpack.c.b16 %v673, %v670
          %722 = vmatprep.subr.bf16.mxu0 %v675
          %723 = vmatpush1.bf16.msra.mxu0 %v674
          %724 = vmatprep.subr.bf16.mxu0 %v678
          %725 = vmatpush1.bf16.msra.mxu0 %v677
          %726 = vmatprep.subr.bf16.mxu0 %v681
          %727 = vmatpush1.bf16.msra.mxu0 %v680
          %728 = vmatprep.subr.bf16.mxu0 %v684
          %729 = vmatpush1.bf16.msra.mxu0 %v683
          %730 = vmatprep.subr.bf16.mxu0 %v687
          %731 = vmatpush1.bf16.msra.mxu0 %v686
          %732 = vmatprep.subr.bf16.mxu0 %v690
          %733 = vmatpush1.bf16.msra.mxu0 %v689
          %734 = vmatprep.subr.bf16.mxu0 %v693
          %735 = vmatpush1.bf16.msra.mxu0 %v692
          %736 = vmatprep.subr.bf16.mxu0 %v696
          %737 = vmatpush1.bf16.msra.mxu0 %v695
          %738 = vmatprep.subr.bf16.mxu0 0
          %739 = vmatpush1.bf16.msra.mxu0 0
          %740 = vmatprep.subr.bf16.mxu0 0
          %741 = vmatpush1.bf16.msra.mxu0 0
          %742 = vmatprep.subr.bf16.mxu0 0
          %743 = vmatpush1.bf16.msra.mxu0 0
          %744 = vmatprep.subr.bf16.mxu0 0
          %745 = vmatpush1.bf16.msra.mxu0 0
          %746 = vmatprep.subr.bf16.mxu0 0
          %747 = vmatpush1.bf16.msra.mxu0 0
          %748 = vmatprep.subr.bf16.mxu0 0
          %749 = vmatpush1.bf16.msra.mxu0 0
          %750 = vmatprep.subr.bf16.mxu0 0
          %751 = vmatpush1.bf16.msra.mxu0 0
          %752 = vmatprep.subr.bf16.mxu0 0
          %753 = vmatpush1.bf16.msra.mxu0 0
          %754 = vmatprep.mubr.bf16.mxu0 0
          %755 = vmatmul.mubr.bf16.gmra.mrb[0].mxu0 %v544
          %v756 = vpop.f32.mrb[0].mxu0
          %v757 = vadd.f32 %v582, %v756
          %v758 = vpop.f32.mrb[0].mxu0
          %v759 = vadd.f32 %v586, %v758
          %v760 = vpop.f32.mrb[0].mxu0
          %v761 = vpop.f32.mrb[0].mxu0
          %762 = vdwg.mxu0
          %763 = vmatprep.subr.bf16.mxu0 0
          %764 = vmatpush1.bf16.msra.mxu0 %v676
          %765 = vmatprep.subr.bf16.mxu0 0
          %766 = vmatpush1.bf16.msra.mxu0 %v679
          %767 = vmatprep.subr.bf16.mxu0 0
          %768 = vmatpush1.bf16.msra.mxu0 %v682
          %769 = vmatprep.subr.bf16.mxu0 0
          %770 = vmatpush1.bf16.msra.mxu0 %v685
          %771 = vmatprep.subr.bf16.mxu0 0
          %772 = vmatpush1.bf16.msra.mxu0 %v688
          %773 = vmatprep.subr.bf16.mxu0 0
          %774 = vmatpush1.bf16.msra.mxu0 %v691
          %775 = vmatprep.subr.bf16.mxu0 0
          %776 = vmatpush1.bf16.msra.mxu0 %v694
          %777 = vmatprep.subr.bf16.mxu0 0
          %778 = vmatpush1.bf16.msra.mxu0 %v697
          %779 = vmatprep.subr.bf16.mxu0 0
          %780 = vmatpush1.bf16.msra.mxu0 0
          %781 = vmatprep.subr.bf16.mxu0 0
          %782 = vmatpush1.bf16.msra.mxu0 0
          %783 = vmatprep.subr.bf16.mxu0 0
          %784 = vmatpush1.bf16.msra.mxu0 0
          %785 = vmatprep.subr.bf16.mxu0 0
          %786 = vmatpush1.bf16.msra.mxu0 0
          %787 = vmatprep.subr.bf16.mxu0 0
          %788 = vmatpush1.bf16.msra.mxu0 0
          %789 = vmatprep.subr.bf16.mxu0 0
          %790 = vmatpush1.bf16.msra.mxu0 0
          %791 = vmatprep.subr.bf16.mxu0 0
          %792 = vmatpush1.bf16.msra.mxu0 0
          %793 = vmatprep.subr.bf16.mxu0 0
          %794 = vmatpush1.bf16.msra.mxu0 0
          %795 = vmatprep.mubr.bf16.mxu0 0
          %796 = vmatmul.mubr.bf16.gmra.mrb[0].mxu0 %v544
          %v797 = vpop.f32.mrb[0].mxu0
          %v798 = vadd.f32 %v590, %v797
          %v799 = vpop.f32.mrb[0].mxu0
          %v800 = vpop.f32.mrb[0].mxu0
          %v801 = vpop.f32.mrb[0].mxu0
          %802 = vdwg.mxu0
          %v803 = vmul.f32 %v757, %v470
          %v804 = vmul.f32 %v759, %v470
          %v805 = vmul.f32 %v798, %v470
          %v806 = vld [vmem:[%s5] sm:$0xff]
          %v807 = vld [vmem:[%s5 + $0x8] sm:$0xff]
          %v808 = vld [vmem:[%s5 + $0x10] sm:$0xff]
          %v809 = vld [vmem:[%s5 + $0x18] sm:$0xff]
          %v810 = vld [vmem:[%s5 + $0x20] sm:$0xff]
          %v811 = vld [vmem:[%s5 + $0x28] sm:$0xff]
          %v812 = vld [vmem:[%s5 + $0x30] sm:$0xff]
          %v813 = vld [vmem:[%s5 + $0x38] sm:$0xff]
          %v814 = vld [vmem:[%s5 + $0x40] sm:$0xff]
          %v815 = vld [vmem:[%s5 + $0x48] sm:$0xff]
          %v816 = vld [vmem:[%s5 + $0x50] sm:$0xff]
          %v817 = vld [vmem:[%s5 + $0x58] sm:$0xff]
          %v818 = vld [vmem:[%s5 + $0x60] sm:$0xff]
          %v819 = vld [vmem:[%s5 + $0x68] sm:$0xff]
          %v820 = vld [vmem:[%s5 + $0x70] sm:$0xff]
          %v821 = vld [vmem:[%s5 + $0x78] sm:$0xff]
          %v822 = vld [vmem:[%s5 + $0x80] sm:$0xff]
          %v823 = vld [vmem:[%s5 + $0x88] sm:$0xff]
          %v824 = vld [vmem:[%s5 + $0x90] sm:$0xff]
          %v825 = vld [vmem:[%s5 + $0x98] sm:$0xff]
          %v826 = vld [vmem:[%s5 + $0xa0] sm:$0xff]
          %v827 = vld [vmem:[%s5 + $0xa8] sm:$0xff]
          %v828 = vld [vmem:[%s5 + $0xb0] sm:$0xff]
          %v829 = vld [vmem:[%s5 + $0xb8] sm:$0xff]
          %v830 = vld [vmem:[%s5 + $0xc0] sm:$0xff]
          %v831 = vld [vmem:[%s5 + $0xc8] sm:$0xff]
          %v832 = vld [vmem:[%s5 + $0xd0] sm:$0xff]
          %v833 = vld [vmem:[%s5 + $0xd8] sm:$0xff]
          %v834 = vld [vmem:[%s5 + $0xe0] sm:$0xff]
          %v835 = vld [vmem:[%s5 + $0xe8] sm:$0xff]
          %v836 = vld [vmem:[%s5 + $0xf0] sm:$0xff]
          %v837 = vld [vmem:[%s5 + $0xf8] sm:$0xff]
          %v838 = vld [vmem:[%s5 + $0x100] sm:$0xff]
          %v839 = vld [vmem:[%s5 + $0x108] sm:$0xff]
          %v840 = vld [vmem:[%s5 + $0x110] sm:$0xff]
          %v841 = vld [vmem:[%s5 + $0x118] sm:$0xff]
          %v842 = vld [vmem:[%s5 + $0x120] sm:$0xff]
          %v843 = vld [vmem:[%s5 + $0x128] sm:$0xff]
          %v844 = vld [vmem:[%s5 + $0x130] sm:$0xff]
          %v845 = vld [vmem:[%s5 + $0x138] sm:$0xff]
          %v846 = vld [vmem:[%s5 + $0x140] sm:$0xff]
          %v847 = vld [vmem:[%s5 + $0x148] sm:$0xff]
          %v848 = vld [vmem:[%s5 + $0x150] sm:$0xff]
          %v849 = vld [vmem:[%s5 + $0x158] sm:$0xff]
          %v850 = vld [vmem:[%s5 + $0x160] sm:$0xff]
          %v851 = vld [vmem:[%s5 + $0x168] sm:$0xff]
          %v852 = vld [vmem:[%s5 + $0x170] sm:$0xff]
          %v853 = vld [vmem:[%s5 + $0x178] sm:$0xff]
          %854 = vmatprep.subr.mxu0 0.0
          %855 = vmatpush1.msra.mxu0 %v806
          %856 = vmatprep.subr.mxu0 0.0
          %857 = vmatpush1.msra.mxu0 %v807
          %858 = vmatprep.subr.mxu0 0.0
          %859 = vmatpush1.msra.mxu0 %v808
          %860 = vmatprep.subr.mxu0 0.0
          %861 = vmatpush1.msra.mxu0 %v809
          %862 = vmatprep.subr.mxu0 0.0
          %863 = vmatpush1.msra.mxu0 %v810
          %864 = vmatprep.subr.mxu0 0.0
          %865 = vmatpush1.msra.mxu0 %v811
          %866 = vmatprep.subr.mxu0 0.0
          %867 = vmatpush1.msra.mxu0 %v812
          %868 = vmatprep.subr.mxu0 0.0
          %869 = vmatpush1.msra.mxu0 %v813
          %870 = vmatprep.subr.mxu0 0.0
          %871 = vmatpush1.msra.mxu0 %v814
          %872 = vmatprep.subr.mxu0 0.0
          %873 = vmatpush1.msra.mxu0 %v815
          %874 = vmatprep.subr.mxu0 0.0
          %875 = vmatpush1.msra.mxu0 %v816
          %876 = vmatprep.subr.mxu0 0.0
          %877 = vmatpush1.msra.mxu0 %v817
          %878 = vmatprep.subr.mxu0 0.0
          %879 = vmatpush1.msra.mxu0 %v818
          %880 = vmatprep.subr.mxu0 0.0
          %881 = vmatpush1.msra.mxu0 %v819
          %882 = vmatprep.subr.mxu0 0.0
          %883 = vmatpush1.msra.mxu0 %v820
          %884 = vmatprep.subr.mxu0 0.0
          %885 = vmatpush1.msra.mxu0 %v821
          %886 = vmatprep.subr.mxu0 0.0
          %887 = vmatpush1.msra.mxu0 %v822
          %888 = vmatprep.subr.mxu0 0.0
          %889 = vmatpush1.msra.mxu0 %v823
          %890 = vmatprep.subr.mxu0 0.0
          %891 = vmatpush1.msra.mxu0 %v824
          %892 = vmatprep.subr.mxu0 0.0
          %893 = vmatpush1.msra.mxu0 %v825
          %894 = vmatprep.subr.mxu0 0.0
          %895 = vmatpush1.msra.mxu0 %v826
          %896 = vmatprep.subr.mxu0 0.0
          %897 = vmatpush1.msra.mxu0 %v827
          %898 = vmatprep.subr.mxu0 0.0
          %899 = vmatpush1.msra.mxu0 %v828
          %900 = vmatprep.subr.mxu0 0.0
          %901 = vmatpush1.msra.mxu0 %v829
          %902 = vmatprep.subr.mxu0 0.0
          %903 = vmatpush1.msra.mxu0 %v830
          %904 = vmatprep.subr.mxu0 0.0
          %905 = vmatpush1.msra.mxu0 %v831
          %906 = vmatprep.subr.mxu0 0.0
          %907 = vmatpush1.msra.mxu0 %v832
          %908 = vmatprep.subr.mxu0 0.0
          %909 = vmatpush1.msra.mxu0 %v833
          %910 = vmatprep.subr.mxu0 0.0
          %911 = vmatpush1.msra.mxu0 %v834
          %912 = vmatprep.subr.mxu0 0.0
          %913 = vmatpush1.msra.mxu0 %v835
          %914 = vmatprep.subr.mxu0 0.0
          %915 = vmatpush1.msra.mxu0 %v836
          %916 = vmatprep.subr.mxu0 0.0
          %917 = vmatpush1.msra.mxu0 %v837
          %918 = vmatprep.mubr.f32.mxu0 %v804
          %919 = vmatmul.mubr.f32.gmra.mrb[0].mxu0 %v803
          %v920 = vpop.f32.mrb[0].mxu0
          %v921 = vadd.f32 0.0, %v920
          %v922 = vpop.f32.mrb[0].mxu0
          %923 = vdwg.mxu0
          %924 = vmatprep.subr.mxu0 0.0
          %925 = vmatpush1.msra.mxu0 %v838
          %926 = vmatprep.subr.mxu0 0.0
          %927 = vmatpush1.msra.mxu0 %v839
          %928 = vmatprep.subr.mxu0 0.0
          %929 = vmatpush1.msra.mxu0 %v840
          %930 = vmatprep.subr.mxu0 0.0
          %931 = vmatpush1.msra.mxu0 %v841
          %932 = vmatprep.subr.mxu0 0.0
          %933 = vmatpush1.msra.mxu0 %v842
          %934 = vmatprep.subr.mxu0 0.0
          %935 = vmatpush1.msra.mxu0 %v843
          %936 = vmatprep.subr.mxu0 0.0
          %937 = vmatpush1.msra.mxu0 %v844
          %938 = vmatprep.subr.mxu0 0.0
          %939 = vmatpush1.msra.mxu0 %v845
          %940 = vmatprep.subr.mxu0 0.0
          %941 = vmatpush1.msra.mxu0 %v846
          %942 = vmatprep.subr.mxu0 0.0
          %943 = vmatpush1.msra.mxu0 %v847
          %944 = vmatprep.subr.mxu0 0.0
          %945 = vmatpush1.msra.mxu0 %v848
          %946 = vmatprep.subr.mxu0 0.0
          %947 = vmatpush1.msra.mxu0 %v849
          %948 = vmatprep.subr.mxu0 0.0
          %949 = vmatpush1.msra.mxu0 %v850
          %950 = vmatprep.subr.mxu0 0.0
          %951 = vmatpush1.msra.mxu0 %v851
          %952 = vmatprep.subr.mxu0 0.0
          %953 = vmatpush1.msra.mxu0 %v852
          %954 = vmatprep.subr.mxu0 0.0
          %955 = vmatpush1.msra.mxu0 %v853
          %956 = vmatprep.subr.mxu0 0.0
          %957 = vmatpush1.msra.mxu0 0.0
          %958 = vmatprep.subr.mxu0 0.0
          %959 = vmatpush1.msra.mxu0 0.0
          %960 = vmatprep.subr.mxu0 0.0
          %961 = vmatpush1.msra.mxu0 0.0
          %962 = vmatprep.subr.mxu0 0.0
          %963 = vmatpush1.msra.mxu0 0.0
          %964 = vmatprep.subr.mxu0 0.0
          %965 = vmatpush1.msra.mxu0 0.0
          %966 = vmatprep.subr.mxu0 0.0
          %967 = vmatpush1.msra.mxu0 0.0
          %968 = vmatprep.subr.mxu0 0.0
          %969 = vmatpush1.msra.mxu0 0.0
          %970 = vmatprep.subr.mxu0 0.0
          %971 = vmatpush1.msra.mxu0 0.0
          %972 = vmatprep.subr.mxu0 0.0
          %973 = vmatpush1.msra.mxu0 0.0
          %974 = vmatprep.subr.mxu0 0.0
          %975 = vmatpush1.msra.mxu0 0.0
          %976 = vmatprep.subr.mxu0 0.0
          %977 = vmatpush1.msra.mxu0 0.0
          %978 = vmatprep.subr.mxu0 0.0
          %979 = vmatpush1.msra.mxu0 0.0
          %980 = vmatprep.subr.mxu0 0.0
          %981 = vmatpush1.msra.mxu0 0.0
          %982 = vmatprep.subr.mxu0 0.0
          %983 = vmatpush1.msra.mxu0 0.0
          %984 = vmatprep.subr.mxu0 0.0
          %985 = vmatpush1.msra.mxu0 0.0
          %986 = vmatprep.subr.mxu0 0.0
          %987 = vmatpush1.msra.mxu0 0.0
          %988 = vmatprep.mubr.f32.mxu0 0.0
          %989 = vmatmul.mubr.f32.gmra.mrb[0].mxu0 %v805
          %v990 = vpop.f32.mrb[0].mxu0
          %v991 = vadd.f32 %v921, %v990
          %v992 = vpop.f32.mrb[0].mxu0
          %993 = vdwg.mxu0
          %v994 = vmul.f32 %v803, %v803
          %v995 = vmul.f32 %v804, %v804
          %v996 = vmul.f32 %v805, %v805
          %997 = vmatprep.subr.mxu0 0.0
          %998 = vmatpush1.msra.mxu0 %v806
          %999 = vmatprep.subr.mxu0 0.0
          %1000 = vmatpush1.msra.mxu0 %v807
          %1001 = vmatprep.subr.mxu0 0.0
          %1002 = vmatpush1.msra.mxu0 %v808
          %1003 = vmatprep.subr.mxu0 0.0
          %1004 = vmatpush1.msra.mxu0 %v809
          %1005 = vmatprep.subr.mxu0 0.0
          %1006 = vmatpush1.msra.mxu0 %v810
          %1007 = vmatprep.subr.mxu0 0.0
          %1008 = vmatpush1.msra.mxu0 %v811
          %1009 = vmatprep.subr.mxu0 0.0
          %1010 = vmatpush1.msra.mxu0 %v812
          %1011 = vmatprep.subr.mxu0 0.0
          %1012 = vmatpush1.msra.mxu0 %v813
          %1013 = vmatprep.subr.mxu0 0.0
          %1014 = vmatpush1.msra.mxu0 %v814
          %1015 = vmatprep.subr.mxu0 0.0
          %1016 = vmatpush1.msra.mxu0 %v815
          %1017 = vmatprep.subr.mxu0 0.0
          %1018 = vmatpush1.msra.mxu0 %v816
          %1019 = vmatprep.subr.mxu0 0.0
          %1020 = vmatpush1.msra.mxu0 %v817
          %1021 = vmatprep.subr.mxu0 0.0
          %1022 = vmatpush1.msra.mxu0 %v818
          %1023 = vmatprep.subr.mxu0 0.0
          %1024 = vmatpush1.msra.mxu0 %v819
          %1025 = vmatprep.subr.mxu0 0.0
          %1026 = vmatpush1.msra.mxu0 %v820
          %1027 = vmatprep.subr.mxu0 0.0
          %1028 = vmatpush1.msra.mxu0 %v821
          %1029 = vmatprep.subr.mxu0 0.0
          %1030 = vmatpush1.msra.mxu0 %v822
          %1031 = vmatprep.subr.mxu0 0.0
          %1032 = vmatpush1.msra.mxu0 %v823
          %1033 = vmatprep.subr.mxu0 0.0
          %1034 = vmatpush1.msra.mxu0 %v824
          %1035 = vmatprep.subr.mxu0 0.0
          %1036 = vmatpush1.msra.mxu0 %v825
          %1037 = vmatprep.subr.mxu0 0.0
          %1038 = vmatpush1.msra.mxu0 %v826
          %1039 = vmatprep.subr.mxu0 0.0
          %1040 = vmatpush1.msra.mxu0 %v827
          %1041 = vmatprep.subr.mxu0 0.0
          %1042 = vmatpush1.msra.mxu0 %v828
          %1043 = vmatprep.subr.mxu0 0.0
          %1044 = vmatpush1.msra.mxu0 %v829
          %1045 = vmatprep.subr.mxu0 0.0
          %1046 = vmatpush1.msra.mxu0 %v830
          %1047 = vmatprep.subr.mxu0 0.0
          %1048 = vmatpush1.msra.mxu0 %v831
          %1049 = vmatprep.subr.mxu0 0.0
          %1050 = vmatpush1.msra.mxu0 %v832
          %1051 = vmatprep.subr.mxu0 0.0
          %1052 = vmatpush1.msra.mxu0 %v833
          %1053 = vmatprep.subr.mxu0 0.0
          %1054 = vmatpush1.msra.mxu0 %v834
          %1055 = vmatprep.subr.mxu0 0.0
          %1056 = vmatpush1.msra.mxu0 %v835
          %1057 = vmatprep.subr.mxu0 0.0
          %1058 = vmatpush1.msra.mxu0 %v836
          %1059 = vmatprep.subr.mxu0 0.0
          %1060 = vmatpush1.msra.mxu0 %v837
          %1061 = vmatprep.mubr.f32.mxu0 %v995
          %1062 = vmatmul.mubr.f32.gmra.mrb[0].mxu0 %v994
          %v1063 = vpop.f32.mrb[0].mxu0
          %v1064 = vadd.f32 0.0, %v1063
          %v1065 = vpop.f32.mrb[0].mxu0
          %1066 = vdwg.mxu0
          %1067 = vmatprep.subr.mxu0 0.0
          %1068 = vmatpush1.msra.mxu0 %v838
          %1069 = vmatprep.subr.mxu0 0.0
          %1070 = vmatpush1.msra.mxu0 %v839
          %1071 = vmatprep.subr.mxu0 0.0
          %1072 = vmatpush1.msra.mxu0 %v840
          %1073 = vmatprep.subr.mxu0 0.0
          %1074 = vmatpush1.msra.mxu0 %v841
          %1075 = vmatprep.subr.mxu0 0.0
          %1076 = vmatpush1.msra.mxu0 %v842
          %1077 = vmatprep.subr.mxu0 0.0
          %1078 = vmatpush1.msra.mxu0 %v843
          %1079 = vmatprep.subr.mxu0 0.0
          %1080 = vmatpush1.msra.mxu0 %v844
          %1081 = vmatprep.subr.mxu0 0.0
          %1082 = vmatpush1.msra.mxu0 %v845
          %1083 = vmatprep.subr.mxu0 0.0
          %1084 = vmatpush1.msra.mxu0 %v846
          %1085 = vmatprep.subr.mxu0 0.0
          %1086 = vmatpush1.msra.mxu0 %v847
          %1087 = vmatprep.subr.mxu0 0.0
          %1088 = vmatpush1.msra.mxu0 %v848
          %1089 = vmatprep.subr.mxu0 0.0
          %1090 = vmatpush1.msra.mxu0 %v849
          %1091 = vmatprep.subr.mxu0 0.0
          %1092 = vmatpush1.msra.mxu0 %v850
          %1093 = vmatprep.subr.mxu0 0.0
          %1094 = vmatpush1.msra.mxu0 %v851
          %1095 = vmatprep.subr.mxu0 0.0
          %1096 = vmatpush1.msra.mxu0 %v852
          %1097 = vmatprep.subr.mxu0 0.0
          %1098 = vmatpush1.msra.mxu0 %v853
          %1099 = vmatprep.subr.mxu0 0.0
          %1100 = vmatpush1.msra.mxu0 0.0
          %1101 = vmatprep.subr.mxu0 0.0
          %1102 = vmatpush1.msra.mxu0 0.0
          %1103 = vmatprep.subr.mxu0 0.0
          %1104 = vmatpush1.msra.mxu0 0.0
          %1105 = vmatprep.subr.mxu0 0.0
          %1106 = vmatpush1.msra.mxu0 0.0
          %1107 = vmatprep.subr.mxu0 0.0
          %1108 = vmatpush1.msra.mxu0 0.0
          %1109 = vmatprep.subr.mxu0 0.0
          %1110 = vmatpush1.msra.mxu0 0.0
          %1111 = vmatprep.subr.mxu0 0.0
          %1112 = vmatpush1.msra.mxu0 0.0
          %1113 = vmatprep.subr.mxu0 0.0
          %1114 = vmatpush1.msra.mxu0 0.0
          %1115 = vmatprep.subr.mxu0 0.0
          %1116 = vmatpush1.msra.mxu0 0.0
          %1117 = vmatprep.subr.mxu0 0.0
          %1118 = vmatpush1.msra.mxu0 0.0
          %1119 = vmatprep.subr.mxu0 0.0
          %1120 = vmatpush1.msra.mxu0 0.0
          %1121 = vmatprep.subr.mxu0 0.0
          %1122 = vmatpush1.msra.mxu0 0.0
          %1123 = vmatprep.subr.mxu0 0.0
          %1124 = vmatpush1.msra.mxu0 0.0
          %1125 = vmatprep.subr.mxu0 0.0
          %1126 = vmatpush1.msra.mxu0 0.0
          %1127 = vmatprep.subr.mxu0 0.0
          %1128 = vmatpush1.msra.mxu0 0.0
          %1129 = vmatprep.subr.mxu0 0.0
          %1130 = vmatpush1.msra.mxu0 0.0
          %1131 = vmatprep.mubr.f32.mxu0 0.0
          %1132 = vmatmul.mubr.f32.gmra.mrb[0].mxu0 %v996
          %v1133 = vpop.f32.mrb[0].mxu0
          %v1134 = vadd.f32 %v1064, %v1133
          %v1135 = vpop.f32.mrb[0].mxu0
          %1136 = vdwg.mxu0
          %v1137 = vld [vmem:[#allocation2] sm:$0x1]
          %vm1138 = vcmask 130048
          %v1139 = vsel %vm1138, %v991, 0.0
          %v1140 = vrot.slane %v1139, 4
          %v1141 = vadd.f32 %v1139, %v1140
          %v1142 = vrot.slane %v1141, 2
          %v1143 = vadd.f32 %v1141, %v1142
          %v1144 = vrot.slane %v1143, 1
          %v1145 = vadd.f32 %v1143, %v1144
          %v1146 = vadd.f32 %v1137, %v1145
          %vm1147 = vcmask 122880
          %1148 = vst.msk [vmem:[#allocation2] sm:$0x1] %vm1147, %v1146
          %v1149 = vld [vmem:[#allocation3] sm:$0x1]
          %v1150 = vsel %vm1138, %v1134, 0.0
          %v1151 = vrot.slane %v1150, 4
          %v1152 = vadd.f32 %v1150, %v1151
          %v1153 = vrot.slane %v1152, 2
          %v1154 = vadd.f32 %v1152, %v1153
          %v1155 = vrot.slane %v1154, 1
          %v1156 = vadd.f32 %v1154, %v1155
          %v1157 = vadd.f32 %v1149, %v1156
          %1158 = vst.msk [vmem:[#allocation3] sm:$0x1] %vm1147, %v1157
        $region80: #{tpu_custom_call.1} parent=71 // pred_fallthru
          _
        %p1159 = scmp.eq.s32.totalorder %s32, 1
        %p1160 = pnand %p1159, %p472
        %p1161 = pneg %p1160
        // Predicated region
        $region81: #{tpu_custom_call.1} parent=71 // pred_check
          _
        $region82: #{tpu_custom_call.1} parent=71 // pred_check_branch
          %1163 = sbr.rel (%p1160) target = $region84
        $region83: #{tpu_custom_call.1} parent=71 // pred_region
          %v1164 = vld [vmem:[#allocation2] sm:$0x1]
          %v1165 = vrcp.pop 38.0
          %v1166 = vmul.f32 %v1164, %v1165
          %v1167 = vld [vmem:[#allocation3] sm:$0x1]
          %v1168 = vmul.f32 %v1167, %v1165
          %v1169 = vmul.f32 %v1166, %v1166
          %v1170 = vsub.f32 %v1168, %v1169
          %v1171 = vadd.f32 %v1170, 1e-05
          %v1172 = vrsqrt.pop %v1171
          %v1173 = vld [vmem:[%s6] sm:$0x1]
          %v1174 = vmul.f32 %v1172, %v1173
          %v1175 = vld [vmem:[%s7] sm:$0x1]
          %v1176 = vmul.f32 %v1166, %v1174
          %v1177 = vsub.f32 %v1175, %v1176
          %v1179 = vlaneseq
          %v1180 = vshrl.u32 %v1179, 7
          %v1181 = vsub.s32 0, %v1180
          %v1182 = vrot.slane %v1177, %v1181
          %vm1184 = vcmask 1040384
          %v1185 = vsel %vm1184, %v1174, %v1182
          %v1186 = vld [vmem:[%s5] sm:$0xff]
          %v1187 = vld [vmem:[%s5 + $0x8] sm:$0xff]
          %v1188 = vld [vmem:[%s5 + $0x10] sm:$0xff]
          %v1189 = vld [vmem:[%s5 + $0x18] sm:$0xff]
          %v1190 = vld [vmem:[%s5 + $0x20] sm:$0xff]
          %v1191 = vld [vmem:[%s5 + $0x28] sm:$0xff]
          %v1192 = vld [vmem:[%s5 + $0x30] sm:$0xff]
          %v1193 = vld [vmem:[%s5 + $0x38] sm:$0xff]
          %v1194 = vld [vmem:[%s5 + $0x40] sm:$0xff]
          %v1195 = vld [vmem:[%s5 + $0x48] sm:$0xff]
          %v1196 = vld [vmem:[%s5 + $0x50] sm:$0xff]
          %v1197 = vld [vmem:[%s5 + $0x58] sm:$0xff]
          %v1198 = vld [vmem:[%s5 + $0x60] sm:$0xff]
          %v1199 = vld [vmem:[%s5 + $0x68] sm:$0xff]
          %v1200 = vld [vmem:[%s5 + $0x70] sm:$0xff]
          %v1201 = vld [vmem:[%s5 + $0x78] sm:$0xff]
          %v1202 = vld [vmem:[%s5 + $0x80] sm:$0xff]
          %v1203 = vld [vmem:[%s5 + $0x88] sm:$0xff]
          %v1204 = vld [vmem:[%s5 + $0x90] sm:$0xff]
          %v1205 = vld [vmem:[%s5 + $0x98] sm:$0xff]
          %v1206 = vld [vmem:[%s5 + $0xa0] sm:$0xff]
          %v1207 = vld [vmem:[%s5 + $0xa8] sm:$0xff]
          %v1208 = vld [vmem:[%s5 + $0xb0] sm:$0xff]
          %v1209 = vld [vmem:[%s5 + $0xb8] sm:$0xff]
          %v1210 = vld [vmem:[%s5 + $0xc0] sm:$0xff]
          %v1211 = vld [vmem:[%s5 + $0xc8] sm:$0xff]
          %v1212 = vld [vmem:[%s5 + $0xd0] sm:$0xff]
          %v1213 = vld [vmem:[%s5 + $0xd8] sm:$0xff]
          %v1214 = vld [vmem:[%s5 + $0xe0] sm:$0xff]
          %v1215 = vld [vmem:[%s5 + $0xe8] sm:$0xff]
          %v1216 = vld [vmem:[%s5 + $0xf0] sm:$0xff]
          %v1217 = vld [vmem:[%s5 + $0xf8] sm:$0xff]
          %v1218 = vld [vmem:[%s5 + $0x100] sm:$0xff]
          %v1219 = vld [vmem:[%s5 + $0x108] sm:$0xff]
          %v1220 = vld [vmem:[%s5 + $0x110] sm:$0xff]
          %v1221 = vld [vmem:[%s5 + $0x118] sm:$0xff]
          %v1222 = vld [vmem:[%s5 + $0x120] sm:$0xff]
          %v1223 = vld [vmem:[%s5 + $0x128] sm:$0xff]
          %v1224 = vld [vmem:[%s5 + $0x130] sm:$0xff]
          %v1225 = vld [vmem:[%s5 + $0x138] sm:$0xff]
          %v1226 = vld [vmem:[%s5 + $0x140] sm:$0xff]
          %v1227 = vld [vmem:[%s5 + $0x148] sm:$0xff]
          %v1228 = vld [vmem:[%s5 + $0x150] sm:$0xff]
          %v1229 = vld [vmem:[%s5 + $0x158] sm:$0xff]
          %v1230 = vld [vmem:[%s5 + $0x160] sm:$0xff]
          %v1231 = vld [vmem:[%s5 + $0x168] sm:$0xff]
          %v1232 = vld [vmem:[%s5 + $0x170] sm:$0xff]
          %v1233 = vld [vmem:[%s5 + $0x178] sm:$0xff]
          %vm1234 = vcmask 130048
          %v1236 = vsel %vm1234, %v1185, 0
          %v1239 = vsel %vm1234, %v1186, 0
          %v1242 = vsel %vm1234, %v1187, 0
          %v1245 = vsel %vm1234, %v1188, 0
          %v1248 = vsel %vm1234, %v1189, 0
          %v1251 = vsel %vm1234, %v1190, 0
          %v1254 = vsel %vm1234, %v1191, 0
          %v1257 = vsel %vm1234, %v1192, 0
          %v1260 = vsel %vm1234, %v1193, 0
          %v1263 = vsel %vm1234, %v1194, 0
          %v1266 = vsel %vm1234, %v1195, 0
          %v1269 = vsel %vm1234, %v1196, 0
          %v1272 = vsel %vm1234, %v1197, 0
          %v1275 = vsel %vm1234, %v1198, 0
          %v1278 = vsel %vm1234, %v1199, 0
          %v1281 = vsel %vm1234, %v1200, 0
          %v1284 = vsel %vm1234, %v1201, 0
          %v1287 = vsel %vm1234, %v1202, 0
          %v1290 = vsel %vm1234, %v1203, 0
          %v1293 = vsel %vm1234, %v1204, 0
          %v1296 = vsel %vm1234, %v1205, 0
          %v1299 = vsel %vm1234, %v1206, 0
          %v1302 = vsel %vm1234, %v1207, 0
          %v1305 = vsel %vm1234, %v1208, 0
          %v1308 = vsel %vm1234, %v1209, 0
          %v1311 = vsel %vm1234, %v1210, 0
          %v1314 = vsel %vm1234, %v1211, 0
          %v1317 = vsel %vm1234, %v1212, 0
          %v1320 = vsel %vm1234, %v1213, 0
          %v1323 = vsel %vm1234, %v1214, 0
          %v1326 = vsel %vm1234, %v1215, 0
          %v1329 = vsel %vm1234, %v1216, 0
          %v1332 = vsel %vm1234, %v1217, 0
          %v1335 = vsel %vm1234, %v1218, 0
          %v1338 = vsel %vm1234, %v1219, 0
          %v1341 = vsel %vm1234, %v1220, 0
          %v1344 = vsel %vm1234, %v1221, 0
          %v1347 = vsel %vm1234, %v1222, 0
          %v1350 = vsel %vm1234, %v1223, 0
          %v1353 = vsel %vm1234, %v1224, 0
          %v1356 = vsel %vm1234, %v1225, 0
          %v1359 = vsel %vm1234, %v1226, 0
          %v1362 = vsel %vm1234, %v1227, 0
          %v1365 = vsel %vm1234, %v1228, 0
          %v1368 = vsel %vm1234, %v1229, 0
          %v1371 = vsel %vm1234, %v1230, 0
          %v1374 = vsel %vm1234, %v1231, 0
          %v1377 = vsel %vm1234, %v1232, 0
          %v1380 = vsel %vm1234, %v1233, 0
          %1382 = vmatprep.subr.mxu0 0.0
          %1383 = vmatpush1.xpose.msra.mxu0 %v1239
          %1384 = vmatprep.subr.mxu0 0.0
          %1385 = vmatpush1.xpose.msra.mxu0 %v1242
          %1386 = vmatprep.subr.mxu0 0.0
          %1387 = vmatpush1.xpose.msra.mxu0 %v1245
          %1388 = vmatprep.subr.mxu0 0.0
          %1389 = vmatpush1.xpose.msra.mxu0 %v1248
          %1390 = vmatprep.subr.mxu0 0.0
          %1391 = vmatpush1.xpose.msra.mxu0 %v1251
          %1392 = vmatprep.subr.mxu0 0.0
          %1393 = vmatpush1.xpose.msra.mxu0 %v1254
          %1394 = vmatprep.subr.mxu0 0.0
          %1395 = vmatpush1.xpose.msra.mxu0 %v1257
          %1396 = vmatprep.subr.mxu0 0.0
          %1397 = vmatpush1.xpose.msra.mxu0 %v1260
          %1398 = vmatprep.subr.mxu0 0.0
          %1399 = vmatpush1.xpose.msra.mxu0 %v1263
          %1400 = vmatprep.subr.mxu0 0.0
          %1401 = vmatpush1.xpose.msra.mxu0 %v1266
          %1402 = vmatprep.subr.mxu0 0.0
          %1403 = vmatpush1.xpose.msra.mxu0 %v1269
          %1404 = vmatprep.subr.mxu0 0.0
          %1405 = vmatpush1.xpose.msra.mxu0 %v1272
          %1406 = vmatprep.subr.mxu0 0.0
          %1407 = vmatpush1.xpose.msra.mxu0 %v1275
          %1408 = vmatprep.subr.mxu0 0.0
          %1409 = vmatpush1.xpose.msra.mxu0 %v1278
          %1410 = vmatprep.subr.mxu0 0.0
          %1411 = vmatpush1.xpose.msra.mxu0 %v1281
          %1412 = vmatprep.subr.mxu0 0.0
          %1413 = vmatpush1.xpose.msra.mxu0 %v1284
          %1414 = vmatprep.subr.mxu0 0.0
          %1415 = vmatpush1.xpose.msra.mxu0 %v1287
          %1416 = vmatprep.subr.mxu0 0.0
          %1417 = vmatpush1.xpose.msra.mxu0 %v1290
          %1418 = vmatprep.subr.mxu0 0.0
          %1419 = vmatpush1.xpose.msra.mxu0 %v1293
          %1420 = vmatprep.subr.mxu0 0.0
          %1421 = vmatpush1.xpose.msra.mxu0 %v1296
          %1422 = vmatprep.subr.mxu0 0.0
          %1423 = vmatpush1.xpose.msra.mxu0 %v1299
          %1424 = vmatprep.subr.mxu0 0.0
          %1425 = vmatpush1.xpose.msra.mxu0 %v1302
          %1426 = vmatprep.subr.mxu0 0.0
          %1427 = vmatpush1.xpose.msra.mxu0 %v1305
          %1428 = vmatprep.subr.mxu0 0.0
          %1429 = vmatpush1.xpose.msra.mxu0 %v1308
          %1430 = vmatprep.subr.mxu0 0.0
          %1431 = vmatpush1.xpose.msra.mxu0 %v1311
          %1432 = vmatprep.subr.mxu0 0.0
          %1433 = vmatpush1.xpose.msra.mxu0 %v1314
          %1434 = vmatprep.subr.mxu0 0.0
          %1435 = vmatpush1.xpose.msra.mxu0 %v1317
          %1436 = vmatprep.subr.mxu0 0.0
          %1437 = vmatpush1.xpose.msra.mxu0 %v1320
          %1438 = vmatprep.subr.mxu0 0.0
          %1439 = vmatpush1.xpose.msra.mxu0 %v1323
          %1440 = vmatprep.subr.mxu0 0.0
          %1441 = vmatpush1.xpose.msra.mxu0 %v1326
          %1442 = vmatprep.subr.mxu0 0.0
          %1443 = vmatpush1.xpose.msra.mxu0 %v1329
          %1444 = vmatprep.subr.mxu0 0.0
          %1445 = vmatpush1.xpose.msra.mxu0 %v1332
          %1446 = vmatprep.mubr.f32.mxu0 0.0
          %1447 = vmatmul.mubr.f32.gmra.mrb[0].mxu0 %v1236
          %v1448 = vpop.f32.mrb[0].mxu0
          %v1449 = vadd.f32 0.0, %v1448
          %v1450 = vpop.f32.mrb[0].mxu0
          %v1451 = vadd.f32 0.0, %v1450
          %1452 = vdwg.mxu0
          %1453 = vmatprep.subr.mxu0 0.0
          %1454 = vmatpush1.xpose.msra.mxu0 %v1335
          %1455 = vmatprep.subr.mxu0 0.0
          %1456 = vmatpush1.xpose.msra.mxu0 %v1338
          %1457 = vmatprep.subr.mxu0 0.0
          %1458 = vmatpush1.xpose.msra.mxu0 %v1341
          %1459 = vmatprep.subr.mxu0 0.0
          %1460 = vmatpush1.xpose.msra.mxu0 %v1344
          %1461 = vmatprep.subr.mxu0 0.0
          %1462 = vmatpush1.xpose.msra.mxu0 %v1347
          %1463 = vmatprep.subr.mxu0 0.0
          %1464 = vmatpush1.xpose.msra.mxu0 %v1350
          %1465 = vmatprep.subr.mxu0 0.0
          %1466 = vmatpush1.xpose.msra.mxu0 %v1353
          %1467 = vmatprep.subr.mxu0 0.0
          %1468 = vmatpush1.xpose.msra.mxu0 %v1356
          %1469 = vmatprep.subr.mxu0 0.0
          %1470 = vmatpush1.xpose.msra.mxu0 %v1359
          %1471 = vmatprep.subr.mxu0 0.0
          %1472 = vmatpush1.xpose.msra.mxu0 %v1362
          %1473 = vmatprep.subr.mxu0 0.0
          %1474 = vmatpush1.xpose.msra.mxu0 %v1365
          %1475 = vmatprep.subr.mxu0 0.0
          %1476 = vmatpush1.xpose.msra.mxu0 %v1368
          %1477 = vmatprep.subr.mxu0 0.0
          %1478 = vmatpush1.xpose.msra.mxu0 %v1371
          %1479 = vmatprep.subr.mxu0 0.0
          %1480 = vmatpush1.xpose.msra.mxu0 %v1374
          %1481 = vmatprep.subr.mxu0 0.0
          %1482 = vmatpush1.xpose.msra.mxu0 %v1377
          %1483 = vmatprep.subr.mxu0 0.0
          %1484 = vmatpush1.xpose.msra.mxu0 %v1380
          %1485 = vmatprep.subr.mxu0 0.0
          %1486 = vmatpush1.xpose.msra.mxu0 0.0
          %1487 = vmatprep.subr.mxu0 0.0
          %1488 = vmatpush1.xpose.msra.mxu0 0.0
          %1489 = vmatprep.subr.mxu0 0.0
          %1490 = vmatpush1.xpose.msra.mxu0 0.0
          %1491 = vmatprep.subr.mxu0 0.0
          %1492 = vmatpush1.xpose.msra.mxu0 0.0
          %1493 = vmatprep.subr.mxu0 0.0
          %1494 = vmatpush1.xpose.msra.mxu0 0.0
          %1495 = vmatprep.subr.mxu0 0.0
          %1496 = vmatpush1.xpose.msra.mxu0 0.0
          %1497 = vmatprep.subr.mxu0 0.0
          %1498 = vmatpush1.xpose.msra.mxu0 0.0
          %1499 = vmatprep.subr.mxu0 0.0
          %1500 = vmatpush1.xpose.msra.mxu0 0.0
          %1501 = vmatprep.subr.mxu0 0.0
          %1502 = vmatpush1.xpose.msra.mxu0 0.0
          %1503 = vmatprep.subr.mxu0 0.0
          %1504 = vmatpush1.xpose.msra.mxu0 0.0
          %1505 = vmatprep.subr.mxu0 0.0
          %1506 = vmatpush1.xpose.msra.mxu0 0.0
          %1507 = vmatprep.subr.mxu0 0.0
          %1508 = vmatpush1.xpose.msra.mxu0 0.0
          %1509 = vmatprep.subr.mxu0 0.0
          %1510 = vmatpush1.xpose.msra.mxu0 0.0
          %1511 = vmatprep.subr.mxu0 0.0
          %1512 = vmatpush1.xpose.msra.mxu0 0.0
          %1513 = vmatprep.subr.mxu0 0.0
          %1514 = vmatpush1.xpose.msra.mxu0 0.0
          %1515 = vmatprep.subr.mxu0 0.0
          %1516 = vmatpush1.xpose.msra.mxu0 0.0
          %1517 = vmatprep.mubr.f32.mxu0 0.0
          %1518 = vmatmul.mubr.f32.gmra.mrb[0].mxu0 %v1236
          %v1519 = vpop.f32.mrb[0].mxu0
          %v1520 = vadd.f32 0.0, %v1519
          %v1521 = vpop.f32.mrb[0].mxu0
          %1522 = vdwg.mxu0
          %v1526 = vcombine.low %v1449, %v1451
          %v1528 = vunpack.c.l.s4 1983009808
          %v1529 = vunpack.c.0.s8 %v1528
          %v1530 = vlaneseq
          %v1531 = vshrl.u32 %v1530, 7
          %v1532 = vsub.s32 %v1529, %v1531
          %v1533 = vrot.slane %v1526, %v1532
          %v1535 = vunpack.c.l.s4 1983009808
          %v1536 = vunpack.c.0.s8 %v1535
          %v1537 = vlaneseq
          %v1538 = vshrl.u32 %v1537, 7
          %v1539 = vsub.s32 %v1536, %v1538
          %v1540 = vrot.slane %v1520, %v1539
          %v1541 = vcombine.low %v1533, %v1540
          %1543 = vst [vmem:[#allocation6] sm:$0x3f] %v1541
        $region84: #{tpu_custom_call.1} parent=71 // pred_fallthru
          _
        // Predicated region
        $region85: #{tpu_custom_call.1} parent=71 // pred_check
          %p1544 = pneg %p1159
        $region86: #{tpu_custom_call.1} parent=71 // pred_check_branch
          %1546 = sbr.rel (%p1544) target = $region88
        $region87: #{tpu_custom_call.1} parent=71 // pred_region
          %v1547 = vld [vmem:[%s461] sm:$0xff]
          %v1548 = vpack.c.bf16 %v1547, %v1547
          %v1549 = vld [vmem:[%s1] sm:$0xf]
          %v1550 = vld [vmem:[%s2] sm:$0x1]
          %v1552 = vlaneseq
          %v1553 = vshrl.u32 %v1552, 7
          %v1554 = vsub.s32 0, %v1553
          %v1555 = vrot.slane %v1550, %v1554
          %vm1557 = vcmask 64512
          %v1559 = vsel %vm1557, %v1548, 0
          %vm1561 = vcmask 1043456
          %v1563 = vsel %vm1561, %v1549, 0
          %1565 = vmatprep.subr.bf16.mxu0 0
          %1566 = vmatpush1.bf16.msra.mxu0 %v1563
          %1567 = vmatprep.subr.bf16.mxu0 0
          %1568 = vmatpush1.bf16.msra.mxu0 0
          %1569 = vmatprep.subr.bf16.mxu0 0
          %1570 = vmatpush1.bf16.msra.mxu0 0
          %1571 = vmatprep.subr.bf16.mxu0 0
          %1572 = vmatpush1.bf16.msra.mxu0 0
          %1573 = vmatprep.subr.bf16.mxu0 0
          %1574 = vmatpush1.bf16.msra.mxu0 0
          %1575 = vmatprep.subr.bf16.mxu0 0
          %1576 = vmatpush1.bf16.msra.mxu0 0
          %1577 = vmatprep.subr.bf16.mxu0 0
          %1578 = vmatpush1.bf16.msra.mxu0 0
          %1579 = vmatprep.subr.bf16.mxu0 0
          %1580 = vmatpush1.bf16.msra.mxu0 0
          %1581 = vmatprep.subr.bf16.mxu0 0
          %1582 = vmatpush1.bf16.msra.mxu0 0
          %1583 = vmatprep.subr.bf16.mxu0 0
          %1584 = vmatpush1.bf16.msra.mxu0 0
          %1585 = vmatprep.subr.bf16.mxu0 0
          %1586 = vmatpush1.bf16.msra.mxu0 0
          %1587 = vmatprep.subr.bf16.mxu0 0
          %1588 = vmatpush1.bf16.msra.mxu0 0
          %1589 = vmatprep.subr.bf16.mxu0 0
          %1590 = vmatpush1.bf16.msra.mxu0 0
          %1591 = vmatprep.subr.bf16.mxu0 0
          %1592 = vmatpush1.bf16.msra.mxu0 0
          %1593 = vmatprep.subr.bf16.mxu0 0
          %1594 = vmatpush1.bf16.msra.mxu0 0
          %1595 = vmatprep.subr.bf16.mxu0 0
          %1596 = vmatpush1.bf16.msra.mxu0 0
          %1597 = vmatprep.mubr.bf16.mxu0 0
          %1598 = vmatmul.mubr.bf16.gmra.mrb[0].mxu0 %v1559
          %v1599 = vpop.f32.mrb[0].mxu0
          %v1600 = vadd.f32 %v1555, %v1599
          %v1601 = vpop.f32.mrb[0].mxu0
          %v1602 = vpop.f32.mrb[0].mxu0
          %v1603 = vpop.f32.mrb[0].mxu0
          %1604 = vdwg.mxu0
          %v1605 = vpack.c.bf16 %v1600, %v1600
          %v1606 = vld [vmem:[%s3] sm:$0xff]
          %v1607 = vld [vmem:[%s3 + $0x8] sm:$0xf]
          %v1608 = vld [vmem:[%s3 + $0xc] sm:$0xff]
          %v1609 = vld [vmem:[%s3 + $0x14] sm:$0xf]
          %v1610 = vld [vmem:[%s3 + $0x18] sm:$0xff]
          %v1611 = vld [vmem:[%s3 + $0x20] sm:$0xf]
          %v1612 = vld [vmem:[%s3 + $0x24] sm:$0xff]
          %v1613 = vld [vmem:[%s3 + $0x2c] sm:$0xf]
          %v1614 = vld [vmem:[%s3 + $0x30] sm:$0xff]
          %v1615 = vld [vmem:[%s3 + $0x38] sm:$0xf]
          %v1616 = vld [vmem:[%s3 + $0x3c] sm:$0xff]
          %v1617 = vld [vmem:[%s3 + $0x44] sm:$0xf]
          %v1618 = vld [vmem:[%s3 + $0x48] sm:$0xff]
          %v1619 = vld [vmem:[%s3 + $0x50] sm:$0xf]
          %v1620 = vld [vmem:[%s3 + $0x54] sm:$0xff]
          %v1621 = vld [vmem:[%s3 + $0x5c] sm:$0xf]
          %v1622 = vld [vmem:[%s3 + $0x60] sm:$0xff]
          %v1623 = vld [vmem:[%s3 + $0x68] sm:$0xf]
          %v1624 = vld [vmem:[%s3 + $0x6c] sm:$0xff]
          %v1625 = vld [vmem:[%s3 + $0x74] sm:$0xf]
          %v1626 = vld [vmem:[%s3 + $0x78] sm:$0xff]
          %v1627 = vld [vmem:[%s3 + $0x80] sm:$0xf]
          %v1628 = vld [vmem:[%s3 + $0x84] sm:$0xff]
          %v1629 = vld [vmem:[%s3 + $0x8c] sm:$0xf]
          %v1630 = vld [vmem:[%s3 + $0x90] sm:$0xff]
          %v1631 = vld [vmem:[%s3 + $0x98] sm:$0xf]
          %v1632 = vld [vmem:[%s3 + $0x9c] sm:$0xff]
          %v1633 = vld [vmem:[%s3 + $0xa4] sm:$0xf]
          %v1634 = vld [vmem:[%s3 + $0xa8] sm:$0xff]
          %v1635 = vld [vmem:[%s3 + $0xb0] sm:$0xf]
          %v1636 = vld [vmem:[%s3 + $0xb4] sm:$0xff]
          %v1637 = vld [vmem:[%s3 + $0xbc] sm:$0xf]
          %v1638 = vld [vmem:[%s4] sm:$0x7]
          %v1640 = vlaneseq
          %v1641 = vshrl.u32 %v1640, 7
          %v1642 = vsub.s32 0, %v1641
          %v1643 = vrot.slane %v1638, %v1642
          %v1644 = vlaneseq
          %v1645 = vshrl.u32 %v1644, 7
          %v1646 = vsub.s32 1, %v1645
          %v1647 = vrot.slane %v1638, %v1646
          %v1648 = vlaneseq
          %v1649 = vshrl.u32 %v1648, 7
          %v1650 = vsub.s32 2, %v1649
          %v1651 = vrot.slane %v1638, %v1650
          %v1687 = vunpack.c.l.b16 %v1606
          %v1688 = vunpack.c.h.b16 %v1606
          %v1689 = vunpack.c.l.b16 %v1607
          %v1690 = vunpack.c.l.b16 %v1608
          %v1691 = vunpack.c.h.b16 %v1608
          %v1692 = vunpack.c.l.b16 %v1609
          %v1693 = vunpack.c.l.b16 %v1610
          %v1694 = vunpack.c.h.b16 %v1610
          %v1695 = vunpack.c.l.b16 %v1611
          %v1696 = vunpack.c.l.b16 %v1612
          %v1697 = vunpack.c.h.b16 %v1612
          %v1698 = vunpack.c.l.b16 %v1613
          %v1699 = vunpack.c.l.b16 %v1614
          %v1700 = vunpack.c.h.b16 %v1614
          %v1701 = vunpack.c.l.b16 %v1615
          %v1702 = vunpack.c.l.b16 %v1616
          %v1703 = vunpack.c.h.b16 %v1616
          %v1704 = vunpack.c.l.b16 %v1617
          %v1705 = vunpack.c.l.b16 %v1618
          %v1706 = vunpack.c.h.b16 %v1618
          %v1707 = vunpack.c.l.b16 %v1619
          %v1708 = vunpack.c.l.b16 %v1620
          %v1709 = vunpack.c.h.b16 %v1620
          %v1710 = vunpack.c.l.b16 %v1621
          %v1711 = vunpack.c.l.b16 %v1622
          %v1712 = vunpack.c.h.b16 %v1622
          %v1713 = vunpack.c.l.b16 %v1623
          %v1714 = vunpack.c.l.b16 %v1624
          %v1715 = vunpack.c.h.b16 %v1624
          %v1716 = vunpack.c.l.b16 %v1625
          %v1717 = vunpack.c.l.b16 %v1626
          %v1718 = vunpack.c.h.b16 %v1626
          %v1719 = vunpack.c.l.b16 %v1627
          %v1720 = vunpack.c.l.b16 %v1628
          %v1721 = vunpack.c.h.b16 %v1628
          %v1722 = vunpack.c.l.b16 %v1629
          %v1723 = vunpack.c.l.b16 %v1630
          %v1724 = vunpack.c.h.b16 %v1630
          %v1725 = vunpack.c.l.b16 %v1631
          %v1726 = vunpack.c.l.b16 %v1632
          %v1727 = vunpack.c.h.b16 %v1632
          %v1728 = vunpack.c.l.b16 %v1633
          %v1729 = vunpack.c.l.b16 %v1634
          %v1730 = vunpack.c.h.b16 %v1634
          %v1731 = vunpack.c.l.b16 %v1635
          %v1732 = vunpack.c.l.b16 %v1636
          %v1733 = vunpack.c.h.b16 %v1636
          %v1734 = vunpack.c.l.b16 %v1637
          %v1735 = vpack.c.b16 %v1690, %v1687
          %v1736 = vpack.c.b16 %v1691, %v1688
          %v1737 = vpack.c.b16 %v1692, %v1689
          %v1738 = vpack.c.b16 %v1696, %v1693
          %v1739 = vpack.c.b16 %v1697, %v1694
          %v1740 = vpack.c.b16 %v1698, %v1695
          %v1741 = vpack.c.b16 %v1702, %v1699
          %v1742 = vpack.c.b16 %v1703, %v1700
          %v1743 = vpack.c.b16 %v1704, %v1701
          %v1744 = vpack.c.b16 %v1708, %v1705
          %v1745 = vpack.c.b16 %v1709, %v1706
          %v1746 = vpack.c.b16 %v1710, %v1707
          %v1747 = vpack.c.b16 %v1714, %v1711
          %v1748 = vpack.c.b16 %v1715, %v1712
          %v1749 = vpack.c.b16 %v1716, %v1713
          %v1750 = vpack.c.b16 %v1720, %v1717
          %v1751 = vpack.c.b16 %v1721, %v1718
          %v1752 = vpack.c.b16 %v1722, %v1719
          %v1753 = vpack.c.b16 %v1726, %v1723
          %v1754 = vpack.c.b16 %v1727, %v1724
          %v1755 = vpack.c.b16 %v1728, %v1725
          %v1756 = vpack.c.b16 %v1732, %v1729
          %v1757 = vpack.c.b16 %v1733, %v1730
          %v1758 = vpack.c.b16 %v1734, %v1731
          %1783 = vmatprep.subr.bf16.mxu0 %v1736
          %1784 = vmatpush1.bf16.msra.mxu0 %v1735
          %1785 = vmatprep.subr.bf16.mxu0 %v1739
          %1786 = vmatpush1.bf16.msra.mxu0 %v1738
          %1787 = vmatprep.subr.bf16.mxu0 %v1742
          %1788 = vmatpush1.bf16.msra.mxu0 %v1741
          %1789 = vmatprep.subr.bf16.mxu0 %v1745
          %1790 = vmatpush1.bf16.msra.mxu0 %v1744
          %1791 = vmatprep.subr.bf16.mxu0 %v1748
          %1792 = vmatpush1.bf16.msra.mxu0 %v1747
          %1793 = vmatprep.subr.bf16.mxu0 %v1751
          %1794 = vmatpush1.bf16.msra.mxu0 %v1750
          %1795 = vmatprep.subr.bf16.mxu0 %v1754
          %1796 = vmatpush1.bf16.msra.mxu0 %v1753
          %1797 = vmatprep.subr.bf16.mxu0 %v1757
          %1798 = vmatpush1.bf16.msra.mxu0 %v1756
          %1799 = vmatprep.subr.bf16.mxu0 0
          %1800 = vmatpush1.bf16.msra.mxu0 0
          %1801 = vmatprep.subr.bf16.mxu0 0
          %1802 = vmatpush1.bf16.msra.mxu0 0
          %1803 = vmatprep.subr.bf16.mxu0 0
          %1804 = vmatpush1.bf16.msra.mxu0 0
          %1805 = vmatprep.subr.bf16.mxu0 0
          %1806 = vmatpush1.bf16.msra.mxu0 0
          %1807 = vmatprep.subr.bf16.mxu0 0
          %1808 = vmatpush1.bf16.msra.mxu0 0
          %1809 = vmatprep.subr.bf16.mxu0 0
          %1810 = vmatpush1.bf16.msra.mxu0 0
          %1811 = vmatprep.subr.bf16.mxu0 0
          %1812 = vmatpush1.bf16.msra.mxu0 0
          %1813 = vmatprep.subr.bf16.mxu0 0
          %1814 = vmatpush1.bf16.msra.mxu0 0
          %1815 = vmatprep.mubr.bf16.mxu0 0
          %1816 = vmatmul.mubr.bf16.gmra.mrb[0].mxu0 %v1605
          %v1817 = vpop.f32.mrb[0].mxu0
          %v1818 = vadd.f32 %v1643, %v1817
          %v1819 = vpop.f32.mrb[0].mxu0
          %v1820 = vadd.f32 %v1647, %v1819
          %v1821 = vpop.f32.mrb[0].mxu0
          %v1822 = vpop.f32.mrb[0].mxu0
          %1823 = vdwg.mxu0
          %1824 = vmatprep.subr.bf16.mxu0 0
          %1825 = vmatpush1.bf16.msra.mxu0 %v1737
          %1826 = vmatprep.subr.bf16.mxu0 0
          %1827 = vmatpush1.bf16.msra.mxu0 %v1740
          %1828 = vmatprep.subr.bf16.mxu0 0
          %1829 = vmatpush1.bf16.msra.mxu0 %v1743
          %1830 = vmatprep.subr.bf16.mxu0 0
          %1831 = vmatpush1.bf16.msra.mxu0 %v1746
          %1832 = vmatprep.subr.bf16.mxu0 0
          %1833 = vmatpush1.bf16.msra.mxu0 %v1749
          %1834 = vmatprep.subr.bf16.mxu0 0
          %1835 = vmatpush1.bf16.msra.mxu0 %v1752
          %1836 = vmatprep.subr.bf16.mxu0 0
          %1837 = vmatpush1.bf16.msra.mxu0 %v1755
          %1838 = vmatprep.subr.bf16.mxu0 0
          %1839 = vmatpush1.bf16.msra.mxu0 %v1758
          %1840 = vmatprep.subr.bf16.mxu0 0
          %1841 = vmatpush1.bf16.msra.mxu0 0
          %1842 = vmatprep.subr.bf16.mxu0 0
          %1843 = vmatpush1.bf16.msra.mxu0 0
          %1844 = vmatprep.subr.bf16.mxu0 0
          %1845 = vmatpush1.bf16.msra.mxu0 0
          %1846 = vmatprep.subr.bf16.mxu0 0
          %1847 = vmatpush1.bf16.msra.mxu0 0
          %1848 = vmatprep.subr.bf16.mxu0 0
          %1849 = vmatpush1.bf16.msra.mxu0 0
          %1850 = vmatprep.subr.bf16.mxu0 0
          %1851 = vmatpush1.bf16.msra.mxu0 0
          %1852 = vmatprep.subr.bf16.mxu0 0
          %1853 = vmatpush1.bf16.msra.mxu0 0
          %1854 = vmatprep.subr.bf16.mxu0 0
          %1855 = vmatpush1.bf16.msra.mxu0 0
          %1856 = vmatprep.mubr.bf16.mxu0 0
          %1857 = vmatmul.mubr.bf16.gmra.mrb[0].mxu0 %v1605
          %v1858 = vpop.f32.mrb[0].mxu0
          %v1859 = vadd.f32 %v1651, %v1858
          %v1860 = vpop.f32.mrb[0].mxu0
          %v1861 = vpop.f32.mrb[0].mxu0
          %v1862 = vpop.f32.mrb[0].mxu0
          %1863 = vdwg.mxu0
          %v1864 = vmul.f32 %v1818, %v470
          %v1865 = vmul.f32 %v1820, %v470
          %v1866 = vmul.f32 %v1859, %v470
          %v1867 = vld [vmem:[#allocation6] ss:$2 sm:$0x7]
          %v1869 = vlaneseq
          %v1870 = vshrl.u32 %v1869, 7
          %v1871 = vsub.s32 0, %v1870
          %v1872 = vrot.slane %v1867, %v1871
          %v1873 = vlaneseq
          %v1874 = vshrl.u32 %v1873, 7
          %v1875 = vsub.s32 1, %v1874
          %v1876 = vrot.slane %v1867, %v1875
          %v1877 = vlaneseq
          %v1878 = vshrl.u32 %v1877, 7
          %v1879 = vsub.s32 2, %v1878
          %v1880 = vrot.slane %v1867, %v1879
          %v1884 = vmul.f32 %v1864, %v1872
          %v1885 = vmul.f32 %v1865, %v1876
          %v1886 = vmul.f32 %v1866, %v1880
          %s1887 = scalar_lea.vmem [#allocation6], 1
          %v1888 = vld [vmem:[%s1887] ss:$2 sm:$0x7]
          %v1890 = vlaneseq
          %v1891 = vshrl.u32 %v1890, 7
          %v1892 = vsub.s32 0, %v1891
          %v1893 = vrot.slane %v1888, %v1892
          %v1894 = vlaneseq
          %v1895 = vshrl.u32 %v1894, 7
          %v1896 = vsub.s32 1, %v1895
          %v1897 = vrot.slane %v1888, %v1896
          %v1898 = vlaneseq
          %v1899 = vshrl.u32 %v1898, 7
          %v1900 = vsub.s32 2, %v1899
          %v1901 = vrot.slane %v1888, %v1900
          %v1905 = vadd.f32 %v1884, %v1893
          %v1906 = vadd.f32 %v1885, %v1897
          %v1907 = vadd.f32 %v1886, %v1901
          %vm1908 = vcmp.gt.f32.partialorder %v1905, 0.0
          %vm1909 = vcmp.gt.f32.partialorder %v1906, 0.0
          %vm1910 = vcmp.gt.f32.partialorder %v1907, 0.0
          %v1911 = vmul.f32 %v1905, 0.05
          %v1912 = vmul.f32 %v1906, 0.05
          %v1913 = vmul.f32 %v1907, 0.05
          %v1914 = vsel %vm1908, %v1905, %v1911
          %v1915 = vsel %vm1909, %v1906, %v1912
          %v1916 = vsel %vm1910, %v1907, %v1913
          %v1917 = vpack.c.bf16 %v1914, %v1914
          %v1918 = vpack.c.bf16 %v1915, %v1915
          %v1919 = vpack.c.bf16 %v1916, %v1916
          %v1920 = vld [vmem:[%s8] sm:$0xff]
          %v1921 = vld [vmem:[%s8 + $0x8] sm:$0xff]
          %v1922 = vld [vmem:[%s8 + $0x10] sm:$0xff]
          %v1923 = vld [vmem:[%s8 + $0x18] sm:$0xff]
          %v1924 = vld [vmem:[%s8 + $0x20] sm:$0xff]
          %v1925 = vld [vmem:[%s8 + $0x28] sm:$0xff]
          %v1926 = vld [vmem:[%s8 + $0x30] sm:$0xff]
          %v1927 = vld [vmem:[%s8 + $0x38] sm:$0xff]
          %v1928 = vld [vmem:[%s8 + $0x40] sm:$0xff]
          %v1929 = vld [vmem:[%s8 + $0x48] sm:$0xff]
          %v1930 = vld [vmem:[%s8 + $0x50] sm:$0xff]
          %v1931 = vld [vmem:[%s8 + $0x58] sm:$0xff]
          %v1932 = vld [vmem:[%s8 + $0x60] sm:$0xff]
          %v1933 = vld [vmem:[%s8 + $0x68] sm:$0xff]
          %v1934 = vld [vmem:[%s8 + $0x70] sm:$0xff]
          %v1935 = vld [vmem:[%s8 + $0x78] sm:$0xff]
          %v1936 = vld [vmem:[%s8 + $0x80] sm:$0xff]
          %v1937 = vld [vmem:[%s8 + $0x88] sm:$0xff]
          %v1938 = vld [vmem:[%s8 + $0x90] sm:$0xff]
          %v1939 = vld [vmem:[%s8 + $0x98] sm:$0xff]
          %v1940 = vld [vmem:[%s8 + $0xa0] sm:$0xff]
          %v1941 = vld [vmem:[%s8 + $0xa8] sm:$0xff]
          %v1942 = vld [vmem:[%s8 + $0xb0] sm:$0xff]
          %v1943 = vld [vmem:[%s8 + $0xb8] sm:$0xff]
          %v1944 = vld [vmem:[%s8 + $0xc0] sm:$0xff]
          %v1945 = vld [vmem:[%s8 + $0xc8] sm:$0xff]
          %v1946 = vld [vmem:[%s8 + $0xd0] sm:$0xff]
          %v1947 = vld [vmem:[%s8 + $0xd8] sm:$0xff]
          %v1948 = vld [vmem:[%s8 + $0xe0] sm:$0xff]
          %v1949 = vld [vmem:[%s8 + $0xe8] sm:$0xff]
          %v1950 = vld [vmem:[%s8 + $0xf0] sm:$0xff]
          %v1951 = vld [vmem:[%s8 + $0xf8] sm:$0xff]
          %v1952 = vld [vmem:[%s8 + $0x100] sm:$0xff]
          %v1953 = vld [vmem:[%s8 + $0x108] sm:$0xff]
          %v1954 = vld [vmem:[%s8 + $0x110] sm:$0xff]
          %v1955 = vld [vmem:[%s8 + $0x118] sm:$0xff]
          %v1956 = vld [vmem:[%s8 + $0x120] sm:$0xff]
          %v1957 = vld [vmem:[%s8 + $0x128] sm:$0xff]
          %v1958 = vld [vmem:[%s8 + $0x130] sm:$0xff]
          %v1959 = vld [vmem:[%s8 + $0x138] sm:$0xff]
          %v1960 = vld [vmem:[%s8 + $0x140] sm:$0xff]
          %v1961 = vld [vmem:[%s8 + $0x148] sm:$0xff]
          %v1962 = vld [vmem:[%s8 + $0x150] sm:$0xff]
          %v1963 = vld [vmem:[%s8 + $0x158] sm:$0xff]
          %v1964 = vld [vmem:[%s8 + $0x160] sm:$0xff]
          %v1965 = vld [vmem:[%s8 + $0x168] sm:$0xff]
          %v1966 = vld [vmem:[%s8 + $0x170] sm:$0xff]
          %v1967 = vld [vmem:[%s8 + $0x178] sm:$0xff]
          %v1968 = vld [vmem:[%s9] sm:$0x3]
          %v1970 = vlaneseq
          %v1971 = vshrl.u32 %v1970, 7
          %v1972 = vsub.s32 0, %v1971
          %v1973 = vrot.slane %v1968, %v1972
          %v1974 = vlaneseq
          %v1975 = vshrl.u32 %v1974, 7
          %v1976 = vsub.s32 1, %v1975
          %v1977 = vrot.slane %v1968, %v1976
          %v2028 = vunpack.c.l.b16 %v1920
          %v2029 = vunpack.c.h.b16 %v1920
          %v2030 = vunpack.c.l.b16 %v1921
          %v2031 = vunpack.c.h.b16 %v1921
          %v2032 = vunpack.c.l.b16 %v1922
          %v2033 = vunpack.c.h.b16 %v1922
          %v2034 = vunpack.c.l.b16 %v1923
          %v2035 = vunpack.c.h.b16 %v1923
          %v2036 = vunpack.c.l.b16 %v1924
          %v2037 = vunpack.c.h.b16 %v1924
          %v2038 = vunpack.c.l.b16 %v1925
          %v2039 = vunpack.c.h.b16 %v1925
          %v2040 = vunpack.c.l.b16 %v1926
          %v2041 = vunpack.c.h.b16 %v1926
          %v2042 = vunpack.c.l.b16 %v1927
          %v2043 = vunpack.c.h.b16 %v1927
          %v2044 = vunpack.c.l.b16 %v1928
          %v2045 = vunpack.c.h.b16 %v1928
          %v2046 = vunpack.c.l.b16 %v1929
          %v2047 = vunpack.c.h.b16 %v1929
          %v2048 = vunpack.c.l.b16 %v1930
          %v2049 = vunpack.c.h.b16 %v1930
          %v2050 = vunpack.c.l.b16 %v1931
          %v2051 = vunpack.c.h.b16 %v1931
          %v2052 = vunpack.c.l.b16 %v1932
          %v2053 = vunpack.c.h.b16 %v1932
          %v2054 = vunpack.c.l.b16 %v1933
          %v2055 = vunpack.c.h.b16 %v1933
          %v2056 = vunpack.c.l.b16 %v1934
          %v2057 = vunpack.c.h.b16 %v1934
          %v2058 = vunpack.c.l.b16 %v1935
          %v2059 = vunpack.c.h.b16 %v1935
          %v2060 = vunpack.c.l.b16 %v1936
          %v2061 = vunpack.c.h.b16 %v1936
          %v2062 = vunpack.c.l.b16 %v1937
          %v2063 = vunpack.c.h.b16 %v1937
          %v2064 = vunpack.c.l.b16 %v1938
          %v2065 = vunpack.c.h.b16 %v1938
          %v2066 = vunpack.c.l.b16 %v1939
          %v2067 = vunpack.c.h.b16 %v1939
          %v2068 = vunpack.c.l.b16 %v1940
          %v2069 = vunpack.c.h.b16 %v1940
          %v2070 = vunpack.c.l.b16 %v1941
          %v2071 = vunpack.c.h.b16 %v1941
          %v2072 = vunpack.c.l.b16 %v1942
          %v2073 = vunpack.c.h.b16 %v1942
          %v2074 = vunpack.c.l.b16 %v1943
          %v2075 = vunpack.c.h.b16 %v1943
          %v2076 = vunpack.c.l.b16 %v1944
          %v2077 = vunpack.c.h.b16 %v1944
          %v2078 = vunpack.c.l.b16 %v1945
          %v2079 = vunpack.c.h.b16 %v1945
          %v2080 = vunpack.c.l.b16 %v1946
          %v2081 = vunpack.c.h.b16 %v1946
          %v2082 = vunpack.c.l.b16 %v1947
          %v2083 = vunpack.c.h.b16 %v1947
          %v2084 = vunpack.c.l.b16 %v1948
          %v2085 = vunpack.c.h.b16 %v1948
          %v2086 = vunpack.c.l.b16 %v1949
          %v2087 = vunpack.c.h.b16 %v1949
          %v2088 = vunpack.c.l.b16 %v1950
          %v2089 = vunpack.c.h.b16 %v1950
          %v2090 = vunpack.c.l.b16 %v1951
          %v2091 = vunpack.c.h.b16 %v1951
          %v2092 = vunpack.c.l.b16 %v1952
          %v2093 = vunpack.c.h.b16 %v1952
          %v2094 = vunpack.c.l.b16 %v1953
          %v2095 = vunpack.c.h.b16 %v1953
          %v2096 = vunpack.c.l.b16 %v1954
          %v2097 = vunpack.c.h.b16 %v1954
          %v2098 = vunpack.c.l.b16 %v1955
          %v2099 = vunpack.c.h.b16 %v1955
          %v2100 = vunpack.c.l.b16 %v1956
          %v2101 = vunpack.c.h.b16 %v1956
          %v2102 = vunpack.c.l.b16 %v1957
          %v2103 = vunpack.c.h.b16 %v1957
          %v2104 = vunpack.c.l.b16 %v1958
          %v2105 = vunpack.c.h.b16 %v1958
          %v2106 = vunpack.c.l.b16 %v1959
          %v2107 = vunpack.c.h.b16 %v1959
          %v2108 = vunpack.c.l.b16 %v1960
          %v2109 = vunpack.c.h.b16 %v1960
          %v2110 = vunpack.c.l.b16 %v1961
          %v2111 = vunpack.c.h.b16 %v1961
          %v2112 = vunpack.c.l.b16 %v1962
          %v2113 = vunpack.c.h.b16 %v1962
          %v2114 = vunpack.c.l.b16 %v1963
          %v2115 = vunpack.c.h.b16 %v1963
          %v2116 = vunpack.c.l.b16 %v1964
          %v2117 = vunpack.c.h.b16 %v1964
          %v2118 = vunpack.c.l.b16 %v1965
          %v2119 = vunpack.c.h.b16 %v1965
          %v2120 = vunpack.c.l.b16 %v1966
          %v2121 = vunpack.c.h.b16 %v1966
          %v2122 = vunpack.c.l.b16 %v1967
          %v2123 = vunpack.c.h.b16 %v1967
          %v2124 = vpack.c.b16 %v2030, %v2028
          %v2125 = vpack.c.b16 %v2031, %v2029
          %v2126 = vpack.c.b16 %v2034, %v2032
          %v2127 = vpack.c.b16 %v2035, %v2033
          %v2128 = vpack.c.b16 %v2038, %v2036
          %v2129 = vpack.c.b16 %v2039, %v2037
          %v2130 = vpack.c.b16 %v2042, %v2040
          %v2131 = vpack.c.b16 %v2043, %v2041
          %v2132 = vpack.c.b16 %v2046, %v2044
          %v2133 = vpack.c.b16 %v2047, %v2045
          %v2134 = vpack.c.b16 %v2050, %v2048
          %v2135 = vpack.c.b16 %v2051, %v2049
          %v2136 = vpack.c.b16 %v2054, %v2052
          %v2137 = vpack.c.b16 %v2055, %v2053
          %v2138 = vpack.c.b16 %v2058, %v2056
          %v2139 = vpack.c.b16 %v2059, %v2057
          %v2140 = vpack.c.b16 %v2062, %v2060
          %v2141 = vpack.c.b16 %v2063, %v2061
          %v2142 = vpack.c.b16 %v2066, %v2064
          %v2143 = vpack.c.b16 %v2067, %v2065
          %v2144 = vpack.c.b16 %v2070, %v2068
          %v2145 = vpack.c.b16 %v2071, %v2069
          %v2146 = vpack.c.b16 %v2074, %v2072
          %v2147 = vpack.c.b16 %v2075, %v2073
          %v2148 = vpack.c.b16 %v2078, %v2076
          %v2149 = vpack.c.b16 %v2079, %v2077
          %v2150 = vpack.c.b16 %v2082, %v2080
          %v2151 = vpack.c.b16 %v2083, %v2081
          %v2152 = vpack.c.b16 %v2086, %v2084
          %v2153 = vpack.c.b16 %v2087, %v2085
          %v2154 = vpack.c.b16 %v2090, %v2088
          %v2155 = vpack.c.b16 %v2091, %v2089
          %v2156 = vpack.c.b16 %v2094, %v2092
          %v2157 = vpack.c.b16 %v2095, %v2093
          %v2158 = vpack.c.b16 %v2098, %v2096
          %v2159 = vpack.c.b16 %v2099, %v2097
          %v2160 = vpack.c.b16 %v2102, %v2100
          %v2161 = vpack.c.b16 %v2103, %v2101
          %v2162 = vpack.c.b16 %v2106, %v2104
          %v2163 = vpack.c.b16 %v2107, %v2105
          %v2164 = vpack.c.b16 %v2110, %v2108
          %v2165 = vpack.c.b16 %v2111, %v2109
          %v2166 = vpack.c.b16 %v2114, %v2112
          %v2167 = vpack.c.b16 %v2115, %v2113
          %v2168 = vpack.c.b16 %v2118, %v2116
          %v2169 = vpack.c.b16 %v2119, %v2117
          %v2170 = vpack.c.b16 %v2122, %v2120
          %v2171 = vpack.c.b16 %v2123, %v2121
          %2220 = vmatprep.subr.bf16.mxu0 %v2125
          %2221 = vmatpush1.bf16.msra.mxu0 %v2124
          %2222 = vmatprep.subr.bf16.mxu0 %v2127
          %2223 = vmatpush1.bf16.msra.mxu0 %v2126
          %2224 = vmatprep.subr.bf16.mxu0 %v2129
          %2225 = vmatpush1.bf16.msra.mxu0 %v2128
          %2226 = vmatprep.subr.bf16.mxu0 %v2131
          %2227 = vmatpush1.bf16.msra.mxu0 %v2130
          %2228 = vmatprep.subr.bf16.mxu0 %v2133
          %2229 = vmatpush1.bf16.msra.mxu0 %v2132
          %2230 = vmatprep.subr.bf16.mxu0 %v2135
          %2231 = vmatpush1.bf16.msra.mxu0 %v2134
          %2232 = vmatprep.subr.bf16.mxu0 %v2137
          %2233 = vmatpush1.bf16.msra.mxu0 %v2136
          %2234 = vmatprep.subr.bf16.mxu0 %v2139
          %2235 = vmatpush1.bf16.msra.mxu0 %v2138
          %2236 = vmatprep.subr.bf16.mxu0 %v2141
          %2237 = vmatpush1.bf16.msra.mxu0 %v2140
          %2238 = vmatprep.subr.bf16.mxu0 %v2143
          %2239 = vmatpush1.bf16.msra.mxu0 %v2142
          %2240 = vmatprep.subr.bf16.mxu0 %v2145
          %2241 = vmatpush1.bf16.msra.mxu0 %v2144
          %2242 = vmatprep.subr.bf16.mxu0 %v2147
          %2243 = vmatpush1.bf16.msra.mxu0 %v2146
          %2244 = vmatprep.subr.bf16.mxu0 %v2149
          %2245 = vmatpush1.bf16.msra.mxu0 %v2148
          %2246 = vmatprep.subr.bf16.mxu0 %v2151
          %2247 = vmatpush1.bf16.msra.mxu0 %v2150
          %2248 = vmatprep.subr.bf16.mxu0 %v2153
          %2249 = vmatpush1.bf16.msra.mxu0 %v2152
          %2250 = vmatprep.subr.bf16.mxu0 %v2155
          %2251 = vmatpush1.bf16.msra.mxu0 %v2154
          %2252 = vmatprep.mubr.bf16.mxu0 %v1918
          %2253 = vmatmul.mubr.bf16.gmra.mrb[0].mxu0 %v1917
          %v2254 = vpop.f32.mrb[0].mxu0
          %v2255 = vadd.f32 %v1973, %v2254
          %v2256 = vpop.f32.mrb[0].mxu0
          %v2257 = vadd.f32 %v1977, %v2256
          %v2258 = vpop.f32.mrb[0].mxu0
          %v2259 = vpop.f32.mrb[0].mxu0
          %2260 = vdwg.mxu0
          %2261 = vmatprep.subr.bf16.mxu0 %v2157
          %2262 = vmatpush1.bf16.msra.mxu0 %v2156
          %2263 = vmatprep.subr.bf16.mxu0 %v2159
          %2264 = vmatpush1.bf16.msra.mxu0 %v2158
          %2265 = vmatprep.subr.bf16.mxu0 %v2161
          %2266 = vmatpush1.bf16.msra.mxu0 %v2160
          %2267 = vmatprep.subr.bf16.mxu0 %v2163
          %2268 = vmatpush1.bf16.msra.mxu0 %v2162
          %2269 = vmatprep.subr.bf16.mxu0 %v2165
          %2270 = vmatpush1.bf16.msra.mxu0 %v2164
          %2271 = vmatprep.subr.bf16.mxu0 %v2167
          %2272 = vmatpush1.bf16.msra.mxu0 %v2166
          %2273 = vmatprep.subr.bf16.mxu0 %v2169
          %2274 = vmatpush1.bf16.msra.mxu0 %v2168
          %2275 = vmatprep.subr.bf16.mxu0 %v2171
          %2276 = vmatpush1.bf16.msra.mxu0 %v2170
          %2277 = vmatprep.subr.bf16.mxu0 0
          %2278 = vmatpush1.bf16.msra.mxu0 0
          %2279 = vmatprep.subr.bf16.mxu0 0
          %2280 = vmatpush1.bf16.msra.mxu0 0
          %2281 = vmatprep.subr.bf16.mxu0 0
          %2282 = vmatpush1.bf16.msra.mxu0 0
          %2283 = vmatprep.subr.bf16.mxu0 0
          %2284 = vmatpush1.bf16.msra.mxu0 0
          %2285 = vmatprep.subr.bf16.mxu0 0
          %2286 = vmatpush1.bf16.msra.mxu0 0
          %2287 = vmatprep.subr.bf16.mxu0 0
          %2288 = vmatpush1.bf16.msra.mxu0 0
          %2289 = vmatprep.subr.bf16.mxu0 0
          %2290 = vmatpush1.bf16.msra.mxu0 0
          %2291 = vmatprep.subr.bf16.mxu0 0
          %2292 = vmatpush1.bf16.msra.mxu0 0
          %2293 = vmatprep.mubr.bf16.mxu0 0
          %2294 = vmatmul.mubr.bf16.gmra.mrb[0].mxu0 %v1919
          %v2295 = vpop.f32.mrb[0].mxu0
          %v2296 = vadd.f32 %v2255, %v2295
          %v2297 = vpop.f32.mrb[0].mxu0
          %v2298 = vadd.f32 %v2257, %v2297
          %v2299 = vpop.f32.mrb[0].mxu0
          %v2300 = vpop.f32.mrb[0].mxu0
          %2301 = vdwg.mxu0
          %v2302 = vmul.f32 %v2296, %v470
          %v2303 = vmul.f32 %v2298, %v470
          %v2304 = vld [vmem:[%s10] sm:$0xff]
          %v2305 = vld [vmem:[%s10 + $0x8] sm:$0xff]
          %v2306 = vld [vmem:[%s10 + $0x10] sm:$0xff]
          %v2307 = vld [vmem:[%s10 + $0x18] sm:$0xff]
          %v2308 = vld [vmem:[%s10 + $0x20] sm:$0xff]
          %v2309 = vld [vmem:[%s10 + $0x28] sm:$0xff]
          %v2310 = vld [vmem:[%s10 + $0x30] sm:$0xff]
          %v2311 = vld [vmem:[%s10 + $0x38] sm:$0xff]
          %v2312 = vld [vmem:[%s10 + $0x40] sm:$0xff]
          %v2313 = vld [vmem:[%s10 + $0x48] sm:$0xff]
          %v2314 = vld [vmem:[%s10 + $0x50] sm:$0xff]
          %v2315 = vld [vmem:[%s10 + $0x58] sm:$0xff]
          %v2316 = vld [vmem:[%s10 + $0x60] sm:$0xff]
          %v2317 = vld [vmem:[%s10 + $0x68] sm:$0xff]
          %v2318 = vld [vmem:[%s10 + $0x70] sm:$0xff]
          %v2319 = vld [vmem:[%s10 + $0x78] sm:$0xff]
          %v2320 = vld [vmem:[%s10 + $0x80] sm:$0xff]
          %v2321 = vld [vmem:[%s10 + $0x88] sm:$0xff]
          %v2322 = vld [vmem:[%s10 + $0x90] sm:$0xff]
          %v2323 = vld [vmem:[%s10 + $0x98] sm:$0xff]
          %v2324 = vld [vmem:[%s10 + $0xa0] sm:$0xff]
          %v2325 = vld [vmem:[%s10 + $0xa8] sm:$0xff]
          %v2326 = vld [vmem:[%s10 + $0xb0] sm:$0xff]
          %v2327 = vld [vmem:[%s10 + $0xb8] sm:$0xff]
          %v2328 = vld [vmem:[%s10 + $0xc0] sm:$0xff]
          %v2329 = vld [vmem:[%s10 + $0xc8] sm:$0xff]
          %v2330 = vld [vmem:[%s10 + $0xd0] sm:$0xff]
          %v2331 = vld [vmem:[%s10 + $0xd8] sm:$0xff]
          %v2332 = vld [vmem:[%s10 + $0xe0] sm:$0xff]
          %v2333 = vld [vmem:[%s10 + $0xe8] sm:$0xff]
          %v2334 = vld [vmem:[%s10 + $0xf0] sm:$0xff]
          %v2335 = vld [vmem:[%s10 + $0xf8] sm:$0xff]
          %2336 = vmatprep.subr.mxu0 0.0
          %2337 = vmatpush1.msra.mxu0 %v2304
          %2338 = vmatprep.subr.mxu0 0.0
          %2339 = vmatpush1.msra.mxu0 %v2305
          %2340 = vmatprep.subr.mxu0 0.0
          %2341 = vmatpush1.msra.mxu0 %v2306
          %2342 = vmatprep.subr.mxu0 0.0
          %2343 = vmatpush1.msra.mxu0 %v2307
          %2344 = vmatprep.subr.mxu0 0.0
          %2345 = vmatpush1.msra.mxu0 %v2308
          %2346 = vmatprep.subr.mxu0 0.0
          %2347 = vmatpush1.msra.mxu0 %v2309
          %2348 = vmatprep.subr.mxu0 0.0
          %2349 = vmatpush1.msra.mxu0 %v2310
          %2350 = vmatprep.subr.mxu0 0.0
          %2351 = vmatpush1.msra.mxu0 %v2311
          %2352 = vmatprep.subr.mxu0 0.0
          %2353 = vmatpush1.msra.mxu0 %v2312
          %2354 = vmatprep.subr.mxu0 0.0
          %2355 = vmatpush1.msra.mxu0 %v2313
          %2356 = vmatprep.subr.mxu0 0.0
          %2357 = vmatpush1.msra.mxu0 %v2314
          %2358 = vmatprep.subr.mxu0 0.0
          %2359 = vmatpush1.msra.mxu0 %v2315
          %2360 = vmatprep.subr.mxu0 0.0
          %2361 = vmatpush1.msra.mxu0 %v2316
          %2362 = vmatprep.subr.mxu0 0.0
          %2363 = vmatpush1.msra.mxu0 %v2317
          %2364 = vmatprep.subr.mxu0 0.0
          %2365 = vmatpush1.msra.mxu0 %v2318
          %2366 = vmatprep.subr.mxu0 0.0
          %2367 = vmatpush1.msra.mxu0 %v2319
          %2368 = vmatprep.subr.mxu0 0.0
          %2369 = vmatpush1.msra.mxu0 %v2320
          %2370 = vmatprep.subr.mxu0 0.0
          %2371 = vmatpush1.msra.mxu0 %v2321
          %2372 = vmatprep.subr.mxu0 0.0
          %2373 = vmatpush1.msra.mxu0 %v2322
          %2374 = vmatprep.subr.mxu0 0.0
          %2375 = vmatpush1.msra.mxu0 %v2323
          %2376 = vmatprep.subr.mxu0 0.0
          %2377 = vmatpush1.msra.mxu0 %v2324
          %2378 = vmatprep.subr.mxu0 0.0
          %2379 = vmatpush1.msra.mxu0 %v2325
          %2380 = vmatprep.subr.mxu0 0.0
          %2381 = vmatpush1.msra.mxu0 %v2326
          %2382 = vmatprep.subr.mxu0 0.0
          %2383 = vmatpush1.msra.mxu0 %v2327
          %2384 = vmatprep.subr.mxu0 0.0
          %2385 = vmatpush1.msra.mxu0 %v2328
          %2386 = vmatprep.subr.mxu0 0.0
          %2387 = vmatpush1.msra.mxu0 %v2329
          %2388 = vmatprep.subr.mxu0 0.0
          %2389 = vmatpush1.msra.mxu0 %v2330
          %2390 = vmatprep.subr.mxu0 0.0
          %2391 = vmatpush1.msra.mxu0 %v2331
          %2392 = vmatprep.subr.mxu0 0.0
          %2393 = vmatpush1.msra.mxu0 %v2332
          %2394 = vmatprep.subr.mxu0 0.0
          %2395 = vmatpush1.msra.mxu0 %v2333
          %2396 = vmatprep.subr.mxu0 0.0
          %2397 = vmatpush1.msra.mxu0 %v2334
          %2398 = vmatprep.subr.mxu0 0.0
          %2399 = vmatpush1.msra.mxu0 %v2335
          %2400 = vmatprep.mubr.f32.mxu0 %v2303
          %2401 = vmatmul.mubr.f32.gmra.mrb[0].mxu0 %v2302
          %v2402 = vpop.f32.mrb[0].mxu0
          %v2403 = vadd.f32 0.0, %v2402
          %v2404 = vpop.f32.mrb[0].mxu0
          %2405 = vdwg.mxu0
          %v2406 = vmul.f32 %v2302, %v2302
          %v2407 = vmul.f32 %v2303, %v2303
          %2408 = vmatprep.subr.mxu0 0.0
          %2409 = vmatpush1.msra.mxu0 %v2304
          %2410 = vmatprep.subr.mxu0 0.0
          %2411 = vmatpush1.msra.mxu0 %v2305
          %2412 = vmatprep.subr.mxu0 0.0
          %2413 = vmatpush1.msra.mxu0 %v2306
          %2414 = vmatprep.subr.mxu0 0.0
          %2415 = vmatpush1.msra.mxu0 %v2307
          %2416 = vmatprep.subr.mxu0 0.0
          %2417 = vmatpush1.msra.mxu0 %v2308
          %2418 = vmatprep.subr.mxu0 0.0
          %2419 = vmatpush1.msra.mxu0 %v2309
          %2420 = vmatprep.subr.mxu0 0.0
          %2421 = vmatpush1.msra.mxu0 %v2310
          %2422 = vmatprep.subr.mxu0 0.0
          %2423 = vmatpush1.msra.mxu0 %v2311
          %2424 = vmatprep.subr.mxu0 0.0
          %2425 = vmatpush1.msra.mxu0 %v2312
          %2426 = vmatprep.subr.mxu0 0.0
          %2427 = vmatpush1.msra.mxu0 %v2313
          %2428 = vmatprep.subr.mxu0 0.0
          %2429 = vmatpush1.msra.mxu0 %v2314
          %2430 = vmatprep.subr.mxu0 0.0
          %2431 = vmatpush1.msra.mxu0 %v2315
          %2432 = vmatprep.subr.mxu0 0.0
          %2433 = vmatpush1.msra.mxu0 %v2316
          %2434 = vmatprep.subr.mxu0 0.0
          %2435 = vmatpush1.msra.mxu0 %v2317
          %2436 = vmatprep.subr.mxu0 0.0
          %2437 = vmatpush1.msra.mxu0 %v2318
          %2438 = vmatprep.subr.mxu0 0.0
          %2439 = vmatpush1.msra.mxu0 %v2319
          %2440 = vmatprep.subr.mxu0 0.0
          %2441 = vmatpush1.msra.mxu0 %v2320
          %2442 = vmatprep.subr.mxu0 0.0
          %2443 = vmatpush1.msra.mxu0 %v2321
          %2444 = vmatprep.subr.mxu0 0.0
          %2445 = vmatpush1.msra.mxu0 %v2322
          %2446 = vmatprep.subr.mxu0 0.0
          %2447 = vmatpush1.msra.mxu0 %v2323
          %2448 = vmatprep.subr.mxu0 0.0
          %2449 = vmatpush1.msra.mxu0 %v2324
          %2450 = vmatprep.subr.mxu0 0.0
          %2451 = vmatpush1.msra.mxu0 %v2325
          %2452 = vmatprep.subr.mxu0 0.0
          %2453 = vmatpush1.msra.mxu0 %v2326
          %2454 = vmatprep.subr.mxu0 0.0
          %2455 = vmatpush1.msra.mxu0 %v2327
          %2456 = vmatprep.subr.mxu0 0.0
          %2457 = vmatpush1.msra.mxu0 %v2328
          %2458 = vmatprep.subr.mxu0 0.0
          %2459 = vmatpush1.msra.mxu0 %v2329
          %2460 = vmatprep.subr.mxu0 0.0
          %2461 = vmatpush1.msra.mxu0 %v2330
          %2462 = vmatprep.subr.mxu0 0.0
          %2463 = vmatpush1.msra.mxu0 %v2331
          %2464 = vmatprep.subr.mxu0 0.0
          %2465 = vmatpush1.msra.mxu0 %v2332
          %2466 = vmatprep.subr.mxu0 0.0
          %2467 = vmatpush1.msra.mxu0 %v2333
          %2468 = vmatprep.subr.mxu0 0.0
          %2469 = vmatpush1.msra.mxu0 %v2334
          %2470 = vmatprep.subr.mxu0 0.0
          %2471 = vmatpush1.msra.mxu0 %v2335
          %2472 = vmatprep.mubr.f32.mxu0 %v2407
          %2473 = vmatmul.mubr.f32.gmra.mrb[0].mxu0 %v2406
          %v2474 = vpop.f32.mrb[0].mxu0
          %v2475 = vadd.f32 0.0, %v2474
          %v2476 = vpop.f32.mrb[0].mxu0
          %2477 = vdwg.mxu0
          %v2478 = vld [vmem:[#allocation4] sm:$0x1]
          %vm2479 = vcmask 31744
          %v2480 = vsel %vm2479, %v2403, 0.0
          %v2481 = vrot.slane %v2480, 4
          %v2482 = vadd.f32 %v2480, %v2481
          %v2483 = vrot.slane %v2482, 2
          %v2484 = vadd.f32 %v2482, %v2483
          %v2485 = vrot.slane %v2484, 1
          %v2486 = vadd.f32 %v2484, %v2485
          %v2487 = vadd.f32 %v2478, %v2486
          %vm2488 = vcmask 24576
          %2489 = vst.msk [vmem:[#allocation4] sm:$0x1] %vm2488, %v2487
          %v2490 = vld [vmem:[#allocation5] sm:$0x1]
          %v2491 = vsel %vm2479, %v2475, 0.0
          %v2492 = vrot.slane %v2491, 4
          %v2493 = vadd.f32 %v2491, %v2492
          %v2494 = vrot.slane %v2493, 2
          %v2495 = vadd.f32 %v2493, %v2494
          %v2496 = vrot.slane %v2495, 1
          %v2497 = vadd.f32 %v2495, %v2496
          %v2498 = vadd.f32 %v2490, %v2497
          %2499 = vst.msk [vmem:[#allocation5] sm:$0x1] %vm2488, %v2498
        $region88: #{tpu_custom_call.1} parent=71 // pred_fallthru
          _
        // Predicated region
        $region89: #{tpu_custom_call.1} parent=71 // pred_check
          _
        $region90: #{tpu_custom_call.1} parent=71 // pred_check_branch
          %2501 = sbr.rel (%p1160) target = $region92
        $region91: #{tpu_custom_call.1} parent=71 // pred_region
          %v2502 = vld [vmem:[#allocation4] sm:$0x1]
          %v2503 = vrcp.pop 82.0
          %v2504 = vmul.f32 %v2502, %v2503
          %v2505 = vld [vmem:[#allocation5] sm:$0x1]
          %v2506 = vmul.f32 %v2505, %v2503
          %v2507 = vmul.f32 %v2504, %v2504
          %v2508 = vsub.f32 %v2506, %v2507
          %v2509 = vadd.f32 %v2508, 1e-05
          %v2510 = vrsqrt.pop %v2509
          %v2511 = vld [vmem:[%s11] sm:$0x1]
          %v2512 = vmul.f32 %v2510, %v2511
          %v2513 = vld [vmem:[%s12] sm:$0x1]
          %v2514 = vmul.f32 %v2504, %v2512
          %v2515 = vsub.f32 %v2513, %v2514
          %v2517 = vlaneseq
          %v2518 = vshrl.u32 %v2517, 7
          %v2519 = vsub.s32 0, %v2518
          %v2520 = vrot.slane %v2515, %v2519
          %vm2522 = vcmask 1040384
          %v2523 = vsel %vm2522, %v2512, %v2520
          %v2524 = vld [vmem:[%s10] sm:$0xff]
          %v2525 = vld [vmem:[%s10 + $0x8] sm:$0xff]
          %v2526 = vld [vmem:[%s10 + $0x10] sm:$0xff]
          %v2527 = vld [vmem:[%s10 + $0x18] sm:$0xff]
          %v2528 = vld [vmem:[%s10 + $0x20] sm:$0xff]
          %v2529 = vld [vmem:[%s10 + $0x28] sm:$0xff]
          %v2530 = vld [vmem:[%s10 + $0x30] sm:$0xff]
          %v2531 = vld [vmem:[%s10 + $0x38] sm:$0xff]
          %v2532 = vld [vmem:[%s10 + $0x40] sm:$0xff]
          %v2533 = vld [vmem:[%s10 + $0x48] sm:$0xff]
          %v2534 = vld [vmem:[%s10 + $0x50] sm:$0xff]
          %v2535 = vld [vmem:[%s10 + $0x58] sm:$0xff]
          %v2536 = vld [vmem:[%s10 + $0x60] sm:$0xff]
          %v2537 = vld [vmem:[%s10 + $0x68] sm:$0xff]
          %v2538 = vld [vmem:[%s10 + $0x70] sm:$0xff]
          %v2539 = vld [vmem:[%s10 + $0x78] sm:$0xff]
          %v2540 = vld [vmem:[%s10 + $0x80] sm:$0xff]
          %v2541 = vld [vmem:[%s10 + $0x88] sm:$0xff]
          %v2542 = vld [vmem:[%s10 + $0x90] sm:$0xff]
          %v2543 = vld [vmem:[%s10 + $0x98] sm:$0xff]
          %v2544 = vld [vmem:[%s10 + $0xa0] sm:$0xff]
          %v2545 = vld [vmem:[%s10 + $0xa8] sm:$0xff]
          %v2546 = vld [vmem:[%s10 + $0xb0] sm:$0xff]
          %v2547 = vld [vmem:[%s10 + $0xb8] sm:$0xff]
          %v2548 = vld [vmem:[%s10 + $0xc0] sm:$0xff]
          %v2549 = vld [vmem:[%s10 + $0xc8] sm:$0xff]
          %v2550 = vld [vmem:[%s10 + $0xd0] sm:$0xff]
          %v2551 = vld [vmem:[%s10 + $0xd8] sm:$0xff]
          %v2552 = vld [vmem:[%s10 + $0xe0] sm:$0xff]
          %v2553 = vld [vmem:[%s10 + $0xe8] sm:$0xff]
          %v2554 = vld [vmem:[%s10 + $0xf0] sm:$0xff]
          %v2555 = vld [vmem:[%s10 + $0xf8] sm:$0xff]
          %vm2556 = vcmask 31744
          %v2558 = vsel %vm2556, %v2523, 0
          %v2561 = vsel %vm2556, %v2524, 0
          %v2564 = vsel %vm2556, %v2525, 0
          %v2567 = vsel %vm2556, %v2526, 0
          %v2570 = vsel %vm2556, %v2527, 0
          %v2573 = vsel %vm2556, %v2528, 0
          %v2576 = vsel %vm2556, %v2529, 0
          %v2579 = vsel %vm2556, %v2530, 0
          %v2582 = vsel %vm2556, %v2531, 0
          %v2585 = vsel %vm2556, %v2532, 0
          %v2588 = vsel %vm2556, %v2533, 0
          %v2591 = vsel %vm2556, %v2534, 0
          %v2594 = vsel %vm2556, %v2535, 0
          %v2597 = vsel %vm2556, %v2536, 0
          %v2600 = vsel %vm2556, %v2537, 0
          %v2603 = vsel %vm2556, %v2538, 0
          %v2606 = vsel %vm2556, %v2539, 0
          %v2609 = vsel %vm2556, %v2540, 0
          %v2612 = vsel %vm2556, %v2541, 0
          %v2615 = vsel %vm2556, %v2542, 0
          %v2618 = vsel %vm2556, %v2543, 0
          %v2621 = vsel %vm2556, %v2544, 0
          %v2624 = vsel %vm2556, %v2545, 0
          %v2627 = vsel %vm2556, %v2546, 0
          %v2630 = vsel %vm2556, %v2547, 0
          %v2633 = vsel %vm2556, %v2548, 0
          %v2636 = vsel %vm2556, %v2549, 0
          %v2639 = vsel %vm2556, %v2550, 0
          %v2642 = vsel %vm2556, %v2551, 0
          %v2645 = vsel %vm2556, %v2552, 0
          %v2648 = vsel %vm2556, %v2553, 0
          %v2651 = vsel %vm2556, %v2554, 0
          %v2654 = vsel %vm2556, %v2555, 0
          %2656 = vmatprep.subr.mxu0 0.0
          %2657 = vmatpush1.xpose.msra.mxu0 %v2561
          %2658 = vmatprep.subr.mxu0 0.0
          %2659 = vmatpush1.xpose.msra.mxu0 %v2564
          %2660 = vmatprep.subr.mxu0 0.0
          %2661 = vmatpush1.xpose.msra.mxu0 %v2567
          %2662 = vmatprep.subr.mxu0 0.0
          %2663 = vmatpush1.xpose.msra.mxu0 %v2570
          %2664 = vmatprep.subr.mxu0 0.0
          %2665 = vmatpush1.xpose.msra.mxu0 %v2573
          %2666 = vmatprep.subr.mxu0 0.0
          %2667 = vmatpush1.xpose.msra.mxu0 %v2576
          %2668 = vmatprep.subr.mxu0 0.0
          %2669 = vmatpush1.xpose.msra.mxu0 %v2579
          %2670 = vmatprep.subr.mxu0 0.0
          %2671 = vmatpush1.xpose.msra.mxu0 %v2582
          %2672 = vmatprep.subr.mxu0 0.0
          %2673 = vmatpush1.xpose.msra.mxu0 %v2585
          %2674 = vmatprep.subr.mxu0 0.0
          %2675 = vmatpush1.xpose.msra.mxu0 %v2588
          %2676 = vmatprep.subr.mxu0 0.0
          %2677 = vmatpush1.xpose.msra.mxu0 %v2591
          %2678 = vmatprep.subr.mxu0 0.0
          %2679 = vmatpush1.xpose.msra.mxu0 %v2594
          %2680 = vmatprep.subr.mxu0 0.0
          %2681 = vmatpush1.xpose.msra.mxu0 %v2597
          %2682 = vmatprep.subr.mxu0 0.0
          %2683 = vmatpush1.xpose.msra.mxu0 %v2600
          %2684 = vmatprep.subr.mxu0 0.0
          %2685 = vmatpush1.xpose.msra.mxu0 %v2603
          %2686 = vmatprep.subr.mxu0 0.0
          %2687 = vmatpush1.xpose.msra.mxu0 %v2606
          %2688 = vmatprep.subr.mxu0 0.0
          %2689 = vmatpush1.xpose.msra.mxu0 %v2609
          %2690 = vmatprep.subr.mxu0 0.0
          %2691 = vmatpush1.xpose.msra.mxu0 %v2612
          %2692 = vmatprep.subr.mxu0 0.0
          %2693 = vmatpush1.xpose.msra.mxu0 %v2615
          %2694 = vmatprep.subr.mxu0 0.0
          %2695 = vmatpush1.xpose.msra.mxu0 %v2618
          %2696 = vmatprep.subr.mxu0 0.0
          %2697 = vmatpush1.xpose.msra.mxu0 %v2621
          %2698 = vmatprep.subr.mxu0 0.0
          %2699 = vmatpush1.xpose.msra.mxu0 %v2624
          %2700 = vmatprep.subr.mxu0 0.0
          %2701 = vmatpush1.xpose.msra.mxu0 %v2627
          %2702 = vmatprep.subr.mxu0 0.0
          %2703 = vmatpush1.xpose.msra.mxu0 %v2630
          %2704 = vmatprep.subr.mxu0 0.0
          %2705 = vmatpush1.xpose.msra.mxu0 %v2633
          %2706 = vmatprep.subr.mxu0 0.0
          %2707 = vmatpush1.xpose.msra.mxu0 %v2636
          %2708 = vmatprep.subr.mxu0 0.0
          %2709 = vmatpush1.xpose.msra.mxu0 %v2639
          %2710 = vmatprep.subr.mxu0 0.0
          %2711 = vmatpush1.xpose.msra.mxu0 %v2642
          %2712 = vmatprep.subr.mxu0 0.0
          %2713 = vmatpush1.xpose.msra.mxu0 %v2645
          %2714 = vmatprep.subr.mxu0 0.0
          %2715 = vmatpush1.xpose.msra.mxu0 %v2648
          %2716 = vmatprep.subr.mxu0 0.0
          %2717 = vmatpush1.xpose.msra.mxu0 %v2651
          %2718 = vmatprep.subr.mxu0 0.0
          %2719 = vmatpush1.xpose.msra.mxu0 %v2654
          %2720 = vmatprep.mubr.f32.mxu0 0.0
          %2721 = vmatmul.mubr.f32.gmra.mrb[0].mxu0 %v2558
          %v2722 = vpop.f32.mrb[0].mxu0
          %v2723 = vadd.f32 0.0, %v2722
          %v2724 = vpop.f32.mrb[0].mxu0
          %v2725 = vadd.f32 0.0, %v2724
          %2726 = vdwg.mxu0
          %v2729 = vcombine.low %v2723, %v2725
          %v2731 = vunpack.c.l.s4 1983009808
          %v2732 = vunpack.c.0.s8 %v2731
          %v2733 = vlaneseq
          %v2734 = vshrl.u32 %v2733, 7
          %v2735 = vsub.s32 %v2732, %v2734
          %v2736 = vrot.slane %v2729, %v2735
          %2738 = vst [vmem:[#allocation8] sm:$0xf] %v2736
        $region92: #{tpu_custom_call.1} parent=71 // pred_fallthru
          _
        // Predicated region
        $region93: #{tpu_custom_call.1} parent=71 // pred_check
          %p2739 = pneg %p331
        $region94: #{tpu_custom_call.1} parent=71 // pred_check_branch
          %2741 = sbr.rel (%p2739) target = $region96
        $region95: #{tpu_custom_call.1} parent=71 // pred_region
          %s2743 = ssub.s32 96, 96
          %2744 = vsyncadd [#allocation7], %s2743
          %s2746 = sshll.u32 [#allocation6], 4
          %s2747 = int_to_ptr.vmem [resolvable:$true] %s2746
          %2749 = dma.vmem_to_hbm [thread:$0]  %s2747, 96, %s13, [#allocation7]
        $region96: #{tpu_custom_call.1} parent=71 // pred_fallthru
          _
        // Predicated region
        $region97: #{tpu_custom_call.1} parent=71 // pred_check
          %p2750 = pneg %p352
        $region98: #{tpu_custom_call.1} parent=71 // pred_check_branch
          %2752 = sbr.rel (%p2750) target = $region100
        $region99: #{tpu_custom_call.1} parent=71 // pred_region
          %s2754 = ssub.s32 64, 64
          %2755 = vsyncadd [#allocation9], %s2754
          %s2757 = sshll.u32 [#allocation8], 4
          %s2758 = int_to_ptr.vmem [resolvable:$true] %s2757
          %2760 = dma.vmem_to_hbm [thread:$0]  %s2758, 64, %s14, [#allocation9]
        $region100: #{tpu_custom_call.1} parent=71 // pred_fallthru
          _
        // Predicated region
        $region101: #{tpu_custom_call.1} parent=71 // pred_check
          %p2761 = pneg %p331
        $region102: #{tpu_custom_call.1} parent=71 // pred_check_branch
          %2763 = sbr.rel (%p2761) target = $region104
        $region103: #{tpu_custom_call.1} parent=71 // pred_region
          %2764 = dma.done [#allocation7], 96
        $region104: #{tpu_custom_call.1} parent=71 // pred_fallthru
          _
        // Predicated region
        $region105: #{tpu_custom_call.1} parent=71 // pred_check
          %p2765 = pneg %p352
        $region106: #{tpu_custom_call.1} parent=71 // pred_check_branch
          %2767 = sbr.rel (%p2765) target = $region108
        $region107: #{tpu_custom_call.1} parent=71 // pred_region
          %2768 = dma.done [#allocation9], 64
        $region108: #{tpu_custom_call.1} parent=71 // pred_fallthru
          _
      $region72: #{tpu_custom_call.1} parent=5 // pred_fallthru
        _
      %p2769 = scmp.le.s32.totalorder 2, %s23
      // Predicated region
      $region109: #{tpu_custom_call.1} parent=5 // pred_check
        %p2770 = pneg %p2769
      $region110: #{tpu_custom_call.1} parent=5 // pred_check_branch
        %2772 = sbr.rel (%p2770) target = $region112
      $region111: #{tpu_custom_call.1} parent=5 // pred_region
        %s2773 = ssub.s32 %s23, 2
      $region112: #{tpu_custom_call.1} parent=5 // pred_fallthru
        _
    $region6: #{tpu_custom_call.1} parent=1 // loop_footer
      %s27 = sadd.s32 1, %s23
    $region7: #{tpu_custom_call.1} parent=1 // loop_footer_branch
      %22 = sbr.rel target = $region3
    $region8: #{tpu_custom_call.1} parent=1 // loop_exit
      _
    %2774 = vsyncpa [#allocation7], 1
    %s2775 = scalar_lea.sflag [#allocation7], 1
    %2776 = vsyncpa %s2775, 1
    %2777 = vsyncpa [#allocation9], 1

</llo_original>
